<compile_context>
chip_gen: v7x
topology: tpu7x:2x2x1
jax: 0.10.0
libtpu: 0.0.40
codegen_flags: <defaults>
</compile_context>

<pallas_src>
import math

import jax
import jax.numpy as jnp
from jax.experimental import pallas as pl
from jax.experimental.pallas import tpu as pltpu


# ---------------------------------------------------------------------------
# Kernel 1: row-tiled dense matmul + bias (feature transform X @ W1).
# ---------------------------------------------------------------------------
def _matmul_bias_kernel(x_ref, w_ref, b_ref, out_ref):
    acc = jnp.dot(x_ref[...], w_ref[...], preferred_element_type=jnp.float32)
    out_ref[...] = (acc + b_ref[...]).astype(out_ref.dtype)


def matmul_bias(x, w, bias, *, out_dtype, block_rows=512):
    m, kdim = x.shape
    n = w.shape[1]
    grid = (m // block_rows,)
    flops = 2 * m * kdim * n
    bytes_accessed = int(x.size * x.dtype.itemsize
                         + w.size * w.dtype.itemsize       # resident, read once
                         + bias.size * bias.dtype.itemsize
                         + m * n * jnp.dtype(out_dtype).itemsize)
    return pl.pallas_call(
        _matmul_bias_kernel,
        out_shape=jax.ShapeDtypeStruct((m, n), out_dtype),
        grid_spec=pltpu.PrefetchScalarGridSpec(
            num_scalar_prefetch=0,
            grid=grid,
            in_specs=[
                pl.BlockSpec((block_rows, kdim), lambda i: (i, 0)),
                pl.BlockSpec((kdim, n), lambda i: (0, 0)),
                pl.BlockSpec((1, n), lambda i: (0, 0)),
            ],
            out_specs=pl.BlockSpec((block_rows, n), lambda i: (i, 0)),
        ),
        compiler_params=pltpu.CompilerParams(
            dimension_semantics=("parallel",),
            vmem_limit_bytes=48 * 1024 * 1024,
        ),
        cost_estimate=pl.CostEstimate(flops=flops, transcendentals=0,
                                      bytes_accessed=bytes_accessed),
    )(x, w, bias)


# ---------------------------------------------------------------------------
# Kernel 2: tiled normalized aggregation with fused epilogue matmul:
#   out = ( act(A_hat @ F + pre_bias) )_bf16 @ W + post_bias
# Grid = (node row tiles [parallel], contraction tiles [arbitrary, last]).
# ---------------------------------------------------------------------------
def _make_fused_agg_kernel(apply_relu: bool):
    def kernel(adj_ref, feat_ref, preb_ref, w_ref, postb_ref, out_ref, acc_ref):
        k = pl.program_id(1)

        @pl.when(k == 0)
        def _():
            acc_ref[...] = jnp.zeros_like(acc_ref)

        # bf16 x bf16 MXU matmul, f32 accumulation.
        acc_ref[...] += jnp.dot(adj_ref[...], feat_ref[...],
                                preferred_element_type=jnp.float32)

        @pl.when(k == pl.num_programs(1) - 1)
        def _():
            res = acc_ref[...] + preb_ref[...]          # f32 epilogue
            if apply_relu:
                res = jnp.maximum(res, 0.0)
            # Fused small matmul (W2 / fc): tile already resident in VMEM,
            # essentially free on the MXU while the next tiles stream in.
            out = jnp.dot(res.astype(jnp.bfloat16), w_ref[...],
                          preferred_element_type=jnp.float32) + postb_ref[...]
            out_ref[...] = out.astype(out_ref.dtype)

    return kernel


def aggregate_fused(adj, feat, pre_bias, w, post_bias, *, apply_relu, out_dtype,
                    block_rows=512, block_nodes=512):
    m, ncols = adj.shape          # padded node count (square)
    h = feat.shape[1]             # lane-dense channel dim (multiple of 128)
    n_out = w.shape[1]            # lane-dense epilogue output dim
    grid = (m // block_rows, ncols // block_nodes)
    flops = 2 * m * ncols * h + 2 * m * h * n_out
    bytes_accessed = int(adj.size * adj.dtype.itemsize
                         + feat.size * feat.dtype.itemsize
                         + pre_bias.size * pre_bias.dtype.itemsize
                         + w.size * w.dtype.itemsize
                         + post_bias.size * post_bias.dtype.itemsize
                         + m * n_out * jnp.dtype(out_dtype).itemsize)
    # TODO(synk): if xprof shows exposed adjacency DMA, add
    # pipeline_mode=pl.Buffered(3) to the adj BlockSpec.
    return pl.pallas_call(
        _make_fused_agg_kernel(apply_relu),
        out_shape=jax.ShapeDtypeStruct((m, n_out), out_dtype),
        grid_spec=pltpu.PrefetchScalarGridSpec(
            num_scalar_prefetch=0,
            grid=grid,
            in_specs=[
                pl.BlockSpec((block_rows, block_nodes), lambda i, k: (i, k)),
                pl.BlockSpec((block_nodes, h), lambda i, k: (k, 0)),
                pl.BlockSpec((1, h), lambda i, k: (0, 0)),
                pl.BlockSpec((h, n_out), lambda i, k: (0, 0)),
                pl.BlockSpec((1, n_out), lambda i, k: (0, 0)),
            ],
            out_specs=pl.BlockSpec((block_rows, n_out), lambda i, k: (i, 0)),
            scratch_shapes=[pltpu.VMEM((block_rows, h), jnp.float32)],
        ),
        compiler_params=pltpu.CompilerParams(
            dimension_semantics=("parallel", "arbitrary"),
            vmem_limit_bytes=48 * 1024 * 1024,   # safe headroom on v7x's 64 MiB
        ),
        cost_estimate=pl.CostEstimate(flops=flops, transcendentals=0,
                                      bytes_accessed=bytes_accessed),
    )(adj, feat, pre_bias, w, post_bias)


# ---------------------------------------------------------------------------
# Forward wrapper: padding to lane-dense / tile-aligned shapes + 3 kernel calls.
# ---------------------------------------------------------------------------
def _round_up(v, m):
    return (v + m - 1) // m * m


def _pad2d(a, rows, cols):
    return jnp.pad(a, ((0, rows - a.shape[0]), (0, cols - a.shape[1])))


def conv_gnn_forward(adj_hat, x, w1, b1, w2, b2, w3, b3,
                     *, block_rows=512, block_nodes=512):
    n = x.shape[0]
    out_feats = w3.shape[1]
    lane = 128

    n_pad = _round_up(n, math.lcm(block_rows, block_nodes))
    block_nodes = min(block_nodes, n_pad)
    # Keep >=2 tiles on the parallel row axis so both v7x TensorCores get work.
    if n_pad // block_rows < 2:
        block_rows = max(n_pad // 2, 8)

    f_pad = _round_up(x.shape[1], lane)
    h_pad = _round_up(w1.shape[1], lane)
    o_pad = _round_up(out_feats, lane)

    # Pad everything. Zero-padded adjacency COLUMNS neutralize any nonzero
    # values (e.g. relu(b1) @ W2) that the fused epilogues write into padded
    # node rows of the intermediate features -- preserve this invariant.
    adj_p = _pad2d(adj_hat, n_pad, n_pad).astype(jnp.bfloat16)
    x_p = _pad2d(x, n_pad, f_pad).astype(jnp.bfloat16)
    w1_p = _pad2d(w1, f_pad, h_pad).astype(jnp.bfloat16)
    w2_p = _pad2d(w2, h_pad, h_pad).astype(jnp.bfloat16)
    w3_p = _pad2d(w3, h_pad, o_pad).astype(jnp.bfloat16)
    b1_p = _pad2d(jnp.reshape(b1, (1, -1)), 1, h_pad).astype(jnp.float32)
    b2_p = _pad2d(jnp.reshape(b2, (1, -1)), 1, h_pad).astype(jnp.float32)
    b3_p = _pad2d(jnp.reshape(b3, (1, -1)), 1, o_pad).astype(jnp.float32)
    zero_h = jnp.zeros((1, h_pad), jnp.float32)

    # 1) feature transform: xw1 = X @ W1  (bf16 operands, f32 MXU accumulation).
    xw1 = matmul_bias(x_p, w1_p, zero_h, out_dtype=jnp.bfloat16,
                      block_rows=block_rows)

    # 2) conv1 aggregate, fused with h1 @ W2:
    #    hw2 = relu(A_hat @ xw1 + b1).bf16 @ W2
    hw2 = aggregate_fused(adj_p, xw1, b1_p, w2_p, zero_h,
                          apply_relu=True, out_dtype=jnp.bfloat16,
                          block_rows=block_rows, block_nodes=block_nodes)

    # 3) conv2 aggregate, fused with the final fc:
    #    out = (A_hat @ hw2 + b2).bf16 @ W3 + b3
    out = aggregate_fused(adj_p, hw2, b2_p, w3_p, b3_p,
                          apply_relu=False, out_dtype=jnp.float32,
                          block_rows=block_rows, block_nodes=block_nodes)
    return out[:n, :out_feats]


# ---------------------------------------------------------------------------
# Glue: synthetic graph with self-loops + symmetric sqrt-degree normalization.
# ---------------------------------------------------------------------------
def build_normalized_adj(key, n, density=0.15):
    a = (jax.random.uniform(key, (n, n)) < density).astype(jnp.float32)
    a = jnp.maximum(a, a.T)                                  # undirected
    a = jnp.maximum(a, jnp.eye(n, dtype=jnp.float32))        # dgl.add_self_loop
    deg = jnp.sum(a, axis=1)
    d_inv_sqrt = jax.lax.rsqrt(deg)
    return a * d_inv_sqrt[:, None] * d_inv_sqrt[None, :]


if __name__ == "__main__":
    # Small synthetic shapes consistent with the module (ogbn-arxiv dims,
    # reduced node count).
    N = 300           # number of graph nodes (arxiv ~169K; small for the test)
    IN_FEATS = 128    # ogbn-arxiv node feature dim
    HIDDEN = 64       # hidden_feats from the module
    OUT_FEATS = 40    # ogbn-arxiv num_classes

    key = jax.random.PRNGKey(0)
    (k_adj, k_x, k_w1, k_b1, k_w2, k_b2, k_w3, k_b3) = jax.random.split(key, 8)

    adj_hat = build_normalized_adj(k_adj, N)
    x = jax.random.normal(k_x, (N, IN_FEATS), dtype=jnp.float32)

    def glorot(k, shape):
        fan_in, fan_out = shape
        lim = jnp.sqrt(6.0 / (fan_in + fan_out))
        return jax.random.uniform(k, shape, jnp.float32, -lim, lim)

    w1 = glorot(k_w1, (IN_FEATS, HIDDEN))
    b1 = 0.1 * jax.random.normal(k_b1, (HIDDEN,), dtype=jnp.float32)
    w2 = glorot(k_w2, (HIDDEN, HIDDEN))
    b2 = 0.1 * jax.random.normal(k_b2, (HIDDEN,), dtype=jnp.float32)
    w3 = glorot(k_w3, (HIDDEN, OUT_FEATS))
    b3 = 0.1 * jax.random.normal(k_b3, (OUT_FEATS,), dtype=jnp.float32)

    fwd = jax.jit(conv_gnn_forward)
    out = jax.block_until_ready(fwd(adj_hat, x, w1, b1, w2, b2, w3, b3))

    # Pure-JAX f32 reference of the module semantics.
    hp = jax.lax.Precision.HIGHEST
    h1_ref = jnp.maximum(
        jnp.dot(adj_hat, jnp.dot(x, w1, precision=hp), precision=hp) + b1, 0.0)
    h2_ref = jnp.dot(adj_hat, jnp.dot(h1_ref, w2, precision=hp), precision=hp) + b2
    ref = jnp.dot(h2_ref, w3, precision=hp) + b3

    assert out.shape == (N, OUT_FEATS)
    # bf16 adjacency / features / weights introduce ~1e-2-scale abs error here.
    assert jnp.allclose(out, ref, atol=3e-2, rtol=3e-2), \
        f"max abs err = {float(jnp.max(jnp.abs(out - ref)))}"

    print("KERNEL_OK")
</pallas_src>

<mosaic_0001>
module attributes {stable_mosaic.version = 11 : i64} {
  func.func @kernel(%arg0: i32, %arg1: i32, %arg2: memref<256x512xbf16, #tpu.memory_space<vmem>>, %arg3: memref<512x128xbf16, #tpu.memory_space<vmem>>, %arg4: memref<1x128xf32, #tpu.memory_space<vmem>>, %arg5: memref<128x128xbf16, #tpu.memory_space<vmem>>, %arg6: memref<1x128xf32, #tpu.memory_space<vmem>>, %arg7: memref<256x128xbf16, #tpu.memory_space<vmem>>, %arg8: memref<256x128xf32, #tpu.memory_space<vmem>>) attributes {dimension_semantics = [#tpu.dimension_semantics<parallel>, #tpu.dimension_semantics<arbitrary>], iteration_bounds = array<i64: 2, 1>, scalar_prefetch = 0 : i64, scratch_operands = 1 : i64, tpu.core_type = #tpu.core_type<tc>, window_params = [{transform_indices = @transform_0, window_bounds = array<i64: 256, 512>}, {transform_indices = @transform_1, window_bounds = array<i64: 512, 128>}, {pipeline_mode = #tpu.pipeline_mode<synchronous>, transform_indices = @transform_2, window_bounds = array<i64: 1, 128>}, {pipeline_mode = #tpu.pipeline_mode<synchronous>, transform_indices = @transform_3, window_bounds = array<i64: 128, 128>}, {pipeline_mode = #tpu.pipeline_mode<synchronous>, transform_indices = @transform_4, window_bounds = array<i64: 1, 128>}, {transform_indices = @transform_5, window_bounds = array<i64: 256, 128>}]} {
    %c0_i32 = arith.constant 0 : i32
    %0 = arith.cmpi eq, %arg1, %c0_i32 : i32
    %1 = arith.extui %0 : i1 to i32
    %c0_i32_0 = arith.constant 0 : i32
    %2 = arith.cmpi ne, %1, %c0_i32_0 : i32
    scf.if %2 {
      %cst_10 = arith.constant 0.000000e+00 : f32
      %12 = vector.broadcast %cst_10 : f32 to vector<256x128xf32>
      %c0_11 = arith.constant 0 : index
      %c0_12 = arith.constant 0 : index
      %13 = vector.load %arg8[%c0_11, %c0_12] : memref<256x128xf32, #tpu.memory_space<vmem>>, vector<256x128xf32>
      tpu.vector_store %arg8[%c0_11, %c0_12], %12 {strides = array<i32>} : memref<256x128xf32, #tpu.memory_space<vmem>>, vector<256x128xf32>,
    } else {
    }
    %c0 = arith.constant 0 : index
    %c0_1 = arith.constant 0 : index
    %3 = vector.load %arg8[%c0, %c0_1] : memref<256x128xf32, #tpu.memory_space<vmem>>, vector<256x128xf32>
    %c0_2 = arith.constant 0 : index
    %c0_3 = arith.constant 0 : index
    %4 = vector.load %arg2[%c0_2, %c0_3] : memref<256x512xbf16, #tpu.memory_space<vmem>>, vector<256x512xbf16>
    %c0_4 = arith.constant 0 : index
    %c0_5 = arith.constant 0 : index
    %5 = vector.load %arg3[%c0_4, %c0_5] : memref<512x128xbf16, #tpu.memory_space<vmem>>, vector<512x128xbf16>
    %cst = arith.constant dense<0.000000e+00> : vector<256x128xf32>
    %6 = tpu.matmul %4, %5, %cst {dimension_numbers = #tpu.dot_dimension_numbers<[1], [0], [0], [1], [0, 0, 1, 1], [], []>} : vector<256x512xbf16>, vector<512x128xbf16>, vector<256x128xf32> -> vector<256x128xf32>
    %7 = arith.addf %3, %6 : vector<256x128xf32>
    %c0_6 = arith.constant 0 : index
    %c0_7 = arith.constant 0 : index
    %8 = vector.load %arg8[%c0_6, %c0_7] : memref<256x128xf32, #tpu.memory_space<vmem>>, vector<256x128xf32>
    tpu.vector_store %arg8[%c0_6, %c0_7], %7 {strides = array<i32>} : memref<256x128xf32, #tpu.memory_space<vmem>>, vector<256x128xf32>,
    %c0_i32_8 = arith.constant 0 : i32
    %9 = arith.cmpi eq, %arg1, %c0_i32_8 : i32
    %10 = arith.extui %9 : i1 to i32
    %c0_i32_9 = arith.constant 0 : i32
    %11 = arith.cmpi ne, %10, %c0_i32_9 : i32
    scf.if %11 {
      %c0_10 = arith.constant 0 : index
      %c0_11 = arith.constant 0 : index
      %12 = vector.load %arg8[%c0_10, %c0_11] : memref<256x128xf32, #tpu.memory_space<vmem>>, vector<256x128xf32>
      %c0_12 = arith.constant 0 : index
      %c0_13 = arith.constant 0 : index
      %13 = vector.load %arg4[%c0_12, %c0_13] : memref<1x128xf32, #tpu.memory_space<vmem>>, vector<1x128xf32>
      %14 = vector.broadcast %13 : vector<1x128xf32> to vector<256x128xf32>
      %15 = arith.addf %12, %14 : vector<256x128xf32>
      %cst_14 = arith.constant 0.000000e+00 : f32
      %16 = vector.broadcast %cst_14 : f32 to vector<256x128xf32>
      %17 = arith.maximumf %15, %16 : vector<256x128xf32>
      %18 = arith.truncf %17 : vector<256x128xf32> to vector<256x128xbf16>
      %c0_15 = arith.constant 0 : index
      %c0_16 = arith.constant 0 : index
      %19 = vector.load %arg5[%c0_15, %c0_16] : memref<128x128xbf16, #tpu.memory_space<vmem>>, vector<128x128xbf16>
      %cst_17 = arith.constant dense<0.000000e+00> : vector<256x128xf32>
      %20 = tpu.matmul %18, %19, %cst_17 {dimension_numbers = #tpu.dot_dimension_numbers<[1], [0], [0], [1], [0, 0, 1, 1], [], []>} : vector<256x128xbf16>, vector<128x128xbf16>, vector<256x128xf32> -> vector<256x128xf32>
      %c0_18 = arith.constant 0 : index
      %c0_19 = arith.constant 0 : index
      %21 = vector.load %arg6[%c0_18, %c0_19] : memref<1x128xf32, #tpu.memory_space<vmem>>, vector<1x128xf32>
      %22 = vector.broadcast %21 : vector<1x128xf32> to vector<256x128xf32>
      %23 = arith.addf %20, %22 : vector<256x128xf32>
      %24 = arith.truncf %23 : vector<256x128xf32> to vector<256x128xbf16>
      %c0_20 = arith.constant 0 : index
      %c0_21 = arith.constant 0 : index
      %25 = vector.load %arg7[%c0_20, %c0_21] : memref<256x128xbf16, #tpu.memory_space<vmem>>, vector<256x128xbf16>
      tpu.vector_store %arg7[%c0_20, %c0_21], %24 {strides = array<i32>} : memref<256x128xbf16, #tpu.memory_space<vmem>>, vector<256x128xbf16>,
    } else {
    }
    return
  }
  func.func @transform_0(%arg0: i32, %arg1: i32) -> (i32, i32) {
    %c0_i32 = arith.constant 0 : i32
    return %arg0, %arg1 : i32, i32
  }
  func.func @transform_1(%arg0: i32, %arg1: i32) -> (i32, i32) {
    %c0_i32 = arith.constant 0 : i32
    %c0_i32_0 = arith.constant 0 : i32
    return %arg1, %c0_i32 : i32, i32
  }
  func.func @transform_2(%arg0: i32, %arg1: i32) -> (i32, i32) {
    %c0_i32 = arith.constant 0 : i32
    %c0_i32_0 = arith.constant 0 : i32
    %c0_i32_1 = arith.constant 0 : i32
    return %c0_i32, %c0_i32_0 : i32, i32
  }
  func.func @transform_3(%arg0: i32, %arg1: i32) -> (i32, i32) {
    %c0_i32 = arith.constant 0 : i32
    %c0_i32_0 = arith.constant 0 : i32
    %c0_i32_1 = arith.constant 0 : i32
    return %c0_i32, %c0_i32_0 : i32, i32
  }
  func.func @transform_4(%arg0: i32, %arg1: i32) -> (i32, i32) {
    %c0_i32 = arith.constant 0 : i32
    %c0_i32_0 = arith.constant 0 : i32
    %c0_i32_1 = arith.constant 0 : i32
    return %c0_i32, %c0_i32_0 : i32, i32
  }
  func.func @transform_5(%arg0: i32, %arg1: i32) -> (i32, i32) {
    %c0_i32 = arith.constant 0 : i32
    %c0_i32_0 = arith.constant 0 : i32
    return %arg0, %c0_i32 : i32, i32
  }
}

module attributes {stable_mosaic.version = 11 : i64} {
  func.func @_matmul_bias_kernel(%arg0: i32, %arg1: memref<256x128xbf16, #tpu.memory_space<vmem>>, %arg2: memref<128x128xbf16, #tpu.memory_space<vmem>>, %arg3: memref<1x128xf32, #tpu.memory_space<vmem>>, %arg4: memref<256x128xbf16, #tpu.memory_space<vmem>>) attributes {dimension_semantics = [#tpu.dimension_semantics<parallel>], iteration_bounds = array<i64: 2>, scalar_prefetch = 0 : i64, scratch_operands = 0 : i64, tpu.core_type = #tpu.core_type<tc>, window_params = [{transform_indices = @transform_0, window_bounds = array<i64: 256, 128>}, {pipeline_mode = #tpu.pipeline_mode<synchronous>, transform_indices = @transform_1, window_bounds = array<i64: 128, 128>}, {pipeline_mode = #tpu.pipeline_mode<synchronous>, transform_indices = @transform_2, window_bounds = array<i64: 1, 128>}, {transform_indices = @transform_3, window_bounds = array<i64: 256, 128>}]} {
    %c0 = arith.constant 0 : index
    %c0_0 = arith.constant 0 : index
    %0 = vector.load %arg1[%c0, %c0_0] : memref<256x128xbf16, #tpu.memory_space<vmem>>, vector<256x128xbf16>
    %c0_1 = arith.constant 0 : index
    %c0_2 = arith.constant 0 : index
    %1 = vector.load %arg2[%c0_1, %c0_2] : memref<128x128xbf16, #tpu.memory_space<vmem>>, vector<128x128xbf16>
    %cst = arith.constant dense<0.000000e+00> : vector<256x128xf32>
    %2 = tpu.matmul %0, %1, %cst {dimension_numbers = #tpu.dot_dimension_numbers<[1], [0], [0], [1], [0, 0, 1, 1], [], []>} : vector<256x128xbf16>, vector<128x128xbf16>, vector<256x128xf32> -> vector<256x128xf32>
    %c0_3 = arith.constant 0 : index
    %c0_4 = arith.constant 0 : index
    %3 = vector.load %arg3[%c0_3, %c0_4] : memref<1x128xf32, #tpu.memory_space<vmem>>, vector<1x128xf32>
    %4 = vector.broadcast %3 : vector<1x128xf32> to vector<256x128xf32>
    %5 = arith.addf %2, %4 : vector<256x128xf32>
    %6 = arith.truncf %5 : vector<256x128xf32> to vector<256x128xbf16>
    %c0_5 = arith.constant 0 : index
    %c0_6 = arith.constant 0 : index
    %7 = vector.load %arg4[%c0_5, %c0_6] : memref<256x128xbf16, #tpu.memory_space<vmem>>, vector<256x128xbf16>
    tpu.vector_store %arg4[%c0_5, %c0_6], %6 {strides = array<i32>} : memref<256x128xbf16, #tpu.memory_space<vmem>>, vector<256x128xbf16>,
    return
  }
  func.func @transform_0(%arg0: i32) -> (i32, i32) {
    %c0_i32 = arith.constant 0 : i32
    %c0_i32_0 = arith.constant 0 : i32
    return %arg0, %c0_i32 : i32, i32
  }
  func.func @transform_1(%arg0: i32) -> (i32, i32) {
    %c0_i32 = arith.constant 0 : i32
    %c0_i32_0 = arith.constant 0 : i32
    %c0_i32_1 = arith.constant 0 : i32
    return %c0_i32, %c0_i32_0 : i32, i32
  }
  func.func @transform_2(%arg0: i32) -> (i32, i32) {
    %c0_i32 = arith.constant 0 : i32
    %c0_i32_0 = arith.constant 0 : i32
    %c0_i32_1 = arith.constant 0 : i32
    return %c0_i32, %c0_i32_0 : i32, i32
  }
  func.func @transform_3(%arg0: i32) -> (i32, i32) {
    %c0_i32 = arith.constant 0 : i32
    %c0_i32_0 = arith.constant 0 : i32
    return %arg0, %c0_i32 : i32, i32
  }
}

module attributes {stable_mosaic.version = 11 : i64} {
  func.func @kernel(%arg0: i32, %arg1: i32, %arg2: memref<256x512xbf16, #tpu.memory_space<vmem>>, %arg3: memref<512x128xbf16, #tpu.memory_space<vmem>>, %arg4: memref<1x128xf32, #tpu.memory_space<vmem>>, %arg5: memref<128x128xbf16, #tpu.memory_space<vmem>>, %arg6: memref<1x128xf32, #tpu.memory_space<vmem>>, %arg7: memref<256x128xf32, #tpu.memory_space<vmem>>, %arg8: memref<256x128xf32, #tpu.memory_space<vmem>>) attributes {dimension_semantics = [#tpu.dimension_semantics<parallel>, #tpu.dimension_semantics<arbitrary>], iteration_bounds = array<i64: 2, 1>, scalar_prefetch = 0 : i64, scratch_operands = 1 : i64, tpu.core_type = #tpu.core_type<tc>, window_params = [{transform_indices = @transform_0, window_bounds = array<i64: 256, 512>}, {transform_indices = @transform_1, window_bounds = array<i64: 512, 128>}, {pipeline_mode = #tpu.pipeline_mode<synchronous>, transform_indices = @transform_2, window_bounds = array<i64: 1, 128>}, {pipeline_mode = #tpu.pipeline_mode<synchronous>, transform_indices = @transform_3, window_bounds = array<i64: 128, 128>}, {pipeline_mode = #tpu.pipeline_mode<synchronous>, transform_indices = @transform_4, window_bounds = array<i64: 1, 128>}, {transform_indices = @transform_5, window_bounds = array<i64: 256, 128>}]} {
    %c0_i32 = arith.constant 0 : i32
    %0 = arith.cmpi eq, %arg1, %c0_i32 : i32
    %1 = arith.extui %0 : i1 to i32
    %c0_i32_0 = arith.constant 0 : i32
    %2 = arith.cmpi ne, %1, %c0_i32_0 : i32
    scf.if %2 {
      %cst_10 = arith.constant 0.000000e+00 : f32
      %12 = vector.broadcast %cst_10 : f32 to vector<256x128xf32>
      %c0_11 = arith.constant 0 : index
      %c0_12 = arith.constant 0 : index
      %13 = vector.load %arg8[%c0_11, %c0_12] : memref<256x128xf32, #tpu.memory_space<vmem>>, vector<256x128xf32>
      tpu.vector_store %arg8[%c0_11, %c0_12], %12 {strides = array<i32>} : memref<256x128xf32, #tpu.memory_space<vmem>>, vector<256x128xf32>,
    } else {
    }
    %c0 = arith.constant 0 : index
    %c0_1 = arith.constant 0 : index
    %3 = vector.load %arg8[%c0, %c0_1] : memref<256x128xf32, #tpu.memory_space<vmem>>, vector<256x128xf32>
    %c0_2 = arith.constant 0 : index
    %c0_3 = arith.constant 0 : index
    %4 = vector.load %arg2[%c0_2, %c0_3] : memref<256x512xbf16, #tpu.memory_space<vmem>>, vector<256x512xbf16>
    %c0_4 = arith.constant 0 : index
    %c0_5 = arith.constant 0 : index
    %5 = vector.load %arg3[%c0_4, %c0_5] : memref<512x128xbf16, #tpu.memory_space<vmem>>, vector<512x128xbf16>
    %cst = arith.constant dense<0.000000e+00> : vector<256x128xf32>
    %6 = tpu.matmul %4, %5, %cst {dimension_numbers = #tpu.dot_dimension_numbers<[1], [0], [0], [1], [0, 0, 1, 1], [], []>} : vector<256x512xbf16>, vector<512x128xbf16>, vector<256x128xf32> -> vector<256x128xf32>
    %7 = arith.addf %3, %6 : vector<256x128xf32>
    %c0_6 = arith.constant 0 : index
    %c0_7 = arith.constant 0 : index
    %8 = vector.load %arg8[%c0_6, %c0_7] : memref<256x128xf32, #tpu.memory_space<vmem>>, vector<256x128xf32>
    tpu.vector_store %arg8[%c0_6, %c0_7], %7 {strides = array<i32>} : memref<256x128xf32, #tpu.memory_space<vmem>>, vector<256x128xf32>,
    %c0_i32_8 = arith.constant 0 : i32
    %9 = arith.cmpi eq, %arg1, %c0_i32_8 : i32
    %10 = arith.extui %9 : i1 to i32
    %c0_i32_9 = arith.constant 0 : i32
    %11 = arith.cmpi ne, %10, %c0_i32_9 : i32
    scf.if %11 {
      %c0_10 = arith.constant 0 : index
      %c0_11 = arith.constant 0 : index
      %12 = vector.load %arg8[%c0_10, %c0_11] : memref<256x128xf32, #tpu.memory_space<vmem>>, vector<256x128xf32>
      %c0_12 = arith.constant 0 : index
      %c0_13 = arith.constant 0 : index
      %13 = vector.load %arg4[%c0_12, %c0_13] : memref<1x128xf32, #tpu.memory_space<vmem>>, vector<1x128xf32>
      %14 = vector.broadcast %13 : vector<1x128xf32> to vector<256x128xf32>
      %15 = arith.addf %12, %14 : vector<256x128xf32>
      %16 = arith.truncf %15 : vector<256x128xf32> to vector<256x128xbf16>
      %c0_14 = arith.constant 0 : index
      %c0_15 = arith.constant 0 : index
      %17 = vector.load %arg5[%c0_14, %c0_15] : memref<128x128xbf16, #tpu.memory_space<vmem>>, vector<128x128xbf16>
      %cst_16 = arith.constant dense<0.000000e+00> : vector<256x128xf32>
      %18 = tpu.matmul %16, %17, %cst_16 {dimension_numbers = #tpu.dot_dimension_numbers<[1], [0], [0], [1], [0, 0, 1, 1], [], []>} : vector<256x128xbf16>, vector<128x128xbf16>, vector<256x128xf32> -> vector<256x128xf32>
      %c0_17 = arith.constant 0 : index
      %c0_18 = arith.constant 0 : index
      %19 = vector.load %arg6[%c0_17, %c0_18] : memref<1x128xf32, #tpu.memory_space<vmem>>, vector<1x128xf32>
      %20 = vector.broadcast %19 : vector<1x128xf32> to vector<256x128xf32>
      %21 = arith.addf %18, %20 : vector<256x128xf32>
      %c0_19 = arith.constant 0 : index
      %c0_20 = arith.constant 0 : index
      %22 = vector.load %arg7[%c0_19, %c0_20] : memref<256x128xf32, #tpu.memory_space<vmem>>, vector<256x128xf32>
      tpu.vector_store %arg7[%c0_19, %c0_20], %21 {strides = array<i32>} : memref<256x128xf32, #tpu.memory_space<vmem>>, vector<256x128xf32>,
    } else {
    }
    return
  }
  func.func @transform_0(%arg0: i32, %arg1: i32) -> (i32, i32) {
    %c0_i32 = arith.constant 0 : i32
    return %arg0, %arg1 : i32, i32
  }
  func.func @transform_1(%arg0: i32, %arg1: i32) -> (i32, i32) {
    %c0_i32 = arith.constant 0 : i32
    %c0_i32_0 = arith.constant 0 : i32
    return %arg1, %c0_i32 : i32, i32
  }
  func.func @transform_2(%arg0: i32, %arg1: i32) -> (i32, i32) {
    %c0_i32 = arith.constant 0 : i32
    %c0_i32_0 = arith.constant 0 : i32
    %c0_i32_1 = arith.constant 0 : i32
    return %c0_i32, %c0_i32_0 : i32, i32
  }
  func.func @transform_3(%arg0: i32, %arg1: i32) -> (i32, i32) {
    %c0_i32 = arith.constant 0 : i32
    %c0_i32_0 = arith.constant 0 : i32
    %c0_i32_1 = arith.constant 0 : i32
    return %c0_i32, %c0_i32_0 : i32, i32
  }
  func.func @transform_4(%arg0: i32, %arg1: i32) -> (i32, i32) {
    %c0_i32 = arith.constant 0 : i32
    %c0_i32_0 = arith.constant 0 : i32
    %c0_i32_1 = arith.constant 0 : i32
    return %c0_i32, %c0_i32_0 : i32, i32
  }
  func.func @transform_5(%arg0: i32, %arg1: i32) -> (i32, i32) {
    %c0_i32 = arith.constant 0 : i32
    %c0_i32_0 = arith.constant 0 : i32
    return %arg0, %c0_i32 : i32, i32
  }
}

</mosaic_0001>

<llo_original>
// kernel: conv_gnn_forward.3
$region0: #{conv_gnn_forward.3}
  #allocation0 [shape = 'u32[]', space=smem, size = 0x4, offset = 0x4, fixed_abs, tag = 'smem constant byte address 0x4 - core index']
  #allocation1 [shape = 'u32[144,128]{1,0:T(1,128)}', space=vmem, size = 0x12000, scoped, tag = 'internal scratch']
  %s0 = inlined_call_operand.vmem [shape: bf16[512,128], index: 0, kind: input, shape index: {}]
  %s1 = inlined_call_operand.vmem [shape: bf16[128,128], index: 1, kind: input, shape index: {}]
  %s2 = inlined_call_operand.vmem [shape: f32[1,128], index: 2, kind: input, shape index: {}]
  %s3 = inlined_call_operand.vmem [shape: bf16[512,128], index: 3, kind: output, shape index: {}]
  %s4 = sld [smem:[#allocation0]]
  $region45: #{conv_gnn_forward.3} parent=0
    _
  %s6 = ssub.s32 1, %s4
  %s7 = scalar_select 0, %s6, %s4
  loop: start=0, step=1, limit=4
  $region2: #{conv_gnn_forward.3} parent=0 // loop_pre_header
    _
  $region3: #{conv_gnn_forward.3} parent=0 // loop_header
    %s9 = sphi 0, %s13
    %p10 = scmp.ge.s32.totalorder %s9, 4
    %s19 = sphi 0, %s21
    %s22 = sphi 0, %s19
    %s23 = sphi 0, %s22
    %s39 = sphi 0, %s23
    %s43 = sphi 0, %s43
    %s45 = sphi 0, %s43
    %s46 = sphi 0, %s45
    %s60 = sphi 0, %s46
    %s64 = sphi 0, %s64
    %s66 = sphi 0, %s64
    %s67 = sphi 0, %s66
    %s81 = sphi 0, %s67
    %s87 = sphi 0, %s89
    %s90 = sphi 0, %s87
    %s91 = sphi 0, %s90
    %s107 = sphi 0, %s91
  $region4: #{conv_gnn_forward.3} parent=0 // loop_header_branch
    %12 = sbr.rel (%p10) target = $region8
  $region5: #{conv_gnn_forward.3} parent=0 // loop_body
    %s14 = ssub.s32 %s9, 1
    %s15 = ssub.s32 %s9, 2
    %s16 = sadd.s32 %s9, 1
    %s17 = ssub.s32 %s9, %s16
    %p18 = scmp.eq.s32.totalorder %s17, 0
    %s20 = sadd.s32 %s19, 1
    %s21 = scalar_select %p18, %s19, %s20
    %p24 = pneg %p18
    %p25 = scmp.eq.s32.totalorder %s9, 1
    %p26 = por %p24, %p25
    %p27 = scmp.ne.s32.totalorder %s19, %s22
    %p28 = scmp.eq.s32.totalorder %s9, 0
    %p29 = por %p27, %p28
    %p30 = scmp.ne.s32.totalorder %s19, %s22
    %p31 = scmp.eq.s32.totalorder %s14, 1
    %p32 = por %p30, %p31
    %p33 = scmp.ne.s32.totalorder %s22, %s23
    %p34 = scmp.eq.s32.totalorder %s14, 0
    %p35 = por %p33, %p34
    %p36 = scmp.ne.s32.totalorder %s22, %s23
    %p37 = scmp.eq.s32.totalorder %s15, 1
    %p38 = por %p36, %p37
    %p40 = scmp.ne.s32.totalorder %s23, %s39
    %p41 = scmp.eq.s32.totalorder %s15, 0
    %p42 = por %p40, %p41
    %s44 = sadd.s32 %s43, 1
    %p47 = scmp.eq.s32.totalorder %s9, 1
    %p48 = scmp.ne.s32.totalorder %s43, %s45
    %p49 = scmp.eq.s32.totalorder %s9, 0
    %p50 = por %p48, %p49
    %p51 = scmp.ne.s32.totalorder %s43, %s45
    %p52 = scmp.eq.s32.totalorder %s14, 1
    %p53 = por %p51, %p52
    %p54 = scmp.ne.s32.totalorder %s45, %s46
    %p55 = scmp.eq.s32.totalorder %s14, 0
    %p56 = por %p54, %p55
    %p57 = scmp.ne.s32.totalorder %s45, %s46
    %p58 = scmp.eq.s32.totalorder %s15, 1
    %p59 = por %p57, %p58
    %p61 = scmp.ne.s32.totalorder %s46, %s60
    %p62 = scmp.eq.s32.totalorder %s15, 0
    %p63 = por %p61, %p62
    %s65 = sadd.s32 %s64, 1
    %p68 = scmp.eq.s32.totalorder %s9, 1
    %p69 = scmp.ne.s32.totalorder %s64, %s66
    %p70 = scmp.eq.s32.totalorder %s9, 0
    %p71 = por %p69, %p70
    %p72 = scmp.ne.s32.totalorder %s64, %s66
    %p73 = scmp.eq.s32.totalorder %s14, 1
    %p74 = por %p72, %p73
    %p75 = scmp.ne.s32.totalorder %s66, %s67
    %p76 = scmp.eq.s32.totalorder %s14, 0
    %p77 = por %p75, %p76
    %p78 = scmp.ne.s32.totalorder %s66, %s67
    %p79 = scmp.eq.s32.totalorder %s15, 1
    %p80 = por %p78, %p79
    %p82 = scmp.ne.s32.totalorder %s67, %s81
    %p83 = scmp.eq.s32.totalorder %s15, 0
    %p84 = por %p82, %p83
    %s85 = ssub.s32 %s9, %s16
    %p86 = scmp.eq.s32.totalorder %s85, 0
    %s88 = sadd.s32 %s87, 1
    %s89 = scalar_select %p86, %s87, %s88
    %p92 = pneg %p86
    %p93 = scmp.eq.s32.totalorder %s9, 1
    %p94 = por %p92, %p93
    %p95 = scmp.ne.s32.totalorder %s87, %s90
    %p96 = scmp.eq.s32.totalorder %s9, 0
    %p97 = por %p95, %p96
    %p98 = scmp.ne.s32.totalorder %s87, %s90
    %p99 = scmp.eq.s32.totalorder %s14, 1
    %p100 = por %p98, %p99
    %p101 = scmp.ne.s32.totalorder %s90, %s91
    %p102 = scmp.eq.s32.totalorder %s14, 0
    %p103 = por %p101, %p102
    %p104 = scmp.ne.s32.totalorder %s90, %s91
    %p105 = scmp.eq.s32.totalorder %s15, 1
    %p106 = por %p104, %p105
    %p108 = scmp.ne.s32.totalorder %s91, %s107
    %p109 = scmp.eq.s32.totalorder %s15, 0
    %p110 = por %p108, %p109
    %p111 = scmp.le.s32.totalorder 1, %s9
    %p112 = scmp.lt.s32.totalorder %s9, 3
    %p113 = pnand %p111, %p112
    %p114 = pneg %p113
    // Predicated region
    $region9: #{conv_gnn_forward.3} parent=5 // pred_check
      _
    $region10: #{conv_gnn_forward.3} parent=5 // pred_check_branch
      %116 = sbr.rel (%p113) target = $region12
    $region11: #{conv_gnn_forward.3} parent=5 // pred_region
      %s117 = ssub.s32 %s9, 1
      // Predicated region
      $region13: #{conv_gnn_forward.3} parent=11 // pred_check
        %p118 = pneg %p56
      $region14: #{conv_gnn_forward.3} parent=11 // pred_check_branch
        %120 = sbr.rel (%p118) target = $region16
      $region15: #{conv_gnn_forward.3} parent=11 // pred_region
        _
      $region16: #{conv_gnn_forward.3} parent=11 // pred_fallthru
        _
      // Predicated region
      $region17: #{conv_gnn_forward.3} parent=11 // pred_check
        %p121 = pneg %p77
      $region18: #{conv_gnn_forward.3} parent=11 // pred_check_branch
        %123 = sbr.rel (%p121) target = $region20
      $region19: #{conv_gnn_forward.3} parent=11 // pred_region
        _
      $region20: #{conv_gnn_forward.3} parent=11 // pred_fallthru
        _
    $region12: #{conv_gnn_forward.3} parent=5 // pred_fallthru
      _
    %p124 = scmp.lt.s32.totalorder %s9, 2
    // Predicated region
    $region21: #{conv_gnn_forward.3} parent=5 // pred_check
      %p125 = pneg %p124
    $region22: #{conv_gnn_forward.3} parent=5 // pred_check_branch
      %127 = sbr.rel (%p125) target = $region24
    $region23: #{conv_gnn_forward.3} parent=5 // pred_region
      // Predicated region
      $region25: #{conv_gnn_forward.3} parent=23 // pred_check
        %p128 = pneg %p29
      $region26: #{conv_gnn_forward.3} parent=23 // pred_check_branch
        %130 = sbr.rel (%p128) target = $region28
      $region27: #{conv_gnn_forward.3} parent=23 // pred_region
        %s131 = smul.u32 32, %s9
        %p132 = scmp.lt.s32.totalorder %s131, 63
        %s133 = scalar_select %p132, %s131, 63
        %s134 = smul.addr %s133, 4
        %s135 = scalar_lea.vmem %s0, %s134
        %s136 = smul.u32 32, %s9
      $region28: #{conv_gnn_forward.3} parent=23 // pred_fallthru
        _
    $region24: #{conv_gnn_forward.3} parent=5 // pred_fallthru
      _
    %p137 = scmp.le.s32.totalorder 1, %s9
    %p138 = scmp.lt.s32.totalorder %s9, 3
    %p139 = pnand %p137, %p138
    %p140 = pneg %p139
    // Predicated region
    $region29: #{conv_gnn_forward.3} parent=5 // pred_check
      _
    $region30: #{conv_gnn_forward.3} parent=5 // pred_check_branch
      %142 = sbr.rel (%p139) target = $region32
    $region31: #{conv_gnn_forward.3} parent=5 // pred_region
      %s143 = ssub.s32 %s9, 1
      %s144 = smul.u32 32, %s14
      %p145 = scmp.lt.s32.totalorder %s144, 63
      %s146 = scalar_select %p145, %s144, 63
      %s147 = smul.addr %s146, 4
      %s148 = scalar_lea.vmem %s0, %s147
      %p149 = pneg %p35
      %p150 = pneg %p32
      %p151 = pneg %p56
      %p152 = pneg %p53
      %p153 = pneg %p77
      %p154 = pneg %p74
      %p155 = pneg %p103
      %p156 = pneg %p100
      %s157 = smul.u32 32, %s14
      %p158 = scmp.lt.s32.totalorder %s157, 63
      %s159 = scalar_select %p158, %s157, 63
      %s160 = smul.addr %s159, 4
      %s161 = scalar_lea.vmem %s3, %s160
      %s162 = smul.u32 32, %s14
      %p163 = scmp.lt.s32.totalorder %s162, 63
      %s164 = scalar_select %p163, %s162, 63
      %s165 = smul.addr %s164, 4
      %s166 = scalar_lea.vmem %s0, %s165
      %s167 = smul.u32 32, %s14
      %s168 = smul.u32 32, %s14
      %p169 = scmp.lt.s32.totalorder %s168, 63
      %s170 = scalar_select %p169, %s168, 63
      %s171 = smul.addr %s170, 4
      %s172 = scalar_lea.vmem %s3, %s171
      %s173 = smul.u32 32, %s14
      %v175 = vld [vmem:[%s166] sm:$0xf]
      %v176 = vld [vmem:[%s166 + $0x4] sm:$0xf]
      %v177 = vld [vmem:[%s166 + $0x8] sm:$0xf]
      %v178 = vld [vmem:[%s166 + $0xc] sm:$0xf]
      %v179 = vld [vmem:[%s166 + $0x10] sm:$0xf]
      %v180 = vld [vmem:[%s166 + $0x14] sm:$0xf]
      %v181 = vld [vmem:[%s166 + $0x18] sm:$0xf]
      %v182 = vld [vmem:[%s166 + $0x1c] sm:$0xf]
      %v183 = vld [vmem:[%s166 + $0x20] sm:$0xf]
      %v184 = vld [vmem:[%s166 + $0x24] sm:$0xf]
      %v185 = vld [vmem:[%s166 + $0x28] sm:$0xf]
      %v186 = vld [vmem:[%s166 + $0x2c] sm:$0xf]
      %v187 = vld [vmem:[%s166 + $0x30] sm:$0xf]
      %v188 = vld [vmem:[%s166 + $0x34] sm:$0xf]
      %v189 = vld [vmem:[%s166 + $0x38] sm:$0xf]
      %v190 = vld [vmem:[%s166 + $0x3c] sm:$0xf]
      %v191 = vld [vmem:[%s166 + $0x40] sm:$0xf]
      %v192 = vld [vmem:[%s166 + $0x44] sm:$0xf]
      %v193 = vld [vmem:[%s166 + $0x48] sm:$0xf]
      %v194 = vld [vmem:[%s166 + $0x4c] sm:$0xf]
      %v195 = vld [vmem:[%s166 + $0x50] sm:$0xf]
      %v196 = vld [vmem:[%s166 + $0x54] sm:$0xf]
      %v197 = vld [vmem:[%s166 + $0x58] sm:$0xf]
      %v198 = vld [vmem:[%s166 + $0x5c] sm:$0xf]
      %v199 = vld [vmem:[%s166 + $0x60] sm:$0xf]
      %v200 = vld [vmem:[%s166 + $0x64] sm:$0xf]
      %v201 = vld [vmem:[%s166 + $0x68] sm:$0xf]
      %v202 = vld [vmem:[%s166 + $0x6c] sm:$0xf]
      %v203 = vld [vmem:[%s166 + $0x70] sm:$0xf]
      %v204 = vld [vmem:[%s166 + $0x74] sm:$0xf]
      %v205 = vld [vmem:[%s166 + $0x78] sm:$0xf]
      %v206 = vld [vmem:[%s166 + $0x7c] sm:$0xf]
      %v207 = vld [vmem:[%s1] sm:$0xf]
      %v208 = vld [vmem:[%s1 + $0x4] sm:$0xf]
      %v209 = vld [vmem:[%s1 + $0x8] sm:$0xf]
      %v210 = vld [vmem:[%s1 + $0xc] sm:$0xf]
      %v211 = vld [vmem:[%s1 + $0x10] sm:$0xf]
      %v212 = vld [vmem:[%s1 + $0x14] sm:$0xf]
      %v213 = vld [vmem:[%s1 + $0x18] sm:$0xf]
      %v214 = vld [vmem:[%s1 + $0x1c] sm:$0xf]
      %v215 = vld [vmem:[%s1 + $0x20] sm:$0xf]
      %v216 = vld [vmem:[%s1 + $0x24] sm:$0xf]
      %v217 = vld [vmem:[%s1 + $0x28] sm:$0xf]
      %v218 = vld [vmem:[%s1 + $0x2c] sm:$0xf]
      %v219 = vld [vmem:[%s1 + $0x30] sm:$0xf]
      %v220 = vld [vmem:[%s1 + $0x34] sm:$0xf]
      %v221 = vld [vmem:[%s1 + $0x38] sm:$0xf]
      %v222 = vld [vmem:[%s1 + $0x3c] sm:$0xf]
      %v223 = vld [vmem:[%s2] sm:$0x1]
      %v225 = vlaneseq
      %v226 = vshrl.u32 %v225, 7
      %v227 = vsub.s32 0, %v226
      %v228 = vrot.slane %v223, %v227
      %v262 = vunpack.c.l.b16 %v175
      %v263 = vunpack.c.l.b16 %v176
      %v264 = vunpack.c.l.b16 %v177
      %v265 = vunpack.c.l.b16 %v178
      %v266 = vunpack.c.l.b16 %v179
      %v267 = vunpack.c.l.b16 %v180
      %v268 = vunpack.c.l.b16 %v181
      %v269 = vunpack.c.l.b16 %v182
      %v270 = vunpack.c.l.b16 %v183
      %v271 = vunpack.c.l.b16 %v184
      %v272 = vunpack.c.l.b16 %v185
      %v273 = vunpack.c.l.b16 %v186
      %v274 = vunpack.c.l.b16 %v187
      %v275 = vunpack.c.l.b16 %v188
      %v276 = vunpack.c.l.b16 %v189
      %v277 = vunpack.c.l.b16 %v190
      %v278 = vunpack.c.l.b16 %v191
      %v279 = vunpack.c.l.b16 %v192
      %v280 = vunpack.c.l.b16 %v193
      %v281 = vunpack.c.l.b16 %v194
      %v282 = vunpack.c.l.b16 %v195
      %v283 = vunpack.c.l.b16 %v196
      %v284 = vunpack.c.l.b16 %v197
      %v285 = vunpack.c.l.b16 %v198
      %v286 = vunpack.c.l.b16 %v199
      %v287 = vunpack.c.l.b16 %v200
      %v288 = vunpack.c.l.b16 %v201
      %v289 = vunpack.c.l.b16 %v202
      %v290 = vunpack.c.l.b16 %v203
      %v291 = vunpack.c.l.b16 %v204
      %v292 = vunpack.c.l.b16 %v205
      %v293 = vunpack.c.l.b16 %v206
      %v294 = vpack.c.b16 %v263, %v262
      %v295 = vpack.c.b16 %v265, %v264
      %v296 = vpack.c.b16 %v267, %v266
      %v297 = vpack.c.b16 %v269, %v268
      %v298 = vpack.c.b16 %v271, %v270
      %v299 = vpack.c.b16 %v273, %v272
      %v300 = vpack.c.b16 %v275, %v274
      %v301 = vpack.c.b16 %v277, %v276
      %v302 = vpack.c.b16 %v279, %v278
      %v303 = vpack.c.b16 %v281, %v280
      %v304 = vpack.c.b16 %v283, %v282
      %v305 = vpack.c.b16 %v285, %v284
      %v306 = vpack.c.b16 %v287, %v286
      %v307 = vpack.c.b16 %v289, %v288
      %v308 = vpack.c.b16 %v291, %v290
      %v309 = vpack.c.b16 %v293, %v292
      %v342 = vunpack.c.l.b16 %v207
      %v343 = vunpack.c.l.b16 %v208
      %v344 = vunpack.c.l.b16 %v209
      %v345 = vunpack.c.l.b16 %v210
      %v346 = vunpack.c.l.b16 %v211
      %v347 = vunpack.c.l.b16 %v212
      %v348 = vunpack.c.l.b16 %v213
      %v349 = vunpack.c.l.b16 %v214
      %v350 = vunpack.c.l.b16 %v215
      %v351 = vunpack.c.l.b16 %v216
      %v352 = vunpack.c.l.b16 %v217
      %v353 = vunpack.c.l.b16 %v218
      %v354 = vunpack.c.l.b16 %v219
      %v355 = vunpack.c.l.b16 %v220
      %v356 = vunpack.c.l.b16 %v221
      %v357 = vunpack.c.l.b16 %v222
      %v358 = vpack.c.b16 %v343, %v342
      %v359 = vpack.c.b16 %v345, %v344
      %v360 = vpack.c.b16 %v347, %v346
      %v361 = vpack.c.b16 %v349, %v348
      %v362 = vpack.c.b16 %v351, %v350
      %v363 = vpack.c.b16 %v353, %v352
      %v364 = vpack.c.b16 %v355, %v354
      %v365 = vpack.c.b16 %v357, %v356
      %374 = vmatprep.subr.bf16.mxu0 0
      %375 = vmatpush1.bf16.msra.mxu0 %v358
      %376 = vmatprep.subr.bf16.mxu0 0
      %377 = vmatpush1.bf16.msra.mxu0 %v359
      %378 = vmatprep.subr.bf16.mxu0 0
      %379 = vmatpush1.bf16.msra.mxu0 %v360
      %380 = vmatprep.subr.bf16.mxu0 0
      %381 = vmatpush1.bf16.msra.mxu0 %v361
      %382 = vmatprep.subr.bf16.mxu0 0
      %383 = vmatpush1.bf16.msra.mxu0 %v362
      %384 = vmatprep.subr.bf16.mxu0 0
      %385 = vmatpush1.bf16.msra.mxu0 %v363
      %386 = vmatprep.subr.bf16.mxu0 0
      %387 = vmatpush1.bf16.msra.mxu0 %v364
      %388 = vmatprep.subr.bf16.mxu0 0
      %389 = vmatpush1.bf16.msra.mxu0 %v365
      %390 = vmatprep.subr.bf16.mxu0 0
      %391 = vmatpush1.bf16.msra.mxu0 0
      %392 = vmatprep.subr.bf16.mxu0 0
      %393 = vmatpush1.bf16.msra.mxu0 0
      %394 = vmatprep.subr.bf16.mxu0 0
      %395 = vmatpush1.bf16.msra.mxu0 0
      %396 = vmatprep.subr.bf16.mxu0 0
      %397 = vmatpush1.bf16.msra.mxu0 0
      %398 = vmatprep.subr.bf16.mxu0 0
      %399 = vmatpush1.bf16.msra.mxu0 0
      %400 = vmatprep.subr.bf16.mxu0 0
      %401 = vmatpush1.bf16.msra.mxu0 0
      %402 = vmatprep.subr.bf16.mxu0 0
      %403 = vmatpush1.bf16.msra.mxu0 0
      %404 = vmatprep.subr.bf16.mxu0 0
      %405 = vmatpush1.bf16.msra.mxu0 0
      %406 = vmatprep.mubr.bf16.mxu0 0
      %407 = vmatmul.mubr.bf16.gmra.mrb[0].mxu0 %v294
      %v408 = vpop.f32.mrb[0].mxu0
      %v409 = vadd.f32 %v228, %v408
      %v410 = vpop.f32.mrb[0].mxu0
      %v411 = vpop.f32.mrb[0].mxu0
      %v412 = vadd.f32 %v228, %v411
      %v413 = vpop.f32.mrb[0].mxu0
      %414 = vmatprep.mubr.bf16.mxu0 0
      %415 = vmatmul.mubr.bf16.gmra.mrb[0].mxu0 %v295
      %v416 = vpop.f32.mrb[0].mxu0
      %v417 = vadd.f32 %v228, %v416
      %v418 = vpop.f32.mrb[0].mxu0
      %v419 = vpop.f32.mrb[0].mxu0
      %v420 = vadd.f32 %v228, %v419
      %v421 = vpop.f32.mrb[0].mxu0
      %422 = vmatprep.mubr.bf16.mxu0 0
      %423 = vmatmul.mubr.bf16.gmra.mrb[0].mxu0 %v296
      %v424 = vpop.f32.mrb[0].mxu0
      %v425 = vadd.f32 %v228, %v424
      %v426 = vpop.f32.mrb[0].mxu0
      %v427 = vpop.f32.mrb[0].mxu0
      %v428 = vadd.f32 %v228, %v427
      %v429 = vpop.f32.mrb[0].mxu0
      %430 = vmatprep.mubr.bf16.mxu0 0
      %431 = vmatmul.mubr.bf16.gmra.mrb[0].mxu0 %v297
      %v432 = vpop.f32.mrb[0].mxu0
      %v433 = vadd.f32 %v228, %v432
      %v434 = vpop.f32.mrb[0].mxu0
      %v435 = vpop.f32.mrb[0].mxu0
      %v436 = vadd.f32 %v228, %v435
      %v437 = vpop.f32.mrb[0].mxu0
      %438 = vmatprep.mubr.bf16.mxu0 0
      %439 = vmatmul.mubr.bf16.gmra.mrb[0].mxu0 %v298
      %v440 = vpop.f32.mrb[0].mxu0
      %v441 = vadd.f32 %v228, %v440
      %v442 = vpop.f32.mrb[0].mxu0
      %v443 = vpop.f32.mrb[0].mxu0
      %v444 = vadd.f32 %v228, %v443
      %v445 = vpop.f32.mrb[0].mxu0
      %446 = vmatprep.mubr.bf16.mxu0 0
      %447 = vmatmul.mubr.bf16.gmra.mrb[0].mxu0 %v299
      %v448 = vpop.f32.mrb[0].mxu0
      %v449 = vadd.f32 %v228, %v448
      %v450 = vpop.f32.mrb[0].mxu0
      %v451 = vpop.f32.mrb[0].mxu0
      %v452 = vadd.f32 %v228, %v451
      %v453 = vpop.f32.mrb[0].mxu0
      %454 = vmatprep.mubr.bf16.mxu0 0
      %455 = vmatmul.mubr.bf16.gmra.mrb[0].mxu0 %v300
      %v456 = vpop.f32.mrb[0].mxu0
      %v457 = vadd.f32 %v228, %v456
      %v458 = vpop.f32.mrb[0].mxu0
      %v459 = vpop.f32.mrb[0].mxu0
      %v460 = vadd.f32 %v228, %v459
      %v461 = vpop.f32.mrb[0].mxu0
      %462 = vmatprep.mubr.bf16.mxu0 0
      %463 = vmatmul.mubr.bf16.gmra.mrb[0].mxu0 %v301
      %v464 = vpop.f32.mrb[0].mxu0
      %v465 = vadd.f32 %v228, %v464
      %v466 = vpop.f32.mrb[0].mxu0
      %v467 = vpop.f32.mrb[0].mxu0
      %v468 = vadd.f32 %v228, %v467
      %v469 = vpop.f32.mrb[0].mxu0
      %470 = vmatprep.mubr.bf16.mxu0 0
      %471 = vmatmul.mubr.bf16.gmra.mrb[0].mxu0 %v302
      %v472 = vpop.f32.mrb[0].mxu0
      %v473 = vadd.f32 %v228, %v472
      %v474 = vpop.f32.mrb[0].mxu0
      %v475 = vpop.f32.mrb[0].mxu0
      %v476 = vadd.f32 %v228, %v475
      %v477 = vpop.f32.mrb[0].mxu0
      %478 = vmatprep.mubr.bf16.mxu0 0
      %479 = vmatmul.mubr.bf16.gmra.mrb[0].mxu0 %v303
      %v480 = vpop.f32.mrb[0].mxu0
      %v481 = vadd.f32 %v228, %v480
      %v482 = vpop.f32.mrb[0].mxu0
      %v483 = vpop.f32.mrb[0].mxu0
      %v484 = vadd.f32 %v228, %v483
      %v485 = vpop.f32.mrb[0].mxu0
      %486 = vmatprep.mubr.bf16.mxu0 0
      %487 = vmatmul.mubr.bf16.gmra.mrb[0].mxu0 %v304
      %v488 = vpop.f32.mrb[0].mxu0
      %v489 = vadd.f32 %v228, %v488
      %v490 = vpop.f32.mrb[0].mxu0
      %v491 = vpop.f32.mrb[0].mxu0
      %v492 = vadd.f32 %v228, %v491
      %v493 = vpop.f32.mrb[0].mxu0
      %494 = vmatprep.mubr.bf16.mxu0 0
      %495 = vmatmul.mubr.bf16.gmra.mrb[0].mxu0 %v305
      %v496 = vpop.f32.mrb[0].mxu0
      %v497 = vadd.f32 %v228, %v496
      %v498 = vpop.f32.mrb[0].mxu0
      %v499 = vpop.f32.mrb[0].mxu0
      %v500 = vadd.f32 %v228, %v499
      %v501 = vpop.f32.mrb[0].mxu0
      %502 = vmatprep.mubr.bf16.mxu0 0
      %503 = vmatmul.mubr.bf16.gmra.mrb[0].mxu0 %v306
      %v504 = vpop.f32.mrb[0].mxu0
      %v505 = vadd.f32 %v228, %v504
      %v506 = vpop.f32.mrb[0].mxu0
      %v507 = vpop.f32.mrb[0].mxu0
      %v508 = vadd.f32 %v228, %v507
      %v509 = vpop.f32.mrb[0].mxu0
      %510 = vmatprep.mubr.bf16.mxu0 0
      %511 = vmatmul.mubr.bf16.gmra.mrb[0].mxu0 %v307
      %v512 = vpop.f32.mrb[0].mxu0
      %v513 = vadd.f32 %v228, %v512
      %v514 = vpop.f32.mrb[0].mxu0
      %v515 = vpop.f32.mrb[0].mxu0
      %v516 = vadd.f32 %v228, %v515
      %v517 = vpop.f32.mrb[0].mxu0
      %518 = vmatprep.mubr.bf16.mxu0 0
      %519 = vmatmul.mubr.bf16.gmra.mrb[0].mxu0 %v308
      %v520 = vpop.f32.mrb[0].mxu0
      %v521 = vadd.f32 %v228, %v520
      %v522 = vpop.f32.mrb[0].mxu0
      %v523 = vpop.f32.mrb[0].mxu0
      %v524 = vadd.f32 %v228, %v523
      %v525 = vpop.f32.mrb[0].mxu0
      %526 = vmatprep.mubr.bf16.mxu0 0
      %527 = vmatmul.mubr.bf16.gmra.mrb[0].mxu0 %v309
      %v528 = vpop.f32.mrb[0].mxu0
      %v529 = vadd.f32 %v228, %v528
      %v530 = vpop.f32.mrb[0].mxu0
      %v531 = vpop.f32.mrb[0].mxu0
      %v532 = vadd.f32 %v228, %v531
      %v533 = vpop.f32.mrb[0].mxu0
      %534 = vdwg.mxu0
      %v535 = vpack.c.bf16 %v412, %v409
      %v536 = vpack.c.bf16 %v420, %v417
      %v537 = vpack.c.bf16 %v428, %v425
      %v538 = vpack.c.bf16 %v436, %v433
      %v539 = vpack.c.bf16 %v444, %v441
      %v540 = vpack.c.bf16 %v452, %v449
      %v541 = vpack.c.bf16 %v460, %v457
      %v542 = vpack.c.bf16 %v468, %v465
      %v543 = vpack.c.bf16 %v476, %v473
      %v544 = vpack.c.bf16 %v484, %v481
      %v545 = vpack.c.bf16 %v492, %v489
      %v546 = vpack.c.bf16 %v500, %v497
      %v547 = vpack.c.bf16 %v508, %v505
      %v548 = vpack.c.bf16 %v516, %v513
      %v549 = vpack.c.bf16 %v524, %v521
      %v550 = vpack.c.bf16 %v532, %v529
      %v567 = vunpack.c.l.b16 %v535
      %v568 = vunpack.c.h.b16 %v535
      %v569 = vunpack.c.l.b16 %v536
      %v570 = vunpack.c.h.b16 %v536
      %v571 = vunpack.c.l.b16 %v537
      %v572 = vunpack.c.h.b16 %v537
      %v573 = vunpack.c.l.b16 %v538
      %v574 = vunpack.c.h.b16 %v538
      %v575 = vunpack.c.l.b16 %v539
      %v576 = vunpack.c.h.b16 %v539
      %v577 = vunpack.c.l.b16 %v540
      %v578 = vunpack.c.h.b16 %v540
      %v579 = vunpack.c.l.b16 %v541
      %v580 = vunpack.c.h.b16 %v541
      %v581 = vunpack.c.l.b16 %v542
      %v582 = vunpack.c.h.b16 %v542
      %v583 = vunpack.c.l.b16 %v543
      %v584 = vunpack.c.h.b16 %v543
      %v585 = vunpack.c.l.b16 %v544
      %v586 = vunpack.c.h.b16 %v544
      %v587 = vunpack.c.l.b16 %v545
      %v588 = vunpack.c.h.b16 %v545
      %v589 = vunpack.c.l.b16 %v546
      %v590 = vunpack.c.h.b16 %v546
      %v591 = vunpack.c.l.b16 %v547
      %v592 = vunpack.c.h.b16 %v547
      %v593 = vunpack.c.l.b16 %v548
      %v594 = vunpack.c.h.b16 %v548
      %v595 = vunpack.c.l.b16 %v549
      %v596 = vunpack.c.h.b16 %v549
      %v597 = vunpack.c.l.b16 %v550
      %v598 = vunpack.c.h.b16 %v550
      %v599 = vpack.c.b16 %v567, %v567
      %v600 = vpack.c.b16 %v568, %v568
      %v601 = vpack.c.b16 %v569, %v569
      %v602 = vpack.c.b16 %v570, %v570
      %v603 = vpack.c.b16 %v571, %v571
      %v604 = vpack.c.b16 %v572, %v572
      %v605 = vpack.c.b16 %v573, %v573
      %v606 = vpack.c.b16 %v574, %v574
      %v607 = vpack.c.b16 %v575, %v575
      %v608 = vpack.c.b16 %v576, %v576
      %v609 = vpack.c.b16 %v577, %v577
      %v610 = vpack.c.b16 %v578, %v578
      %v611 = vpack.c.b16 %v579, %v579
      %v612 = vpack.c.b16 %v580, %v580
      %v613 = vpack.c.b16 %v581, %v581
      %v614 = vpack.c.b16 %v582, %v582
      %v615 = vpack.c.b16 %v583, %v583
      %v616 = vpack.c.b16 %v584, %v584
      %v617 = vpack.c.b16 %v585, %v585
      %v618 = vpack.c.b16 %v586, %v586
      %v619 = vpack.c.b16 %v587, %v587
      %v620 = vpack.c.b16 %v588, %v588
      %v621 = vpack.c.b16 %v589, %v589
      %v622 = vpack.c.b16 %v590, %v590
      %v623 = vpack.c.b16 %v591, %v591
      %v624 = vpack.c.b16 %v592, %v592
      %v625 = vpack.c.b16 %v593, %v593
      %v626 = vpack.c.b16 %v594, %v594
      %v627 = vpack.c.b16 %v595, %v595
      %v628 = vpack.c.b16 %v596, %v596
      %v629 = vpack.c.b16 %v597, %v597
      %v630 = vpack.c.b16 %v598, %v598
      %663 = vst [vmem:[%s172] sm:$0xf] %v599
      %664 = vst [vmem:[%s172 + $0x4] sm:$0xf] %v600
      %665 = vst [vmem:[%s172 + $0x8] sm:$0xf] %v601
      %666 = vst [vmem:[%s172 + $0xc] sm:$0xf] %v602
      %667 = vst [vmem:[%s172 + $0x10] sm:$0xf] %v603
      %668 = vst [vmem:[%s172 + $0x14] sm:$0xf] %v604
      %669 = vst [vmem:[%s172 + $0x18] sm:$0xf] %v605
      %670 = vst [vmem:[%s172 + $0x1c] sm:$0xf] %v606
      %671 = vst [vmem:[%s172 + $0x20] sm:$0xf] %v607
      %672 = vst [vmem:[%s172 + $0x24] sm:$0xf] %v608
      %673 = vst [vmem:[%s172 + $0x28] sm:$0xf] %v609
      %674 = vst [vmem:[%s172 + $0x2c] sm:$0xf] %v610
      %675 = vst [vmem:[%s172 + $0x30] sm:$0xf] %v611
      %676 = vst [vmem:[%s172 + $0x34] sm:$0xf] %v612
      %677 = vst [vmem:[%s172 + $0x38] sm:$0xf] %v613
      %678 = vst [vmem:[%s172 + $0x3c] sm:$0xf] %v614
      %679 = vst [vmem:[%s172 + $0x40] sm:$0xf] %v615
      %680 = vst [vmem:[%s172 + $0x44] sm:$0xf] %v616
      %681 = vst [vmem:[%s172 + $0x48] sm:$0xf] %v617
      %682 = vst [vmem:[%s172 + $0x4c] sm:$0xf] %v618
      %683 = vst [vmem:[%s172 + $0x50] sm:$0xf] %v619
      %684 = vst [vmem:[%s172 + $0x54] sm:$0xf] %v620
      %685 = vst [vmem:[%s172 + $0x58] sm:$0xf] %v621
      %686 = vst [vmem:[%s172 + $0x5c] sm:$0xf] %v622
      %687 = vst [vmem:[%s172 + $0x60] sm:$0xf] %v623
      %688 = vst [vmem:[%s172 + $0x64] sm:$0xf] %v624
      %689 = vst [vmem:[%s172 + $0x68] sm:$0xf] %v625
      %690 = vst [vmem:[%s172 + $0x6c] sm:$0xf] %v626
      %691 = vst [vmem:[%s172 + $0x70] sm:$0xf] %v627
      %692 = vst [vmem:[%s172 + $0x74] sm:$0xf] %v628
      %693 = vst [vmem:[%s172 + $0x78] sm:$0xf] %v629
      %694 = vst [vmem:[%s172 + $0x7c] sm:$0xf] %v630
      %s695 = smul.u32 32, %s14
      %p696 = scmp.lt.s32.totalorder %s695, 63
      %s697 = scalar_select %p696, %s695, 63
      %s698 = smul.addr %s697, 4
      %s699 = scalar_lea.vmem %s3, %s698
      // Predicated region
      $region33: #{conv_gnn_forward.3} parent=31 // pred_check
        %p700 = pneg %p100
      $region34: #{conv_gnn_forward.3} parent=31 // pred_check_branch
        %702 = sbr.rel (%p700) target = $region36
      $region35: #{conv_gnn_forward.3} parent=31 // pred_region
        %s703 = smul.u32 32, %s14
      $region36: #{conv_gnn_forward.3} parent=31 // pred_fallthru
        _
    $region32: #{conv_gnn_forward.3} parent=5 // pred_fallthru
      _
    %p704 = scmp.le.s32.totalorder 2, %s9
    // Predicated region
    $region37: #{conv_gnn_forward.3} parent=5 // pred_check
      %p705 = pneg %p704
    $region38: #{conv_gnn_forward.3} parent=5 // pred_check_branch
      %707 = sbr.rel (%p705) target = $region40
    $region39: #{conv_gnn_forward.3} parent=5 // pred_region
      %s708 = ssub.s32 %s9, 2
      // Predicated region
      $region41: #{conv_gnn_forward.3} parent=39 // pred_check
        %p709 = pneg %p106
      $region42: #{conv_gnn_forward.3} parent=39 // pred_check_branch
        %711 = sbr.rel (%p709) target = $region44
      $region43: #{conv_gnn_forward.3} parent=39 // pred_region
        %s712 = smul.u32 32, %s15
        %p713 = scmp.lt.s32.totalorder %s712, 63
        %s714 = scalar_select %p713, %s712, 63
        %s715 = smul.addr %s714, 4
        %s716 = scalar_lea.vmem %s3, %s715
      $region44: #{conv_gnn_forward.3} parent=39 // pred_fallthru
        _
    $region40: #{conv_gnn_forward.3} parent=5 // pred_fallthru
      _
  $region6: #{conv_gnn_forward.3} parent=0 // loop_footer
    %s13 = sadd.s32 1, %s9
  $region7: #{conv_gnn_forward.3} parent=0 // loop_footer_branch
    %8 = sbr.rel target = $region3
  $region8: #{conv_gnn_forward.3} parent=0 // loop_exit
    _

// kernel: conv_gnn_forward.4
$region0: #{conv_gnn_forward.4}
  #allocation0 [shape = 'u32[]', space=smem, size = 0x4, offset = 0x4, fixed_abs, tag = 'smem constant byte address 0x4 - core index']
  #allocation1 [shape = 'u32[144,128]{1,0:T(1,128)}', space=vmem, size = 0x12000, scoped, tag = 'internal scratch']
  #allocation2 [shape = 'f32[256,128]{1,0:T(8,128)}', space=vmem, size = 0x20000, scoped, tag = 'scratch operand']
  %s0 = inlined_call_operand.vmem [shape: bf16[512,512], index: 0, kind: input, shape index: {}]
  %s1 = inlined_call_operand.vmem [shape: bf16[512,128], index: 1, kind: input, shape index: {}]
  %s2 = inlined_call_operand.vmem [shape: f32[1,128], index: 2, kind: input, shape index: {}]
  %s3 = inlined_call_operand.vmem [shape: bf16[128,128], index: 3, kind: input, shape index: {}]
  %s4 = inlined_call_operand.vmem [shape: f32[1,128], index: 4, kind: input, shape index: {}]
  %s5 = inlined_call_operand.vmem [shape: bf16[512,128], index: 5, kind: output, shape index: {}]
  %s6 = sld [smem:[#allocation0]]
  $region61: #{conv_gnn_forward.4} parent=0
    _
  %s8 = ssub.s32 1, %s6
  %s9 = scalar_select 0, %s8, %s6
  loop: start=0, step=1, limit=4
  $region2: #{conv_gnn_forward.4} parent=0 // loop_pre_header
    _
  $region3: #{conv_gnn_forward.4} parent=0 // loop_header
    %s11 = sphi 0, %s15
    %p12 = scmp.ge.s32.totalorder %s11, 4
    %s18 = sphi 0, %s30
    %s19 = sphi 0, %s26
    %s20 = sphi 0, %s18
    %s21 = sphi 0, %s19
    %s22 = sphi 0, %s20
    %s23 = sphi 0, %s21
    %s35 = sphi 0, %s37
    %s38 = sphi 0, %s35
    %s39 = sphi 0, %s38
    %s55 = sphi 0, %s39
    %s61 = sphi 0, %s63
    %s64 = sphi 0, %s61
    %s65 = sphi 0, %s64
    %s81 = sphi 0, %s65
    %s85 = sphi 0, %s85
    %s87 = sphi 0, %s85
    %s88 = sphi 0, %s87
    %s102 = sphi 0, %s88
    %s106 = sphi 0, %s106
    %s108 = sphi 0, %s106
    %s109 = sphi 0, %s108
    %s123 = sphi 0, %s109
    %s127 = sphi 0, %s127
    %s129 = sphi 0, %s127
    %s130 = sphi 0, %s129
    %s144 = sphi 0, %s130
    %s150 = sphi 0, %s152
    %s153 = sphi 0, %s150
    %s154 = sphi 0, %s153
    %s170 = sphi 0, %s154
  $region4: #{conv_gnn_forward.4} parent=0 // loop_header_branch
    %14 = sbr.rel (%p12) target = $region8
  $region5: #{conv_gnn_forward.4} parent=0 // loop_body
    %s16 = ssub.s32 %s11, 1
    %s17 = ssub.s32 %s11, 2
    %s24 = sadd.s32 1, %s19
    %p25 = scmp.ge.s32.totalorder %s24, 1
    %s26 = scalar_select %p25, 0, %s24
    %s27 = sadd.s32 1, %s18
    %s28 = scalar_select %p25, %s27, %s18
    %p29 = scmp.ge.s32.totalorder %s28, 2
    %s30 = scalar_select %p29, 0, %s28
    %s31 = ssub.s32 %s18, %s30
    %s32 = ssub.s32 %s19, %s26
    %s33 = sor.u32 %s31, %s32
    %p34 = scmp.eq.s32.totalorder %s33, 0
    %s36 = sadd.s32 %s35, 1
    %s37 = scalar_select %p34, %s35, %s36
    %p40 = pneg %p34
    %p41 = scmp.eq.s32.totalorder %s11, 1
    %p42 = por %p40, %p41
    %p43 = scmp.ne.s32.totalorder %s35, %s38
    %p44 = scmp.eq.s32.totalorder %s11, 0
    %p45 = por %p43, %p44
    %p46 = scmp.ne.s32.totalorder %s35, %s38
    %p47 = scmp.eq.s32.totalorder %s16, 1
    %p48 = por %p46, %p47
    %p49 = scmp.ne.s32.totalorder %s38, %s39
    %p50 = scmp.eq.s32.totalorder %s16, 0
    %p51 = por %p49, %p50
    %p52 = scmp.ne.s32.totalorder %s38, %s39
    %p53 = scmp.eq.s32.totalorder %s17, 1
    %p54 = por %p52, %p53
    %p56 = scmp.ne.s32.totalorder %s39, %s55
    %p57 = scmp.eq.s32.totalorder %s17, 0
    %p58 = por %p56, %p57
    %s59 = ssub.s32 %s19, %s26
    %p60 = scmp.eq.s32.totalorder %s59, 0
    %s62 = sadd.s32 %s61, 1
    %s63 = scalar_select %p60, %s61, %s62
    %p66 = pneg %p60
    %p67 = scmp.eq.s32.totalorder %s11, 1
    %p68 = por %p66, %p67
    %p69 = scmp.ne.s32.totalorder %s61, %s64
    %p70 = scmp.eq.s32.totalorder %s11, 0
    %p71 = por %p69, %p70
    %p72 = scmp.ne.s32.totalorder %s61, %s64
    %p73 = scmp.eq.s32.totalorder %s16, 1
    %p74 = por %p72, %p73
    %p75 = scmp.ne.s32.totalorder %s64, %s65
    %p76 = scmp.eq.s32.totalorder %s16, 0
    %p77 = por %p75, %p76
    %p78 = scmp.ne.s32.totalorder %s64, %s65
    %p79 = scmp.eq.s32.totalorder %s17, 1
    %p80 = por %p78, %p79
    %p82 = scmp.ne.s32.totalorder %s65, %s81
    %p83 = scmp.eq.s32.totalorder %s17, 0
    %p84 = por %p82, %p83
    %s86 = sadd.s32 %s85, 1
    %p89 = scmp.eq.s32.totalorder %s11, 1
    %p90 = scmp.ne.s32.totalorder %s85, %s87
    %p91 = scmp.eq.s32.totalorder %s11, 0
    %p92 = por %p90, %p91
    %p93 = scmp.ne.s32.totalorder %s85, %s87
    %p94 = scmp.eq.s32.totalorder %s16, 1
    %p95 = por %p93, %p94
    %p96 = scmp.ne.s32.totalorder %s87, %s88
    %p97 = scmp.eq.s32.totalorder %s16, 0
    %p98 = por %p96, %p97
    %p99 = scmp.ne.s32.totalorder %s87, %s88
    %p100 = scmp.eq.s32.totalorder %s17, 1
    %p101 = por %p99, %p100
    %p103 = scmp.ne.s32.totalorder %s88, %s102
    %p104 = scmp.eq.s32.totalorder %s17, 0
    %p105 = por %p103, %p104
    %s107 = sadd.s32 %s106, 1
    %p110 = scmp.eq.s32.totalorder %s11, 1
    %p111 = scmp.ne.s32.totalorder %s106, %s108
    %p112 = scmp.eq.s32.totalorder %s11, 0
    %p113 = por %p111, %p112
    %p114 = scmp.ne.s32.totalorder %s106, %s108
    %p115 = scmp.eq.s32.totalorder %s16, 1
    %p116 = por %p114, %p115
    %p117 = scmp.ne.s32.totalorder %s108, %s109
    %p118 = scmp.eq.s32.totalorder %s16, 0
    %p119 = por %p117, %p118
    %p120 = scmp.ne.s32.totalorder %s108, %s109
    %p121 = scmp.eq.s32.totalorder %s17, 1
    %p122 = por %p120, %p121
    %p124 = scmp.ne.s32.totalorder %s109, %s123
    %p125 = scmp.eq.s32.totalorder %s17, 0
    %p126 = por %p124, %p125
    %s128 = sadd.s32 %s127, 1
    %p131 = scmp.eq.s32.totalorder %s11, 1
    %p132 = scmp.ne.s32.totalorder %s127, %s129
    %p133 = scmp.eq.s32.totalorder %s11, 0
    %p134 = por %p132, %p133
    %p135 = scmp.ne.s32.totalorder %s127, %s129
    %p136 = scmp.eq.s32.totalorder %s16, 1
    %p137 = por %p135, %p136
    %p138 = scmp.ne.s32.totalorder %s129, %s130
    %p139 = scmp.eq.s32.totalorder %s16, 0
    %p140 = por %p138, %p139
    %p141 = scmp.ne.s32.totalorder %s129, %s130
    %p142 = scmp.eq.s32.totalorder %s17, 1
    %p143 = por %p141, %p142
    %p145 = scmp.ne.s32.totalorder %s130, %s144
    %p146 = scmp.eq.s32.totalorder %s17, 0
    %p147 = por %p145, %p146
    %s148 = ssub.s32 %s18, %s30
    %p149 = scmp.eq.s32.totalorder %s148, 0
    %s151 = sadd.s32 %s150, 1
    %s152 = scalar_select %p149, %s150, %s151
    %p155 = pneg %p149
    %p156 = scmp.eq.s32.totalorder %s11, 1
    %p157 = por %p155, %p156
    %p158 = scmp.ne.s32.totalorder %s150, %s153
    %p159 = scmp.eq.s32.totalorder %s11, 0
    %p160 = por %p158, %p159
    %p161 = scmp.ne.s32.totalorder %s150, %s153
    %p162 = scmp.eq.s32.totalorder %s16, 1
    %p163 = por %p161, %p162
    %p164 = scmp.ne.s32.totalorder %s153, %s154
    %p165 = scmp.eq.s32.totalorder %s16, 0
    %p166 = por %p164, %p165
    %p167 = scmp.ne.s32.totalorder %s153, %s154
    %p168 = scmp.eq.s32.totalorder %s17, 1
    %p169 = por %p167, %p168
    %p171 = scmp.ne.s32.totalorder %s154, %s170
    %p172 = scmp.eq.s32.totalorder %s17, 0
    %p173 = por %p171, %p172
    %p174 = scmp.le.s32.totalorder 1, %s11
    %p175 = scmp.lt.s32.totalorder %s11, 3
    %p176 = pnand %p174, %p175
    %p177 = pneg %p176
    // Predicated region
    $region9: #{conv_gnn_forward.4} parent=5 // pred_check
      _
    $region10: #{conv_gnn_forward.4} parent=5 // pred_check_branch
      %179 = sbr.rel (%p176) target = $region12
    $region11: #{conv_gnn_forward.4} parent=5 // pred_region
      %s180 = ssub.s32 %s11, 1
      // Predicated region
      $region13: #{conv_gnn_forward.4} parent=11 // pred_check
        %p181 = pneg %p77
      $region14: #{conv_gnn_forward.4} parent=11 // pred_check_branch
        %183 = sbr.rel (%p181) target = $region16
      $region15: #{conv_gnn_forward.4} parent=11 // pred_region
        %s184 = smul.u32 64, %s21
        %p185 = scmp.lt.s32.totalorder %s184, 63
        %s186 = scalar_select %p185, %s184, 63
        %s187 = smul.addr %s186, 4
        %s188 = scalar_lea.vmem %s1, %s187
        %s189 = smul.u32 64, %s21
      $region16: #{conv_gnn_forward.4} parent=11 // pred_fallthru
        _
      // Predicated region
      $region17: #{conv_gnn_forward.4} parent=11 // pred_check
        %p190 = pneg %p98
      $region18: #{conv_gnn_forward.4} parent=11 // pred_check_branch
        %192 = sbr.rel (%p190) target = $region20
      $region19: #{conv_gnn_forward.4} parent=11 // pred_region
        _
      $region20: #{conv_gnn_forward.4} parent=11 // pred_fallthru
        _
      // Predicated region
      $region21: #{conv_gnn_forward.4} parent=11 // pred_check
        %p193 = pneg %p119
      $region22: #{conv_gnn_forward.4} parent=11 // pred_check_branch
        %195 = sbr.rel (%p193) target = $region24
      $region23: #{conv_gnn_forward.4} parent=11 // pred_region
        _
      $region24: #{conv_gnn_forward.4} parent=11 // pred_fallthru
        _
      // Predicated region
      $region25: #{conv_gnn_forward.4} parent=11 // pred_check
        %p196 = pneg %p140
      $region26: #{conv_gnn_forward.4} parent=11 // pred_check_branch
        %198 = sbr.rel (%p196) target = $region28
      $region27: #{conv_gnn_forward.4} parent=11 // pred_region
        _
      $region28: #{conv_gnn_forward.4} parent=11 // pred_fallthru
        _
    $region12: #{conv_gnn_forward.4} parent=5 // pred_fallthru
      _
    %p199 = scmp.lt.s32.totalorder %s11, 2
    // Predicated region
    $region29: #{conv_gnn_forward.4} parent=5 // pred_check
      %p200 = pneg %p199
    $region30: #{conv_gnn_forward.4} parent=5 // pred_check_branch
      %202 = sbr.rel (%p200) target = $region32
    $region31: #{conv_gnn_forward.4} parent=5 // pred_region
      // Predicated region
      $region33: #{conv_gnn_forward.4} parent=31 // pred_check
        %p203 = pneg %p45
      $region34: #{conv_gnn_forward.4} parent=31 // pred_check_branch
        %205 = sbr.rel (%p203) target = $region36
      $region35: #{conv_gnn_forward.4} parent=31 // pred_region
        %s206 = smul.u32 32, %s18
        %s207 = smul.u32 4, %s19
        %p208 = scmp.lt.s32.totalorder %s206, 63
        %s209 = scalar_select %p208, %s206, 63
        %p210 = scmp.lt.s32.totalorder %s207, 3
        %s211 = scalar_select %p210, %s207, 3
        %s212 = smul.addr %s209, 4
        %s213 = sadd.s32 %s211, %s212
        %s214 = smul.addr %s213, 4
        %s215 = scalar_lea.vmem %s0, %s214
        %s216 = smul.u32 32, %s18
        %s217 = smul.u32 4, %s19
      $region36: #{conv_gnn_forward.4} parent=31 // pred_fallthru
        _
    $region32: #{conv_gnn_forward.4} parent=5 // pred_fallthru
      _
    %p218 = scmp.le.s32.totalorder 1, %s11
    %p219 = scmp.lt.s32.totalorder %s11, 3
    %p220 = pnand %p218, %p219
    %p221 = pneg %p220
    // Predicated region
    $region37: #{conv_gnn_forward.4} parent=5 // pred_check
      _
    $region38: #{conv_gnn_forward.4} parent=5 // pred_check_branch
      %223 = sbr.rel (%p220) target = $region40
    $region39: #{conv_gnn_forward.4} parent=5 // pred_region
      %s224 = ssub.s32 %s11, 1
      %s225 = smul.u32 32, %s20
      %s226 = smul.u32 4, %s21
      %p227 = scmp.lt.s32.totalorder %s225, 63
      %s228 = scalar_select %p227, %s225, 63
      %p229 = scmp.lt.s32.totalorder %s226, 3
      %s230 = scalar_select %p229, %s226, 3
      %s231 = smul.addr %s228, 4
      %s232 = sadd.s32 %s230, %s231
      %s233 = smul.addr %s232, 4
      %s234 = scalar_lea.vmem %s0, %s233
      %p235 = pneg %p51
      %p236 = pneg %p48
      %s237 = smul.u32 64, %s21
      %p238 = scmp.lt.s32.totalorder %s237, 63
      %s239 = scalar_select %p238, %s237, 63
      %s240 = smul.addr %s239, 4
      %s241 = scalar_lea.vmem %s1, %s240
      %p242 = pneg %p77
      %p243 = pneg %p74
      %p244 = pneg %p98
      %p245 = pneg %p95
      %p246 = pneg %p119
      %p247 = pneg %p116
      %p248 = pneg %p140
      %p249 = pneg %p137
      %p250 = pneg %p166
      %p251 = pneg %p163
      %s252 = smul.u32 32, %s20
      %p253 = scmp.lt.s32.totalorder %s252, 63
      %s254 = scalar_select %p253, %s252, 63
      %s255 = smul.addr %s254, 4
      %s256 = scalar_lea.vmem %s5, %s255
      %s257 = smul.u32 32, %s20
      %s258 = smul.u32 4, %s21
      %p259 = scmp.lt.s32.totalorder %s257, 63
      %s260 = scalar_select %p259, %s257, 63
      %p261 = scmp.lt.s32.totalorder %s258, 3
      %s262 = scalar_select %p261, %s258, 3
      %s263 = smul.addr %s260, 4
      %s264 = sadd.s32 %s262, %s263
      %s265 = smul.addr %s264, 4
      %s266 = scalar_lea.vmem %s0, %s265
      %s267 = smul.u32 32, %s20
      %s268 = smul.u32 4, %s21
      %s269 = smul.u32 64, %s21
      %p270 = scmp.lt.s32.totalorder %s269, 63
      %s271 = scalar_select %p270, %s269, 63
      %s272 = smul.addr %s271, 4
      %s273 = scalar_lea.vmem %s1, %s272
      %s274 = smul.u32 64, %s21
      %s275 = smul.u32 32, %s20
      %p276 = scmp.lt.s32.totalorder %s275, 63
      %s277 = scalar_select %p276, %s275, 63
      %s278 = smul.addr %s277, 4
      %s279 = scalar_lea.vmem %s5, %s278
      %s280 = smul.u32 32, %s20
      %p282 = scmp.eq.s32.totalorder %s21, 0
      // Predicated region
      $region41: #{conv_gnn_forward.4} parent=39 // pred_check
        %p283 = pneg %p282
      $region42: #{conv_gnn_forward.4} parent=39 // pred_check_branch
        %285 = sbr.rel (%p283) target = $region44
      $region43: #{conv_gnn_forward.4} parent=39 // pred_region
        %286 = vst [vmem:[#allocation2] sm:$0xff] 0.0
        %287 = vst [vmem:[#allocation2 + $0x8] sm:$0xff] 0.0
        %288 = vst [vmem:[#allocation2 + $0x10] sm:$0xff] 0.0
        %289 = vst [vmem:[#allocation2 + $0x18] sm:$0xff] 0.0
        %290 = vst [vmem:[#allocation2 + $0x20] sm:$0xff] 0.0
        %291 = vst [vmem:[#allocation2 + $0x28] sm:$0xff] 0.0
        %292 = vst [vmem:[#allocation2 + $0x30] sm:$0xff] 0.0
        %293 = vst [vmem:[#allocation2 + $0x38] sm:$0xff] 0.0
        %294 = vst [vmem:[#allocation2 + $0x40] sm:$0xff] 0.0
        %295 = vst [vmem:[#allocation2 + $0x48] sm:$0xff] 0.0
        %296 = vst [vmem:[#allocation2 + $0x50] sm:$0xff] 0.0
        %297 = vst [vmem:[#allocation2 + $0x58] sm:$0xff] 0.0
        %298 = vst [vmem:[#allocation2 + $0x60] sm:$0xff] 0.0
        %299 = vst [vmem:[#allocation2 + $0x68] sm:$0xff] 0.0
        %300 = vst [vmem:[#allocation2 + $0x70] sm:$0xff] 0.0
        %301 = vst [vmem:[#allocation2 + $0x78] sm:$0xff] 0.0
        %302 = vst [vmem:[#allocation2 + $0x80] sm:$0xff] 0.0
        %303 = vst [vmem:[#allocation2 + $0x88] sm:$0xff] 0.0
        %304 = vst [vmem:[#allocation2 + $0x90] sm:$0xff] 0.0
        %305 = vst [vmem:[#allocation2 + $0x98] sm:$0xff] 0.0
        %306 = vst [vmem:[#allocation2 + $0xa0] sm:$0xff] 0.0
        %307 = vst [vmem:[#allocation2 + $0xa8] sm:$0xff] 0.0
        %308 = vst [vmem:[#allocation2 + $0xb0] sm:$0xff] 0.0
        %309 = vst [vmem:[#allocation2 + $0xb8] sm:$0xff] 0.0
        %310 = vst [vmem:[#allocation2 + $0xc0] sm:$0xff] 0.0
        %311 = vst [vmem:[#allocation2 + $0xc8] sm:$0xff] 0.0
        %312 = vst [vmem:[#allocation2 + $0xd0] sm:$0xff] 0.0
        %313 = vst [vmem:[#allocation2 + $0xd8] sm:$0xff] 0.0
        %314 = vst [vmem:[#allocation2 + $0xe0] sm:$0xff] 0.0
        %315 = vst [vmem:[#allocation2 + $0xe8] sm:$0xff] 0.0
        %316 = vst [vmem:[#allocation2 + $0xf0] sm:$0xff] 0.0
        %317 = vst [vmem:[#allocation2 + $0xf8] sm:$0xff] 0.0
      $region44: #{conv_gnn_forward.4} parent=39 // pred_fallthru
        _
      %v318 = vld [vmem:[#allocation2] sm:$0xff]
      %v319 = vld [vmem:[#allocation2 + $0x8] sm:$0xff]
      %v320 = vld [vmem:[#allocation2 + $0x10] sm:$0xff]
      %v321 = vld [vmem:[#allocation2 + $0x18] sm:$0xff]
      %v322 = vld [vmem:[#allocation2 + $0x20] sm:$0xff]
      %v323 = vld [vmem:[#allocation2 + $0x28] sm:$0xff]
      %v324 = vld [vmem:[#allocation2 + $0x30] sm:$0xff]
      %v325 = vld [vmem:[#allocation2 + $0x38] sm:$0xff]
      %v326 = vld [vmem:[#allocation2 + $0x40] sm:$0xff]
      %v327 = vld [vmem:[#allocation2 + $0x48] sm:$0xff]
      %v328 = vld [vmem:[#allocation2 + $0x50] sm:$0xff]
      %v329 = vld [vmem:[#allocation2 + $0x58] sm:$0xff]
      %v330 = vld [vmem:[#allocation2 + $0x60] sm:$0xff]
      %v331 = vld [vmem:[#allocation2 + $0x68] sm:$0xff]
      %v332 = vld [vmem:[#allocation2 + $0x70] sm:$0xff]
      %v333 = vld [vmem:[#allocation2 + $0x78] sm:$0xff]
      %v334 = vld [vmem:[#allocation2 + $0x80] sm:$0xff]
      %v335 = vld [vmem:[#allocation2 + $0x88] sm:$0xff]
      %v336 = vld [vmem:[#allocation2 + $0x90] sm:$0xff]
      %v337 = vld [vmem:[#allocation2 + $0x98] sm:$0xff]
      %v338 = vld [vmem:[#allocation2 + $0xa0] sm:$0xff]
      %v339 = vld [vmem:[#allocation2 + $0xa8] sm:$0xff]
      %v340 = vld [vmem:[#allocation2 + $0xb0] sm:$0xff]
      %v341 = vld [vmem:[#allocation2 + $0xb8] sm:$0xff]
      %v342 = vld [vmem:[#allocation2 + $0xc0] sm:$0xff]
      %v343 = vld [vmem:[#allocation2 + $0xc8] sm:$0xff]
      %v344 = vld [vmem:[#allocation2 + $0xd0] sm:$0xff]
      %v345 = vld [vmem:[#allocation2 + $0xd8] sm:$0xff]
      %v346 = vld [vmem:[#allocation2 + $0xe0] sm:$0xff]
      %v347 = vld [vmem:[#allocation2 + $0xe8] sm:$0xff]
      %v348 = vld [vmem:[#allocation2 + $0xf0] sm:$0xff]
      %v349 = vld [vmem:[#allocation2 + $0xf8] sm:$0xff]
      %v350 = vld [vmem:[%s266] sm:$0xff]
      %v351 = vld [vmem:[%s266 + $0x8] sm:$0xff]
      %v352 = vld [vmem:[%s266 + $0x10] sm:$0xff]
      %v353 = vld [vmem:[%s266 + $0x18] sm:$0xff]
      %v354 = vld [vmem:[%s266 + $0x20] sm:$0xff]
      %v355 = vld [vmem:[%s266 + $0x28] sm:$0xff]
      %v356 = vld [vmem:[%s266 + $0x30] sm:$0xff]
      %v357 = vld [vmem:[%s266 + $0x38] sm:$0xff]
      %v358 = vld [vmem:[%s266 + $0x40] sm:$0xff]
      %v359 = vld [vmem:[%s266 + $0x48] sm:$0xff]
      %v360 = vld [vmem:[%s266 + $0x50] sm:$0xff]
      %v361 = vld [vmem:[%s266 + $0x58] sm:$0xff]
      %v362 = vld [vmem:[%s266 + $0x60] sm:$0xff]
      %v363 = vld [vmem:[%s266 + $0x68] sm:$0xff]
      %v364 = vld [vmem:[%s266 + $0x70] sm:$0xff]
      %v365 = vld [vmem:[%s266 + $0x78] sm:$0xff]
      %v366 = vld [vmem:[%s266 + $0x80] sm:$0xff]
      %v367 = vld [vmem:[%s266 + $0x88] sm:$0xff]
      %v368 = vld [vmem:[%s266 + $0x90] sm:$0xff]
      %v369 = vld [vmem:[%s266 + $0x98] sm:$0xff]
      %v370 = vld [vmem:[%s266 + $0xa0] sm:$0xff]
      %v371 = vld [vmem:[%s266 + $0xa8] sm:$0xff]
      %v372 = vld [vmem:[%s266 + $0xb0] sm:$0xff]
      %v373 = vld [vmem:[%s266 + $0xb8] sm:$0xff]
      %v374 = vld [vmem:[%s266 + $0xc0] sm:$0xff]
      %v375 = vld [vmem:[%s266 + $0xc8] sm:$0xff]
      %v376 = vld [vmem:[%s266 + $0xd0] sm:$0xff]
      %v377 = vld [vmem:[%s266 + $0xd8] sm:$0xff]
      %v378 = vld [vmem:[%s266 + $0xe0] sm:$0xff]
      %v379 = vld [vmem:[%s266 + $0xe8] sm:$0xff]
      %v380 = vld [vmem:[%s266 + $0xf0] sm:$0xff]
      %v381 = vld [vmem:[%s266 + $0xf8] sm:$0xff]
      %v382 = vld [vmem:[%s266 + $0x100] sm:$0xff]
      %v383 = vld [vmem:[%s266 + $0x108] sm:$0xff]
      %v384 = vld [vmem:[%s266 + $0x110] sm:$0xff]
      %v385 = vld [vmem:[%s266 + $0x118] sm:$0xff]
      %v386 = vld [vmem:[%s266 + $0x120] sm:$0xff]
      %v387 = vld [vmem:[%s266 + $0x128] sm:$0xff]
      %v388 = vld [vmem:[%s266 + $0x130] sm:$0xff]
      %v389 = vld [vmem:[%s266 + $0x138] sm:$0xff]
      %v390 = vld [vmem:[%s266 + $0x140] sm:$0xff]
      %v391 = vld [vmem:[%s266 + $0x148] sm:$0xff]
      %v392 = vld [vmem:[%s266 + $0x150] sm:$0xff]
      %v393 = vld [vmem:[%s266 + $0x158] sm:$0xff]
      %v394 = vld [vmem:[%s266 + $0x160] sm:$0xff]
      %v395 = vld [vmem:[%s266 + $0x168] sm:$0xff]
      %v396 = vld [vmem:[%s266 + $0x170] sm:$0xff]
      %v397 = vld [vmem:[%s266 + $0x178] sm:$0xff]
      %v398 = vld [vmem:[%s266 + $0x180] sm:$0xff]
      %v399 = vld [vmem:[%s266 + $0x188] sm:$0xff]
      %v400 = vld [vmem:[%s266 + $0x190] sm:$0xff]
      %v401 = vld [vmem:[%s266 + $0x198] sm:$0xff]
      %v402 = vld [vmem:[%s266 + $0x1a0] sm:$0xff]
      %v403 = vld [vmem:[%s266 + $0x1a8] sm:$0xff]
      %v404 = vld [vmem:[%s266 + $0x1b0] sm:$0xff]
      %v405 = vld [vmem:[%s266 + $0x1b8] sm:$0xff]
      %v406 = vld [vmem:[%s266 + $0x1c0] sm:$0xff]
      %v407 = vld [vmem:[%s266 + $0x1c8] sm:$0xff]
      %v408 = vld [vmem:[%s266 + $0x1d0] sm:$0xff]
      %v409 = vld [vmem:[%s266 + $0x1d8] sm:$0xff]
      %v410 = vld [vmem:[%s266 + $0x1e0] sm:$0xff]
      %v411 = vld [vmem:[%s266 + $0x1e8] sm:$0xff]
      %v412 = vld [vmem:[%s266 + $0x1f0] sm:$0xff]
      %v413 = vld [vmem:[%s266 + $0x1f8] sm:$0xff]
      %v414 = vld [vmem:[%s273] sm:$0xf]
      %v415 = vld [vmem:[%s273 + $0x4] sm:$0xf]
      %v416 = vld [vmem:[%s273 + $0x8] sm:$0xf]
      %v417 = vld [vmem:[%s273 + $0xc] sm:$0xf]
      %v418 = vld [vmem:[%s273 + $0x10] sm:$0xf]
      %v419 = vld [vmem:[%s273 + $0x14] sm:$0xf]
      %v420 = vld [vmem:[%s273 + $0x18] sm:$0xf]
      %v421 = vld [vmem:[%s273 + $0x1c] sm:$0xf]
      %v422 = vld [vmem:[%s273 + $0x20] sm:$0xf]
      %v423 = vld [vmem:[%s273 + $0x24] sm:$0xf]
      %v424 = vld [vmem:[%s273 + $0x28] sm:$0xf]
      %v425 = vld [vmem:[%s273 + $0x2c] sm:$0xf]
      %v426 = vld [vmem:[%s273 + $0x30] sm:$0xf]
      %v427 = vld [vmem:[%s273 + $0x34] sm:$0xf]
      %v428 = vld [vmem:[%s273 + $0x38] sm:$0xf]
      %v429 = vld [vmem:[%s273 + $0x3c] sm:$0xf]
      %v430 = vld [vmem:[%s273 + $0x40] sm:$0xf]
      %v431 = vld [vmem:[%s273 + $0x44] sm:$0xf]
      %v432 = vld [vmem:[%s273 + $0x48] sm:$0xf]
      %v433 = vld [vmem:[%s273 + $0x4c] sm:$0xf]
      %v434 = vld [vmem:[%s273 + $0x50] sm:$0xf]
      %v435 = vld [vmem:[%s273 + $0x54] sm:$0xf]
      %v436 = vld [vmem:[%s273 + $0x58] sm:$0xf]
      %v437 = vld [vmem:[%s273 + $0x5c] sm:$0xf]
      %v438 = vld [vmem:[%s273 + $0x60] sm:$0xf]
      %v439 = vld [vmem:[%s273 + $0x64] sm:$0xf]
      %v440 = vld [vmem:[%s273 + $0x68] sm:$0xf]
      %v441 = vld [vmem:[%s273 + $0x6c] sm:$0xf]
      %v442 = vld [vmem:[%s273 + $0x70] sm:$0xf]
      %v443 = vld [vmem:[%s273 + $0x74] sm:$0xf]
      %v444 = vld [vmem:[%s273 + $0x78] sm:$0xf]
      %v445 = vld [vmem:[%s273 + $0x7c] sm:$0xf]
      %v446 = vld [vmem:[%s273 + $0x80] sm:$0xf]
      %v447 = vld [vmem:[%s273 + $0x84] sm:$0xf]
      %v448 = vld [vmem:[%s273 + $0x88] sm:$0xf]
      %v449 = vld [vmem:[%s273 + $0x8c] sm:$0xf]
      %v450 = vld [vmem:[%s273 + $0x90] sm:$0xf]
      %v451 = vld [vmem:[%s273 + $0x94] sm:$0xf]
      %v452 = vld [vmem:[%s273 + $0x98] sm:$0xf]
      %v453 = vld [vmem:[%s273 + $0x9c] sm:$0xf]
      %v454 = vld [vmem:[%s273 + $0xa0] sm:$0xf]
      %v455 = vld [vmem:[%s273 + $0xa4] sm:$0xf]
      %v456 = vld [vmem:[%s273 + $0xa8] sm:$0xf]
      %v457 = vld [vmem:[%s273 + $0xac] sm:$0xf]
      %v458 = vld [vmem:[%s273 + $0xb0] sm:$0xf]
      %v459 = vld [vmem:[%s273 + $0xb4] sm:$0xf]
      %v460 = vld [vmem:[%s273 + $0xb8] sm:$0xf]
      %v461 = vld [vmem:[%s273 + $0xbc] sm:$0xf]
      %v462 = vld [vmem:[%s273 + $0xc0] sm:$0xf]
      %v463 = vld [vmem:[%s273 + $0xc4] sm:$0xf]
      %v464 = vld [vmem:[%s273 + $0xc8] sm:$0xf]
      %v465 = vld [vmem:[%s273 + $0xcc] sm:$0xf]
      %v466 = vld [vmem:[%s273 + $0xd0] sm:$0xf]
      %v467 = vld [vmem:[%s273 + $0xd4] sm:$0xf]
      %v468 = vld [vmem:[%s273 + $0xd8] sm:$0xf]
      %v469 = vld [vmem:[%s273 + $0xdc] sm:$0xf]
      %v470 = vld [vmem:[%s273 + $0xe0] sm:$0xf]
      %v471 = vld [vmem:[%s273 + $0xe4] sm:$0xf]
      %v472 = vld [vmem:[%s273 + $0xe8] sm:$0xf]
      %v473 = vld [vmem:[%s273 + $0xec] sm:$0xf]
      %v474 = vld [vmem:[%s273 + $0xf0] sm:$0xf]
      %v475 = vld [vmem:[%s273 + $0xf4] sm:$0xf]
      %v476 = vld [vmem:[%s273 + $0xf8] sm:$0xf]
      %v477 = vld [vmem:[%s273 + $0xfc] sm:$0xf]
      %v542 = vunpack.c.l.b16 %v350
      %v543 = vunpack.c.h.b16 %v350
      %v544 = vunpack.c.l.b16 %v351
      %v545 = vunpack.c.h.b16 %v351
      %v546 = vunpack.c.l.b16 %v352
      %v547 = vunpack.c.h.b16 %v352
      %v548 = vunpack.c.l.b16 %v353
      %v549 = vunpack.c.h.b16 %v353
      %v550 = vunpack.c.l.b16 %v354
      %v551 = vunpack.c.h.b16 %v354
      %v552 = vunpack.c.l.b16 %v355
      %v553 = vunpack.c.h.b16 %v355
      %v554 = vunpack.c.l.b16 %v356
      %v555 = vunpack.c.h.b16 %v356
      %v556 = vunpack.c.l.b16 %v357
      %v557 = vunpack.c.h.b16 %v357
      %v558 = vunpack.c.l.b16 %v358
      %v559 = vunpack.c.h.b16 %v358
      %v560 = vunpack.c.l.b16 %v359
      %v561 = vunpack.c.h.b16 %v359
      %v562 = vunpack.c.l.b16 %v360
      %v563 = vunpack.c.h.b16 %v360
      %v564 = vunpack.c.l.b16 %v361
      %v565 = vunpack.c.h.b16 %v361
      %v566 = vunpack.c.l.b16 %v362
      %v567 = vunpack.c.h.b16 %v362
      %v568 = vunpack.c.l.b16 %v363
      %v569 = vunpack.c.h.b16 %v363
      %v570 = vunpack.c.l.b16 %v364
      %v571 = vunpack.c.h.b16 %v364
      %v572 = vunpack.c.l.b16 %v365
      %v573 = vunpack.c.h.b16 %v365
      %v574 = vunpack.c.l.b16 %v366
      %v575 = vunpack.c.h.b16 %v366
      %v576 = vunpack.c.l.b16 %v367
      %v577 = vunpack.c.h.b16 %v367
      %v578 = vunpack.c.l.b16 %v368
      %v579 = vunpack.c.h.b16 %v368
      %v580 = vunpack.c.l.b16 %v369
      %v581 = vunpack.c.h.b16 %v369
      %v582 = vunpack.c.l.b16 %v370
      %v583 = vunpack.c.h.b16 %v370
      %v584 = vunpack.c.l.b16 %v371
      %v585 = vunpack.c.h.b16 %v371
      %v586 = vunpack.c.l.b16 %v372
      %v587 = vunpack.c.h.b16 %v372
      %v588 = vunpack.c.l.b16 %v373
      %v589 = vunpack.c.h.b16 %v373
      %v590 = vunpack.c.l.b16 %v374
      %v591 = vunpack.c.h.b16 %v374
      %v592 = vunpack.c.l.b16 %v375
      %v593 = vunpack.c.h.b16 %v375
      %v594 = vunpack.c.l.b16 %v376
      %v595 = vunpack.c.h.b16 %v376
      %v596 = vunpack.c.l.b16 %v377
      %v597 = vunpack.c.h.b16 %v377
      %v598 = vunpack.c.l.b16 %v378
      %v599 = vunpack.c.h.b16 %v378
      %v600 = vunpack.c.l.b16 %v379
      %v601 = vunpack.c.h.b16 %v379
      %v602 = vunpack.c.l.b16 %v380
      %v603 = vunpack.c.h.b16 %v380
      %v604 = vunpack.c.l.b16 %v381
      %v605 = vunpack.c.h.b16 %v381
      %v606 = vunpack.c.l.b16 %v382
      %v607 = vunpack.c.h.b16 %v382
      %v608 = vunpack.c.l.b16 %v383
      %v609 = vunpack.c.h.b16 %v383
      %v610 = vunpack.c.l.b16 %v384
      %v611 = vunpack.c.h.b16 %v384
      %v612 = vunpack.c.l.b16 %v385
      %v613 = vunpack.c.h.b16 %v385
      %v614 = vunpack.c.l.b16 %v386
      %v615 = vunpack.c.h.b16 %v386
      %v616 = vunpack.c.l.b16 %v387
      %v617 = vunpack.c.h.b16 %v387
      %v618 = vunpack.c.l.b16 %v388
      %v619 = vunpack.c.h.b16 %v388
      %v620 = vunpack.c.l.b16 %v389
      %v621 = vunpack.c.h.b16 %v389
      %v622 = vunpack.c.l.b16 %v390
      %v623 = vunpack.c.h.b16 %v390
      %v624 = vunpack.c.l.b16 %v391
      %v625 = vunpack.c.h.b16 %v391
      %v626 = vunpack.c.l.b16 %v392
      %v627 = vunpack.c.h.b16 %v392
      %v628 = vunpack.c.l.b16 %v393
      %v629 = vunpack.c.h.b16 %v393
      %v630 = vunpack.c.l.b16 %v394
      %v631 = vunpack.c.h.b16 %v394
      %v632 = vunpack.c.l.b16 %v395
      %v633 = vunpack.c.h.b16 %v395
      %v634 = vunpack.c.l.b16 %v396
      %v635 = vunpack.c.h.b16 %v396
      %v636 = vunpack.c.l.b16 %v397
      %v637 = vunpack.c.h.b16 %v397
      %v638 = vunpack.c.l.b16 %v398
      %v639 = vunpack.c.h.b16 %v398
      %v640 = vunpack.c.l.b16 %v399
      %v641 = vunpack.c.h.b16 %v399
      %v642 = vunpack.c.l.b16 %v400
      %v643 = vunpack.c.h.b16 %v400
      %v644 = vunpack.c.l.b16 %v401
      %v645 = vunpack.c.h.b16 %v401
      %v646 = vunpack.c.l.b16 %v402
      %v647 = vunpack.c.h.b16 %v402
      %v648 = vunpack.c.l.b16 %v403
      %v649 = vunpack.c.h.b16 %v403
      %v650 = vunpack.c.l.b16 %v404
      %v651 = vunpack.c.h.b16 %v404
      %v652 = vunpack.c.l.b16 %v405
      %v653 = vunpack.c.h.b16 %v405
      %v654 = vunpack.c.l.b16 %v406
      %v655 = vunpack.c.h.b16 %v406
      %v656 = vunpack.c.l.b16 %v407
      %v657 = vunpack.c.h.b16 %v407
      %v658 = vunpack.c.l.b16 %v408
      %v659 = vunpack.c.h.b16 %v408
      %v660 = vunpack.c.l.b16 %v409
      %v661 = vunpack.c.h.b16 %v409
      %v662 = vunpack.c.l.b16 %v410
      %v663 = vunpack.c.h.b16 %v410
      %v664 = vunpack.c.l.b16 %v411
      %v665 = vunpack.c.h.b16 %v411
      %v666 = vunpack.c.l.b16 %v412
      %v667 = vunpack.c.h.b16 %v412
      %v668 = vunpack.c.l.b16 %v413
      %v669 = vunpack.c.h.b16 %v413
      %v670 = vpack.c.b16 %v546, %v542
      %v671 = vpack.c.b16 %v547, %v543
      %v672 = vpack.c.b16 %v548, %v544
      %v673 = vpack.c.b16 %v549, %v545
      %v674 = vpack.c.b16 %v554, %v550
      %v675 = vpack.c.b16 %v555, %v551
      %v676 = vpack.c.b16 %v556, %v552
      %v677 = vpack.c.b16 %v557, %v553
      %v678 = vpack.c.b16 %v562, %v558
      %v679 = vpack.c.b16 %v563, %v559
      %v680 = vpack.c.b16 %v564, %v560
      %v681 = vpack.c.b16 %v565, %v561
      %v682 = vpack.c.b16 %v570, %v566
      %v683 = vpack.c.b16 %v571, %v567
      %v684 = vpack.c.b16 %v572, %v568
      %v685 = vpack.c.b16 %v573, %v569
      %v686 = vpack.c.b16 %v578, %v574
      %v687 = vpack.c.b16 %v579, %v575
      %v688 = vpack.c.b16 %v580, %v576
      %v689 = vpack.c.b16 %v581, %v577
      %v690 = vpack.c.b16 %v586, %v582
      %v691 = vpack.c.b16 %v587, %v583
      %v692 = vpack.c.b16 %v588, %v584
      %v693 = vpack.c.b16 %v589, %v585
      %v694 = vpack.c.b16 %v594, %v590
      %v695 = vpack.c.b16 %v595, %v591
      %v696 = vpack.c.b16 %v596, %v592
      %v697 = vpack.c.b16 %v597, %v593
      %v698 = vpack.c.b16 %v602, %v598
      %v699 = vpack.c.b16 %v603, %v599
      %v700 = vpack.c.b16 %v604, %v600
      %v701 = vpack.c.b16 %v605, %v601
      %v702 = vpack.c.b16 %v610, %v606
      %v703 = vpack.c.b16 %v611, %v607
      %v704 = vpack.c.b16 %v612, %v608
      %v705 = vpack.c.b16 %v613, %v609
      %v706 = vpack.c.b16 %v618, %v614
      %v707 = vpack.c.b16 %v619, %v615
      %v708 = vpack.c.b16 %v620, %v616
      %v709 = vpack.c.b16 %v621, %v617
      %v710 = vpack.c.b16 %v626, %v622
      %v711 = vpack.c.b16 %v627, %v623
      %v712 = vpack.c.b16 %v628, %v624
      %v713 = vpack.c.b16 %v629, %v625
      %v714 = vpack.c.b16 %v634, %v630
      %v715 = vpack.c.b16 %v635, %v631
      %v716 = vpack.c.b16 %v636, %v632
      %v717 = vpack.c.b16 %v637, %v633
      %v718 = vpack.c.b16 %v642, %v638
      %v719 = vpack.c.b16 %v643, %v639
      %v720 = vpack.c.b16 %v644, %v640
      %v721 = vpack.c.b16 %v645, %v641
      %v722 = vpack.c.b16 %v650, %v646
      %v723 = vpack.c.b16 %v651, %v647
      %v724 = vpack.c.b16 %v652, %v648
      %v725 = vpack.c.b16 %v653, %v649
      %v726 = vpack.c.b16 %v658, %v654
      %v727 = vpack.c.b16 %v659, %v655
      %v728 = vpack.c.b16 %v660, %v656
      %v729 = vpack.c.b16 %v661, %v657
      %v730 = vpack.c.b16 %v666, %v662
      %v731 = vpack.c.b16 %v667, %v663
      %v732 = vpack.c.b16 %v668, %v664
      %v733 = vpack.c.b16 %v669, %v665
      %v862 = vunpack.c.l.b16 %v414
      %v863 = vunpack.c.l.b16 %v415
      %v864 = vunpack.c.l.b16 %v416
      %v865 = vunpack.c.l.b16 %v417
      %v866 = vunpack.c.l.b16 %v418
      %v867 = vunpack.c.l.b16 %v419
      %v868 = vunpack.c.l.b16 %v420
      %v869 = vunpack.c.l.b16 %v421
      %v870 = vunpack.c.l.b16 %v422
      %v871 = vunpack.c.l.b16 %v423
      %v872 = vunpack.c.l.b16 %v424
      %v873 = vunpack.c.l.b16 %v425
      %v874 = vunpack.c.l.b16 %v426
      %v875 = vunpack.c.l.b16 %v427
      %v876 = vunpack.c.l.b16 %v428
      %v877 = vunpack.c.l.b16 %v429
      %v878 = vunpack.c.l.b16 %v430
      %v879 = vunpack.c.l.b16 %v431
      %v880 = vunpack.c.l.b16 %v432
      %v881 = vunpack.c.l.b16 %v433
      %v882 = vunpack.c.l.b16 %v434
      %v883 = vunpack.c.l.b16 %v435
      %v884 = vunpack.c.l.b16 %v436
      %v885 = vunpack.c.l.b16 %v437
      %v886 = vunpack.c.l.b16 %v438
      %v887 = vunpack.c.l.b16 %v439
      %v888 = vunpack.c.l.b16 %v440
      %v889 = vunpack.c.l.b16 %v441
      %v890 = vunpack.c.l.b16 %v442
      %v891 = vunpack.c.l.b16 %v443
      %v892 = vunpack.c.l.b16 %v444
      %v893 = vunpack.c.l.b16 %v445
      %v894 = vunpack.c.l.b16 %v446
      %v895 = vunpack.c.l.b16 %v447
      %v896 = vunpack.c.l.b16 %v448
      %v897 = vunpack.c.l.b16 %v449
      %v898 = vunpack.c.l.b16 %v450
      %v899 = vunpack.c.l.b16 %v451
      %v900 = vunpack.c.l.b16 %v452
      %v901 = vunpack.c.l.b16 %v453
      %v902 = vunpack.c.l.b16 %v454
      %v903 = vunpack.c.l.b16 %v455
      %v904 = vunpack.c.l.b16 %v456
      %v905 = vunpack.c.l.b16 %v457
      %v906 = vunpack.c.l.b16 %v458
      %v907 = vunpack.c.l.b16 %v459
      %v908 = vunpack.c.l.b16 %v460
      %v909 = vunpack.c.l.b16 %v461
      %v910 = vunpack.c.l.b16 %v462
      %v911 = vunpack.c.l.b16 %v463
      %v912 = vunpack.c.l.b16 %v464
      %v913 = vunpack.c.l.b16 %v465
      %v914 = vunpack.c.l.b16 %v466
      %v915 = vunpack.c.l.b16 %v467
      %v916 = vunpack.c.l.b16 %v468
      %v917 = vunpack.c.l.b16 %v469
      %v918 = vunpack.c.l.b16 %v470
      %v919 = vunpack.c.l.b16 %v471
      %v920 = vunpack.c.l.b16 %v472
      %v921 = vunpack.c.l.b16 %v473
      %v922 = vunpack.c.l.b16 %v474
      %v923 = vunpack.c.l.b16 %v475
      %v924 = vunpack.c.l.b16 %v476
      %v925 = vunpack.c.l.b16 %v477
      %v926 = vpack.c.b16 %v863, %v862
      %v927 = vpack.c.b16 %v865, %v864
      %v928 = vpack.c.b16 %v867, %v866
      %v929 = vpack.c.b16 %v869, %v868
      %v930 = vpack.c.b16 %v871, %v870
      %v931 = vpack.c.b16 %v873, %v872
      %v932 = vpack.c.b16 %v875, %v874
      %v933 = vpack.c.b16 %v877, %v876
      %v934 = vpack.c.b16 %v879, %v878
      %v935 = vpack.c.b16 %v881, %v880
      %v936 = vpack.c.b16 %v883, %v882
      %v937 = vpack.c.b16 %v885, %v884
      %v938 = vpack.c.b16 %v887, %v886
      %v939 = vpack.c.b16 %v889, %v888
      %v940 = vpack.c.b16 %v891, %v890
      %v941 = vpack.c.b16 %v893, %v892
      %v942 = vpack.c.b16 %v895, %v894
      %v943 = vpack.c.b16 %v897, %v896
      %v944 = vpack.c.b16 %v899, %v898
      %v945 = vpack.c.b16 %v901, %v900
      %v946 = vpack.c.b16 %v903, %v902
      %v947 = vpack.c.b16 %v905, %v904
      %v948 = vpack.c.b16 %v907, %v906
      %v949 = vpack.c.b16 %v909, %v908
      %v950 = vpack.c.b16 %v911, %v910
      %v951 = vpack.c.b16 %v913, %v912
      %v952 = vpack.c.b16 %v915, %v914
      %v953 = vpack.c.b16 %v917, %v916
      %v954 = vpack.c.b16 %v919, %v918
      %v955 = vpack.c.b16 %v921, %v920
      %v956 = vpack.c.b16 %v923, %v922
      %v957 = vpack.c.b16 %v925, %v924
      %990 = vmatprep.subr.bf16.mxu0 0
      %991 = vmatpush1.bf16.msra.mxu0 %v926
      %992 = vmatprep.subr.bf16.mxu0 0
      %993 = vmatpush1.bf16.msra.mxu0 %v927
      %994 = vmatprep.subr.bf16.mxu0 0
      %995 = vmatpush1.bf16.msra.mxu0 %v928
      %996 = vmatprep.subr.bf16.mxu0 0
      %997 = vmatpush1.bf16.msra.mxu0 %v929
      %998 = vmatprep.subr.bf16.mxu0 0
      %999 = vmatpush1.bf16.msra.mxu0 %v930
      %1000 = vmatprep.subr.bf16.mxu0 0
      %1001 = vmatpush1.bf16.msra.mxu0 %v931
      %1002 = vmatprep.subr.bf16.mxu0 0
      %1003 = vmatpush1.bf16.msra.mxu0 %v932
      %1004 = vmatprep.subr.bf16.mxu0 0
      %1005 = vmatpush1.bf16.msra.mxu0 %v933
      %1006 = vmatprep.subr.bf16.mxu0 0
      %1007 = vmatpush1.bf16.msra.mxu0 %v934
      %1008 = vmatprep.subr.bf16.mxu0 0
      %1009 = vmatpush1.bf16.msra.mxu0 %v935
      %1010 = vmatprep.subr.bf16.mxu0 0
      %1011 = vmatpush1.bf16.msra.mxu0 %v936
      %1012 = vmatprep.subr.bf16.mxu0 0
      %1013 = vmatpush1.bf16.msra.mxu0 %v937
      %1014 = vmatprep.subr.bf16.mxu0 0
      %1015 = vmatpush1.bf16.msra.mxu0 %v938
      %1016 = vmatprep.subr.bf16.mxu0 0
      %1017 = vmatpush1.bf16.msra.mxu0 %v939
      %1018 = vmatprep.subr.bf16.mxu0 0
      %1019 = vmatpush1.bf16.msra.mxu0 %v940
      %1020 = vmatprep.subr.bf16.mxu0 0
      %1021 = vmatpush1.bf16.msra.mxu0 %v941
      %1022 = vmatprep.mubr.bf16.mxu0 %v671
      %1023 = vmatmul.mubr.bf16.gmra.mrb[0].mxu0 %v670
      %v1024 = vpop.f32.mrb[0].mxu0
      %v1025 = vadd.f32 0.0, %v1024
      %v1026 = vpop.f32.mrb[0].mxu0
      %v1027 = vpop.f32.mrb[0].mxu0
      %v1028 = vadd.f32 0.0, %v1027
      %v1029 = vpop.f32.mrb[0].mxu0
      %1030 = vmatprep.mubr.bf16.mxu0 %v675
      %1031 = vmatmul.mubr.bf16.gmra.mrb[0].mxu0 %v674
      %v1032 = vpop.f32.mrb[0].mxu0
      %v1033 = vadd.f32 0.0, %v1032
      %v1034 = vpop.f32.mrb[0].mxu0
      %v1035 = vpop.f32.mrb[0].mxu0
      %v1036 = vadd.f32 0.0, %v1035
      %v1037 = vpop.f32.mrb[0].mxu0
      %1038 = vmatprep.mubr.bf16.mxu0 %v679
      %1039 = vmatmul.mubr.bf16.gmra.mrb[0].mxu0 %v678
      %v1040 = vpop.f32.mrb[0].mxu0
      %v1041 = vadd.f32 0.0, %v1040
      %v1042 = vpop.f32.mrb[0].mxu0
      %v1043 = vpop.f32.mrb[0].mxu0
      %v1044 = vadd.f32 0.0, %v1043
      %v1045 = vpop.f32.mrb[0].mxu0
      %1046 = vmatprep.mubr.bf16.mxu0 %v683
      %1047 = vmatmul.mubr.bf16.gmra.mrb[0].mxu0 %v682
      %v1048 = vpop.f32.mrb[0].mxu0
      %v1049 = vadd.f32 0.0, %v1048
      %v1050 = vpop.f32.mrb[0].mxu0
      %v1051 = vpop.f32.mrb[0].mxu0
      %v1052 = vadd.f32 0.0, %v1051
      %v1053 = vpop.f32.mrb[0].mxu0
      %1054 = vmatprep.mubr.bf16.mxu0 %v687
      %1055 = vmatmul.mubr.bf16.gmra.mrb[0].mxu0 %v686
      %v1056 = vpop.f32.mrb[0].mxu0
      %v1057 = vadd.f32 0.0, %v1056
      %v1058 = vpop.f32.mrb[0].mxu0
      %v1059 = vpop.f32.mrb[0].mxu0
      %v1060 = vadd.f32 0.0, %v1059
      %v1061 = vpop.f32.mrb[0].mxu0
      %1062 = vmatprep.mubr.bf16.mxu0 %v691
      %1063 = vmatmul.mubr.bf16.gmra.mrb[0].mxu0 %v690
      %v1064 = vpop.f32.mrb[0].mxu0
      %v1065 = vadd.f32 0.0, %v1064
      %v1066 = vpop.f32.mrb[0].mxu0
      %v1067 = vpop.f32.mrb[0].mxu0
      %v1068 = vadd.f32 0.0, %v1067
      %v1069 = vpop.f32.mrb[0].mxu0
      %1070 = vmatprep.mubr.bf16.mxu0 %v695
      %1071 = vmatmul.mubr.bf16.gmra.mrb[0].mxu0 %v694
      %v1072 = vpop.f32.mrb[0].mxu0
      %v1073 = vadd.f32 0.0, %v1072
      %v1074 = vpop.f32.mrb[0].mxu0
      %v1075 = vpop.f32.mrb[0].mxu0
      %v1076 = vadd.f32 0.0, %v1075
      %v1077 = vpop.f32.mrb[0].mxu0
      %1078 = vmatprep.mubr.bf16.mxu0 %v699
      %1079 = vmatmul.mubr.bf16.gmra.mrb[0].mxu0 %v698
      %v1080 = vpop.f32.mrb[0].mxu0
      %v1081 = vadd.f32 0.0, %v1080
      %v1082 = vpop.f32.mrb[0].mxu0
      %v1083 = vpop.f32.mrb[0].mxu0
      %v1084 = vadd.f32 0.0, %v1083
      %v1085 = vpop.f32.mrb[0].mxu0
      %1086 = vmatprep.mubr.bf16.mxu0 %v703
      %1087 = vmatmul.mubr.bf16.gmra.mrb[0].mxu0 %v702
      %v1088 = vpop.f32.mrb[0].mxu0
      %v1089 = vadd.f32 0.0, %v1088
      %v1090 = vpop.f32.mrb[0].mxu0
      %v1091 = vpop.f32.mrb[0].mxu0
      %v1092 = vadd.f32 0.0, %v1091
      %v1093 = vpop.f32.mrb[0].mxu0
      %1094 = vmatprep.mubr.bf16.mxu0 %v707
      %1095 = vmatmul.mubr.bf16.gmra.mrb[0].mxu0 %v706
      %v1096 = vpop.f32.mrb[0].mxu0
      %v1097 = vadd.f32 0.0, %v1096
      %v1098 = vpop.f32.mrb[0].mxu0
      %v1099 = vpop.f32.mrb[0].mxu0
      %v1100 = vadd.f32 0.0, %v1099
      %v1101 = vpop.f32.mrb[0].mxu0
      %1102 = vmatprep.mubr.bf16.mxu0 %v711
      %1103 = vmatmul.mubr.bf16.gmra.mrb[0].mxu0 %v710
      %v1104 = vpop.f32.mrb[0].mxu0
      %v1105 = vadd.f32 0.0, %v1104
      %v1106 = vpop.f32.mrb[0].mxu0
      %v1107 = vpop.f32.mrb[0].mxu0
      %v1108 = vadd.f32 0.0, %v1107
      %v1109 = vpop.f32.mrb[0].mxu0
      %1110 = vmatprep.mubr.bf16.mxu0 %v715
      %1111 = vmatmul.mubr.bf16.gmra.mrb[0].mxu0 %v714
      %v1112 = vpop.f32.mrb[0].mxu0
      %v1113 = vadd.f32 0.0, %v1112
      %v1114 = vpop.f32.mrb[0].mxu0
      %v1115 = vpop.f32.mrb[0].mxu0
      %v1116 = vadd.f32 0.0, %v1115
      %v1117 = vpop.f32.mrb[0].mxu0
      %1118 = vmatprep.mubr.bf16.mxu0 %v719
      %1119 = vmatmul.mubr.bf16.gmra.mrb[0].mxu0 %v718
      %v1120 = vpop.f32.mrb[0].mxu0
      %v1121 = vadd.f32 0.0, %v1120
      %v1122 = vpop.f32.mrb[0].mxu0
      %v1123 = vpop.f32.mrb[0].mxu0
      %v1124 = vadd.f32 0.0, %v1123
      %v1125 = vpop.f32.mrb[0].mxu0
      %1126 = vmatprep.mubr.bf16.mxu0 %v723
      %1127 = vmatmul.mubr.bf16.gmra.mrb[0].mxu0 %v722
      %v1128 = vpop.f32.mrb[0].mxu0
      %v1129 = vadd.f32 0.0, %v1128
      %v1130 = vpop.f32.mrb[0].mxu0
      %v1131 = vpop.f32.mrb[0].mxu0
      %v1132 = vadd.f32 0.0, %v1131
      %v1133 = vpop.f32.mrb[0].mxu0
      %1134 = vmatprep.mubr.bf16.mxu0 %v727
      %1135 = vmatmul.mubr.bf16.gmra.mrb[0].mxu0 %v726
      %v1136 = vpop.f32.mrb[0].mxu0
      %v1137 = vadd.f32 0.0, %v1136
      %v1138 = vpop.f32.mrb[0].mxu0
      %v1139 = vpop.f32.mrb[0].mxu0
      %v1140 = vadd.f32 0.0, %v1139
      %v1141 = vpop.f32.mrb[0].mxu0
      %1142 = vmatprep.mubr.bf16.mxu0 %v731
      %1143 = vmatmul.mubr.bf16.gmra.mrb[0].mxu0 %v730
      %v1144 = vpop.f32.mrb[0].mxu0
      %v1145 = vadd.f32 0.0, %v1144
      %v1146 = vpop.f32.mrb[0].mxu0
      %v1147 = vpop.f32.mrb[0].mxu0
      %v1148 = vadd.f32 0.0, %v1147
      %v1149 = vpop.f32.mrb[0].mxu0
      %1150 = vdwg.mxu0
      %1151 = vmatprep.subr.bf16.mxu0 0
      %1152 = vmatpush1.bf16.msra.mxu0 %v942
      %1153 = vmatprep.subr.bf16.mxu0 0
      %1154 = vmatpush1.bf16.msra.mxu0 %v943
      %1155 = vmatprep.subr.bf16.mxu0 0
      %1156 = vmatpush1.bf16.msra.mxu0 %v944
      %1157 = vmatprep.subr.bf16.mxu0 0
      %1158 = vmatpush1.bf16.msra.mxu0 %v945
      %1159 = vmatprep.subr.bf16.mxu0 0
      %1160 = vmatpush1.bf16.msra.mxu0 %v946
      %1161 = vmatprep.subr.bf16.mxu0 0
      %1162 = vmatpush1.bf16.msra.mxu0 %v947
      %1163 = vmatprep.subr.bf16.mxu0 0
      %1164 = vmatpush1.bf16.msra.mxu0 %v948
      %1165 = vmatprep.subr.bf16.mxu0 0
      %1166 = vmatpush1.bf16.msra.mxu0 %v949
      %1167 = vmatprep.subr.bf16.mxu0 0
      %1168 = vmatpush1.bf16.msra.mxu0 %v950
      %1169 = vmatprep.subr.bf16.mxu0 0
      %1170 = vmatpush1.bf16.msra.mxu0 %v951
      %1171 = vmatprep.subr.bf16.mxu0 0
      %1172 = vmatpush1.bf16.msra.mxu0 %v952
      %1173 = vmatprep.subr.bf16.mxu0 0
      %1174 = vmatpush1.bf16.msra.mxu0 %v953
      %1175 = vmatprep.subr.bf16.mxu0 0
      %1176 = vmatpush1.bf16.msra.mxu0 %v954
      %1177 = vmatprep.subr.bf16.mxu0 0
      %1178 = vmatpush1.bf16.msra.mxu0 %v955
      %1179 = vmatprep.subr.bf16.mxu0 0
      %1180 = vmatpush1.bf16.msra.mxu0 %v956
      %1181 = vmatprep.subr.bf16.mxu0 0
      %1182 = vmatpush1.bf16.msra.mxu0 %v957
      %1183 = vmatprep.mubr.bf16.mxu0 %v673
      %1184 = vmatmul.mubr.bf16.gmra.mrb[0].mxu0 %v672
      %v1185 = vpop.f32.mrb[0].mxu0
      %v1186 = vadd.f32 %v1025, %v1185
      %v1187 = vpop.f32.mrb[0].mxu0
      %v1188 = vpop.f32.mrb[0].mxu0
      %v1189 = vadd.f32 %v1028, %v1188
      %v1190 = vpop.f32.mrb[0].mxu0
      %1191 = vmatprep.mubr.bf16.mxu0 %v677
      %1192 = vmatmul.mubr.bf16.gmra.mrb[0].mxu0 %v676
      %v1193 = vpop.f32.mrb[0].mxu0
      %v1194 = vadd.f32 %v1033, %v1193
      %v1195 = vpop.f32.mrb[0].mxu0
      %v1196 = vpop.f32.mrb[0].mxu0
      %v1197 = vadd.f32 %v1036, %v1196
      %v1198 = vpop.f32.mrb[0].mxu0
      %1199 = vmatprep.mubr.bf16.mxu0 %v681
      %1200 = vmatmul.mubr.bf16.gmra.mrb[0].mxu0 %v680
      %v1201 = vpop.f32.mrb[0].mxu0
      %v1202 = vadd.f32 %v1041, %v1201
      %v1203 = vpop.f32.mrb[0].mxu0
      %v1204 = vpop.f32.mrb[0].mxu0
      %v1205 = vadd.f32 %v1044, %v1204
      %v1206 = vpop.f32.mrb[0].mxu0
      %1207 = vmatprep.mubr.bf16.mxu0 %v685
      %1208 = vmatmul.mubr.bf16.gmra.mrb[0].mxu0 %v684
      %v1209 = vpop.f32.mrb[0].mxu0
      %v1210 = vadd.f32 %v1049, %v1209
      %v1211 = vpop.f32.mrb[0].mxu0
      %v1212 = vpop.f32.mrb[0].mxu0
      %v1213 = vadd.f32 %v1052, %v1212
      %v1214 = vpop.f32.mrb[0].mxu0
      %1215 = vmatprep.mubr.bf16.mxu0 %v689
      %1216 = vmatmul.mubr.bf16.gmra.mrb[0].mxu0 %v688
      %v1217 = vpop.f32.mrb[0].mxu0
      %v1218 = vadd.f32 %v1057, %v1217
      %v1219 = vpop.f32.mrb[0].mxu0
      %v1220 = vpop.f32.mrb[0].mxu0
      %v1221 = vadd.f32 %v1060, %v1220
      %v1222 = vpop.f32.mrb[0].mxu0
      %1223 = vmatprep.mubr.bf16.mxu0 %v693
      %1224 = vmatmul.mubr.bf16.gmra.mrb[0].mxu0 %v692
      %v1225 = vpop.f32.mrb[0].mxu0
      %v1226 = vadd.f32 %v1065, %v1225
      %v1227 = vpop.f32.mrb[0].mxu0
      %v1228 = vpop.f32.mrb[0].mxu0
      %v1229 = vadd.f32 %v1068, %v1228
      %v1230 = vpop.f32.mrb[0].mxu0
      %1231 = vmatprep.mubr.bf16.mxu0 %v697
      %1232 = vmatmul.mubr.bf16.gmra.mrb[0].mxu0 %v696
      %v1233 = vpop.f32.mrb[0].mxu0
      %v1234 = vadd.f32 %v1073, %v1233
      %v1235 = vpop.f32.mrb[0].mxu0
      %v1236 = vpop.f32.mrb[0].mxu0
      %v1237 = vadd.f32 %v1076, %v1236
      %v1238 = vpop.f32.mrb[0].mxu0
      %1239 = vmatprep.mubr.bf16.mxu0 %v701
      %1240 = vmatmul.mubr.bf16.gmra.mrb[0].mxu0 %v700
      %v1241 = vpop.f32.mrb[0].mxu0
      %v1242 = vadd.f32 %v1081, %v1241
      %v1243 = vpop.f32.mrb[0].mxu0
      %v1244 = vpop.f32.mrb[0].mxu0
      %v1245 = vadd.f32 %v1084, %v1244
      %v1246 = vpop.f32.mrb[0].mxu0
      %1247 = vmatprep.mubr.bf16.mxu0 %v705
      %1248 = vmatmul.mubr.bf16.gmra.mrb[0].mxu0 %v704
      %v1249 = vpop.f32.mrb[0].mxu0
      %v1250 = vadd.f32 %v1089, %v1249
      %v1251 = vpop.f32.mrb[0].mxu0
      %v1252 = vpop.f32.mrb[0].mxu0
      %v1253 = vadd.f32 %v1092, %v1252
      %v1254 = vpop.f32.mrb[0].mxu0
      %1255 = vmatprep.mubr.bf16.mxu0 %v709
      %1256 = vmatmul.mubr.bf16.gmra.mrb[0].mxu0 %v708
      %v1257 = vpop.f32.mrb[0].mxu0
      %v1258 = vadd.f32 %v1097, %v1257
      %v1259 = vpop.f32.mrb[0].mxu0
      %v1260 = vpop.f32.mrb[0].mxu0
      %v1261 = vadd.f32 %v1100, %v1260
      %v1262 = vpop.f32.mrb[0].mxu0
      %1263 = vmatprep.mubr.bf16.mxu0 %v713
      %1264 = vmatmul.mubr.bf16.gmra.mrb[0].mxu0 %v712
      %v1265 = vpop.f32.mrb[0].mxu0
      %v1266 = vadd.f32 %v1105, %v1265
      %v1267 = vpop.f32.mrb[0].mxu0
      %v1268 = vpop.f32.mrb[0].mxu0
      %v1269 = vadd.f32 %v1108, %v1268
      %v1270 = vpop.f32.mrb[0].mxu0
      %1271 = vmatprep.mubr.bf16.mxu0 %v717
      %1272 = vmatmul.mubr.bf16.gmra.mrb[0].mxu0 %v716
      %v1273 = vpop.f32.mrb[0].mxu0
      %v1274 = vadd.f32 %v1113, %v1273
      %v1275 = vpop.f32.mrb[0].mxu0
      %v1276 = vpop.f32.mrb[0].mxu0
      %v1277 = vadd.f32 %v1116, %v1276
      %v1278 = vpop.f32.mrb[0].mxu0
      %1279 = vmatprep.mubr.bf16.mxu0 %v721
      %1280 = vmatmul.mubr.bf16.gmra.mrb[0].mxu0 %v720
      %v1281 = vpop.f32.mrb[0].mxu0
      %v1282 = vadd.f32 %v1121, %v1281
      %v1283 = vpop.f32.mrb[0].mxu0
      %v1284 = vpop.f32.mrb[0].mxu0
      %v1285 = vadd.f32 %v1124, %v1284
      %v1286 = vpop.f32.mrb[0].mxu0
      %1287 = vmatprep.mubr.bf16.mxu0 %v725
      %1288 = vmatmul.mubr.bf16.gmra.mrb[0].mxu0 %v724
      %v1289 = vpop.f32.mrb[0].mxu0
      %v1290 = vadd.f32 %v1129, %v1289
      %v1291 = vpop.f32.mrb[0].mxu0
      %v1292 = vpop.f32.mrb[0].mxu0
      %v1293 = vadd.f32 %v1132, %v1292
      %v1294 = vpop.f32.mrb[0].mxu0
      %1295 = vmatprep.mubr.bf16.mxu0 %v729
      %1296 = vmatmul.mubr.bf16.gmra.mrb[0].mxu0 %v728
      %v1297 = vpop.f32.mrb[0].mxu0
      %v1298 = vadd.f32 %v1137, %v1297
      %v1299 = vpop.f32.mrb[0].mxu0
      %v1300 = vpop.f32.mrb[0].mxu0
      %v1301 = vadd.f32 %v1140, %v1300
      %v1302 = vpop.f32.mrb[0].mxu0
      %1303 = vmatprep.mubr.bf16.mxu0 %v733
      %1304 = vmatmul.mubr.bf16.gmra.mrb[0].mxu0 %v732
      %v1305 = vpop.f32.mrb[0].mxu0
      %v1306 = vadd.f32 %v1145, %v1305
      %v1307 = vpop.f32.mrb[0].mxu0
      %v1308 = vpop.f32.mrb[0].mxu0
      %v1309 = vadd.f32 %v1148, %v1308
      %v1310 = vpop.f32.mrb[0].mxu0
      %1311 = vdwg.mxu0
      %v1312 = vadd.f32 %v318, %v1186
      %v1313 = vadd.f32 %v319, %v1189
      %v1314 = vadd.f32 %v320, %v1194
      %v1315 = vadd.f32 %v321, %v1197
      %v1316 = vadd.f32 %v322, %v1202
      %v1317 = vadd.f32 %v323, %v1205
      %v1318 = vadd.f32 %v324, %v1210
      %v1319 = vadd.f32 %v325, %v1213
      %v1320 = vadd.f32 %v326, %v1218
      %v1321 = vadd.f32 %v327, %v1221
      %v1322 = vadd.f32 %v328, %v1226
      %v1323 = vadd.f32 %v329, %v1229
      %v1324 = vadd.f32 %v330, %v1234
      %v1325 = vadd.f32 %v331, %v1237
      %v1326 = vadd.f32 %v332, %v1242
      %v1327 = vadd.f32 %v333, %v1245
      %v1328 = vadd.f32 %v334, %v1250
      %v1329 = vadd.f32 %v335, %v1253
      %v1330 = vadd.f32 %v336, %v1258
      %v1331 = vadd.f32 %v337, %v1261
      %v1332 = vadd.f32 %v338, %v1266
      %v1333 = vadd.f32 %v339, %v1269
      %v1334 = vadd.f32 %v340, %v1274
      %v1335 = vadd.f32 %v341, %v1277
      %v1336 = vadd.f32 %v342, %v1282
      %v1337 = vadd.f32 %v343, %v1285
      %v1338 = vadd.f32 %v344, %v1290
      %v1339 = vadd.f32 %v345, %v1293
      %v1340 = vadd.f32 %v346, %v1298
      %v1341 = vadd.f32 %v347, %v1301
      %v1342 = vadd.f32 %v348, %v1306
      %v1343 = vadd.f32 %v349, %v1309
      %1344 = vst [vmem:[#allocation2] sm:$0xff] %v1312
      %1345 = vst [vmem:[#allocation2 + $0x8] sm:$0xff] %v1313
      %1346 = vst [vmem:[#allocation2 + $0x10] sm:$0xff] %v1314
      %1347 = vst [vmem:[#allocation2 + $0x18] sm:$0xff] %v1315
      %1348 = vst [vmem:[#allocation2 + $0x20] sm:$0xff] %v1316
      %1349 = vst [vmem:[#allocation2 + $0x28] sm:$0xff] %v1317
      %1350 = vst [vmem:[#allocation2 + $0x30] sm:$0xff] %v1318
      %1351 = vst [vmem:[#allocation2 + $0x38] sm:$0xff] %v1319
      %1352 = vst [vmem:[#allocation2 + $0x40] sm:$0xff] %v1320
      %1353 = vst [vmem:[#allocation2 + $0x48] sm:$0xff] %v1321
      %1354 = vst [vmem:[#allocation2 + $0x50] sm:$0xff] %v1322
      %1355 = vst [vmem:[#allocation2 + $0x58] sm:$0xff] %v1323
      %1356 = vst [vmem:[#allocation2 + $0x60] sm:$0xff] %v1324
      %1357 = vst [vmem:[#allocation2 + $0x68] sm:$0xff] %v1325
      %1358 = vst [vmem:[#allocation2 + $0x70] sm:$0xff] %v1326
      %1359 = vst [vmem:[#allocation2 + $0x78] sm:$0xff] %v1327
      %1360 = vst [vmem:[#allocation2 + $0x80] sm:$0xff] %v1328
      %1361 = vst [vmem:[#allocation2 + $0x88] sm:$0xff] %v1329
      %1362 = vst [vmem:[#allocation2 + $0x90] sm:$0xff] %v1330
      %1363 = vst [vmem:[#allocation2 + $0x98] sm:$0xff] %v1331
      %1364 = vst [vmem:[#allocation2 + $0xa0] sm:$0xff] %v1332
      %1365 = vst [vmem:[#allocation2 + $0xa8] sm:$0xff] %v1333
      %1366 = vst [vmem:[#allocation2 + $0xb0] sm:$0xff] %v1334
      %1367 = vst [vmem:[#allocation2 + $0xb8] sm:$0xff] %v1335
      %1368 = vst [vmem:[#allocation2 + $0xc0] sm:$0xff] %v1336
      %1369 = vst [vmem:[#allocation2 + $0xc8] sm:$0xff] %v1337
      %1370 = vst [vmem:[#allocation2 + $0xd0] sm:$0xff] %v1338
      %1371 = vst [vmem:[#allocation2 + $0xd8] sm:$0xff] %v1339
      %1372 = vst [vmem:[#allocation2 + $0xe0] sm:$0xff] %v1340
      %1373 = vst [vmem:[#allocation2 + $0xe8] sm:$0xff] %v1341
      %1374 = vst [vmem:[#allocation2 + $0xf0] sm:$0xff] %v1342
      %1375 = vst [vmem:[#allocation2 + $0xf8] sm:$0xff] %v1343
      // Predicated region
      $region45: #{conv_gnn_forward.4} parent=39 // pred_check
        %p1376 = pneg %p282
      $region46: #{conv_gnn_forward.4} parent=39 // pred_check_branch
        %1378 = sbr.rel (%p1376) target = $region48
      $region47: #{conv_gnn_forward.4} parent=39 // pred_region
        %v1379 = vld [vmem:[#allocation2] sm:$0xff]
        %v1380 = vld [vmem:[#allocation2 + $0x8] sm:$0xff]
        %v1381 = vld [vmem:[#allocation2 + $0x10] sm:$0xff]
        %v1382 = vld [vmem:[#allocation2 + $0x18] sm:$0xff]
        %v1383 = vld [vmem:[#allocation2 + $0x20] sm:$0xff]
        %v1384 = vld [vmem:[#allocation2 + $0x28] sm:$0xff]
        %v1385 = vld [vmem:[#allocation2 + $0x30] sm:$0xff]
        %v1386 = vld [vmem:[#allocation2 + $0x38] sm:$0xff]
        %v1387 = vld [vmem:[#allocation2 + $0x40] sm:$0xff]
        %v1388 = vld [vmem:[#allocation2 + $0x48] sm:$0xff]
        %v1389 = vld [vmem:[#allocation2 + $0x50] sm:$0xff]
        %v1390 = vld [vmem:[#allocation2 + $0x58] sm:$0xff]
        %v1391 = vld [vmem:[#allocation2 + $0x60] sm:$0xff]
        %v1392 = vld [vmem:[#allocation2 + $0x68] sm:$0xff]
        %v1393 = vld [vmem:[#allocation2 + $0x70] sm:$0xff]
        %v1394 = vld [vmem:[#allocation2 + $0x78] sm:$0xff]
        %v1395 = vld [vmem:[#allocation2 + $0x80] sm:$0xff]
        %v1396 = vld [vmem:[#allocation2 + $0x88] sm:$0xff]
        %v1397 = vld [vmem:[#allocation2 + $0x90] sm:$0xff]
        %v1398 = vld [vmem:[#allocation2 + $0x98] sm:$0xff]
        %v1399 = vld [vmem:[#allocation2 + $0xa0] sm:$0xff]
        %v1400 = vld [vmem:[#allocation2 + $0xa8] sm:$0xff]
        %v1401 = vld [vmem:[#allocation2 + $0xb0] sm:$0xff]
        %v1402 = vld [vmem:[#allocation2 + $0xb8] sm:$0xff]
        %v1403 = vld [vmem:[#allocation2 + $0xc0] sm:$0xff]
        %v1404 = vld [vmem:[#allocation2 + $0xc8] sm:$0xff]
        %v1405 = vld [vmem:[#allocation2 + $0xd0] sm:$0xff]
        %v1406 = vld [vmem:[#allocation2 + $0xd8] sm:$0xff]
        %v1407 = vld [vmem:[#allocation2 + $0xe0] sm:$0xff]
        %v1408 = vld [vmem:[#allocation2 + $0xe8] sm:$0xff]
        %v1409 = vld [vmem:[#allocation2 + $0xf0] sm:$0xff]
        %v1410 = vld [vmem:[#allocation2 + $0xf8] sm:$0xff]
        %v1411 = vld [vmem:[%s2] sm:$0x1]
        %v1413 = vlaneseq
        %v1414 = vshrl.u32 %v1413, 7
        %v1415 = vsub.s32 0, %v1414
        %v1416 = vrot.slane %v1411, %v1415
        %v1418 = vadd.f32 %v1379, %v1416
        %v1419 = vadd.f32 %v1380, %v1416
        %v1420 = vadd.f32 %v1381, %v1416
        %v1421 = vadd.f32 %v1382, %v1416
        %v1422 = vadd.f32 %v1383, %v1416
        %v1423 = vadd.f32 %v1384, %v1416
        %v1424 = vadd.f32 %v1385, %v1416
        %v1425 = vadd.f32 %v1386, %v1416
        %v1426 = vadd.f32 %v1387, %v1416
        %v1427 = vadd.f32 %v1388, %v1416
        %v1428 = vadd.f32 %v1389, %v1416
        %v1429 = vadd.f32 %v1390, %v1416
        %v1430 = vadd.f32 %v1391, %v1416
        %v1431 = vadd.f32 %v1392, %v1416
        %v1432 = vadd.f32 %v1393, %v1416
        %v1433 = vadd.f32 %v1394, %v1416
        %v1434 = vadd.f32 %v1395, %v1416
        %v1435 = vadd.f32 %v1396, %v1416
        %v1436 = vadd.f32 %v1397, %v1416
        %v1437 = vadd.f32 %v1398, %v1416
        %v1438 = vadd.f32 %v1399, %v1416
        %v1439 = vadd.f32 %v1400, %v1416
        %v1440 = vadd.f32 %v1401, %v1416
        %v1441 = vadd.f32 %v1402, %v1416
        %v1442 = vadd.f32 %v1403, %v1416
        %v1443 = vadd.f32 %v1404, %v1416
        %v1444 = vadd.f32 %v1405, %v1416
        %v1445 = vadd.f32 %v1406, %v1416
        %v1446 = vadd.f32 %v1407, %v1416
        %v1447 = vadd.f32 %v1408, %v1416
        %v1448 = vadd.f32 %v1409, %v1416
        %v1449 = vadd.f32 %v1410, %v1416
        %v1450 = vmax.f32 %v1418, 0.0
        %v1451 = vmax.f32 %v1419, 0.0
        %v1452 = vmax.f32 %v1420, 0.0
        %v1453 = vmax.f32 %v1421, 0.0
        %v1454 = vmax.f32 %v1422, 0.0
        %v1455 = vmax.f32 %v1423, 0.0
        %v1456 = vmax.f32 %v1424, 0.0
        %v1457 = vmax.f32 %v1425, 0.0
        %v1458 = vmax.f32 %v1426, 0.0
        %v1459 = vmax.f32 %v1427, 0.0
        %v1460 = vmax.f32 %v1428, 0.0
        %v1461 = vmax.f32 %v1429, 0.0
        %v1462 = vmax.f32 %v1430, 0.0
        %v1463 = vmax.f32 %v1431, 0.0
        %v1464 = vmax.f32 %v1432, 0.0
        %v1465 = vmax.f32 %v1433, 0.0
        %v1466 = vmax.f32 %v1434, 0.0
        %v1467 = vmax.f32 %v1435, 0.0
        %v1468 = vmax.f32 %v1436, 0.0
        %v1469 = vmax.f32 %v1437, 0.0
        %v1470 = vmax.f32 %v1438, 0.0
        %v1471 = vmax.f32 %v1439, 0.0
        %v1472 = vmax.f32 %v1440, 0.0
        %v1473 = vmax.f32 %v1441, 0.0
        %v1474 = vmax.f32 %v1442, 0.0
        %v1475 = vmax.f32 %v1443, 0.0
        %v1476 = vmax.f32 %v1444, 0.0
        %v1477 = vmax.f32 %v1445, 0.0
        %v1478 = vmax.f32 %v1446, 0.0
        %v1479 = vmax.f32 %v1447, 0.0
        %v1480 = vmax.f32 %v1448, 0.0
        %v1481 = vmax.f32 %v1449, 0.0
        %v1482 = vpack.c.bf16 %v1451, %v1450
        %v1483 = vpack.c.bf16 %v1453, %v1452
        %v1484 = vpack.c.bf16 %v1455, %v1454
        %v1485 = vpack.c.bf16 %v1457, %v1456
        %v1486 = vpack.c.bf16 %v1459, %v1458
        %v1487 = vpack.c.bf16 %v1461, %v1460
        %v1488 = vpack.c.bf16 %v1463, %v1462
        %v1489 = vpack.c.bf16 %v1465, %v1464
        %v1490 = vpack.c.bf16 %v1467, %v1466
        %v1491 = vpack.c.bf16 %v1469, %v1468
        %v1492 = vpack.c.bf16 %v1471, %v1470
        %v1493 = vpack.c.bf16 %v1473, %v1472
        %v1494 = vpack.c.bf16 %v1475, %v1474
        %v1495 = vpack.c.bf16 %v1477, %v1476
        %v1496 = vpack.c.bf16 %v1479, %v1478
        %v1497 = vpack.c.bf16 %v1481, %v1480
        %v1498 = vld [vmem:[%s3] sm:$0xf]
        %v1499 = vld [vmem:[%s3 + $0x4] sm:$0xf]
        %v1500 = vld [vmem:[%s3 + $0x8] sm:$0xf]
        %v1501 = vld [vmem:[%s3 + $0xc] sm:$0xf]
        %v1502 = vld [vmem:[%s3 + $0x10] sm:$0xf]
        %v1503 = vld [vmem:[%s3 + $0x14] sm:$0xf]
        %v1504 = vld [vmem:[%s3 + $0x18] sm:$0xf]
        %v1505 = vld [vmem:[%s3 + $0x1c] sm:$0xf]
        %v1506 = vld [vmem:[%s3 + $0x20] sm:$0xf]
        %v1507 = vld [vmem:[%s3 + $0x24] sm:$0xf]
        %v1508 = vld [vmem:[%s3 + $0x28] sm:$0xf]
        %v1509 = vld [vmem:[%s3 + $0x2c] sm:$0xf]
        %v1510 = vld [vmem:[%s3 + $0x30] sm:$0xf]
        %v1511 = vld [vmem:[%s3 + $0x34] sm:$0xf]
        %v1512 = vld [vmem:[%s3 + $0x38] sm:$0xf]
        %v1513 = vld [vmem:[%s3 + $0x3c] sm:$0xf]
        %v1514 = vld [vmem:[%s4] sm:$0x1]
        %v1516 = vlaneseq
        %v1517 = vshrl.u32 %v1516, 7
        %v1518 = vsub.s32 0, %v1517
        %v1519 = vrot.slane %v1514, %v1518
        %v1537 = vunpack.c.l.b16 %v1498
        %v1538 = vunpack.c.l.b16 %v1499
        %v1539 = vunpack.c.l.b16 %v1500
        %v1540 = vunpack.c.l.b16 %v1501
        %v1541 = vunpack.c.l.b16 %v1502
        %v1542 = vunpack.c.l.b16 %v1503
        %v1543 = vunpack.c.l.b16 %v1504
        %v1544 = vunpack.c.l.b16 %v1505
        %v1545 = vunpack.c.l.b16 %v1506
        %v1546 = vunpack.c.l.b16 %v1507
        %v1547 = vunpack.c.l.b16 %v1508
        %v1548 = vunpack.c.l.b16 %v1509
        %v1549 = vunpack.c.l.b16 %v1510
        %v1550 = vunpack.c.l.b16 %v1511
        %v1551 = vunpack.c.l.b16 %v1512
        %v1552 = vunpack.c.l.b16 %v1513
        %v1553 = vpack.c.b16 %v1538, %v1537
        %v1554 = vpack.c.b16 %v1540, %v1539
        %v1555 = vpack.c.b16 %v1542, %v1541
        %v1556 = vpack.c.b16 %v1544, %v1543
        %v1557 = vpack.c.b16 %v1546, %v1545
        %v1558 = vpack.c.b16 %v1548, %v1547
        %v1559 = vpack.c.b16 %v1550, %v1549
        %v1560 = vpack.c.b16 %v1552, %v1551
        %1569 = vmatprep.subr.bf16.mxu0 0
        %1570 = vmatpush1.bf16.msra.mxu0 %v1553
        %1571 = vmatprep.subr.bf16.mxu0 0
        %1572 = vmatpush1.bf16.msra.mxu0 %v1554
        %1573 = vmatprep.subr.bf16.mxu0 0
        %1574 = vmatpush1.bf16.msra.mxu0 %v1555
        %1575 = vmatprep.subr.bf16.mxu0 0
        %1576 = vmatpush1.bf16.msra.mxu0 %v1556
        %1577 = vmatprep.subr.bf16.mxu0 0
        %1578 = vmatpush1.bf16.msra.mxu0 %v1557
        %1579 = vmatprep.subr.bf16.mxu0 0
        %1580 = vmatpush1.bf16.msra.mxu0 %v1558
        %1581 = vmatprep.subr.bf16.mxu0 0
        %1582 = vmatpush1.bf16.msra.mxu0 %v1559
        %1583 = vmatprep.subr.bf16.mxu0 0
        %1584 = vmatpush1.bf16.msra.mxu0 %v1560
        %1585 = vmatprep.subr.bf16.mxu0 0
        %1586 = vmatpush1.bf16.msra.mxu0 0
        %1587 = vmatprep.subr.bf16.mxu0 0
        %1588 = vmatpush1.bf16.msra.mxu0 0
        %1589 = vmatprep.subr.bf16.mxu0 0
        %1590 = vmatpush1.bf16.msra.mxu0 0
        %1591 = vmatprep.subr.bf16.mxu0 0
        %1592 = vmatpush1.bf16.msra.mxu0 0
        %1593 = vmatprep.subr.bf16.mxu0 0
        %1594 = vmatpush1.bf16.msra.mxu0 0
        %1595 = vmatprep.subr.bf16.mxu0 0
        %1596 = vmatpush1.bf16.msra.mxu0 0
        %1597 = vmatprep.subr.bf16.mxu0 0
        %1598 = vmatpush1.bf16.msra.mxu0 0
        %1599 = vmatprep.subr.bf16.mxu0 0
        %1600 = vmatpush1.bf16.msra.mxu0 0
        %1601 = vmatprep.mubr.bf16.mxu0 0
        %1602 = vmatmul.mubr.bf16.gmra.mrb[0].mxu0 %v1482
        %v1603 = vpop.f32.mrb[0].mxu0
        %v1604 = vadd.f32 %v1519, %v1603
        %v1605 = vpop.f32.mrb[0].mxu0
        %v1606 = vpop.f32.mrb[0].mxu0
        %v1607 = vadd.f32 %v1519, %v1606
        %v1608 = vpop.f32.mrb[0].mxu0
        %1609 = vmatprep.mubr.bf16.mxu0 0
        %1610 = vmatmul.mubr.bf16.gmra.mrb[0].mxu0 %v1483
        %v1611 = vpop.f32.mrb[0].mxu0
        %v1612 = vadd.f32 %v1519, %v1611
        %v1613 = vpop.f32.mrb[0].mxu0
        %v1614 = vpop.f32.mrb[0].mxu0
        %v1615 = vadd.f32 %v1519, %v1614
        %v1616 = vpop.f32.mrb[0].mxu0
        %1617 = vmatprep.mubr.bf16.mxu0 0
        %1618 = vmatmul.mubr.bf16.gmra.mrb[0].mxu0 %v1484
        %v1619 = vpop.f32.mrb[0].mxu0
        %v1620 = vadd.f32 %v1519, %v1619
        %v1621 = vpop.f32.mrb[0].mxu0
        %v1622 = vpop.f32.mrb[0].mxu0
        %v1623 = vadd.f32 %v1519, %v1622
        %v1624 = vpop.f32.mrb[0].mxu0
        %1625 = vmatprep.mubr.bf16.mxu0 0
        %1626 = vmatmul.mubr.bf16.gmra.mrb[0].mxu0 %v1485
        %v1627 = vpop.f32.mrb[0].mxu0
        %v1628 = vadd.f32 %v1519, %v1627
        %v1629 = vpop.f32.mrb[0].mxu0
        %v1630 = vpop.f32.mrb[0].mxu0
        %v1631 = vadd.f32 %v1519, %v1630
        %v1632 = vpop.f32.mrb[0].mxu0
        %1633 = vmatprep.mubr.bf16.mxu0 0
        %1634 = vmatmul.mubr.bf16.gmra.mrb[0].mxu0 %v1486
        %v1635 = vpop.f32.mrb[0].mxu0
        %v1636 = vadd.f32 %v1519, %v1635
        %v1637 = vpop.f32.mrb[0].mxu0
        %v1638 = vpop.f32.mrb[0].mxu0
        %v1639 = vadd.f32 %v1519, %v1638
        %v1640 = vpop.f32.mrb[0].mxu0
        %1641 = vmatprep.mubr.bf16.mxu0 0
        %1642 = vmatmul.mubr.bf16.gmra.mrb[0].mxu0 %v1487
        %v1643 = vpop.f32.mrb[0].mxu0
        %v1644 = vadd.f32 %v1519, %v1643
        %v1645 = vpop.f32.mrb[0].mxu0
        %v1646 = vpop.f32.mrb[0].mxu0
        %v1647 = vadd.f32 %v1519, %v1646
        %v1648 = vpop.f32.mrb[0].mxu0
        %1649 = vmatprep.mubr.bf16.mxu0 0
        %1650 = vmatmul.mubr.bf16.gmra.mrb[0].mxu0 %v1488
        %v1651 = vpop.f32.mrb[0].mxu0
        %v1652 = vadd.f32 %v1519, %v1651
        %v1653 = vpop.f32.mrb[0].mxu0
        %v1654 = vpop.f32.mrb[0].mxu0
        %v1655 = vadd.f32 %v1519, %v1654
        %v1656 = vpop.f32.mrb[0].mxu0
        %1657 = vmatprep.mubr.bf16.mxu0 0
        %1658 = vmatmul.mubr.bf16.gmra.mrb[0].mxu0 %v1489
        %v1659 = vpop.f32.mrb[0].mxu0
        %v1660 = vadd.f32 %v1519, %v1659
        %v1661 = vpop.f32.mrb[0].mxu0
        %v1662 = vpop.f32.mrb[0].mxu0
        %v1663 = vadd.f32 %v1519, %v1662
        %v1664 = vpop.f32.mrb[0].mxu0
        %1665 = vmatprep.mubr.bf16.mxu0 0
        %1666 = vmatmul.mubr.bf16.gmra.mrb[0].mxu0 %v1490
        %v1667 = vpop.f32.mrb[0].mxu0
        %v1668 = vadd.f32 %v1519, %v1667
        %v1669 = vpop.f32.mrb[0].mxu0
        %v1670 = vpop.f32.mrb[0].mxu0
        %v1671 = vadd.f32 %v1519, %v1670
        %v1672 = vpop.f32.mrb[0].mxu0
        %1673 = vmatprep.mubr.bf16.mxu0 0
        %1674 = vmatmul.mubr.bf16.gmra.mrb[0].mxu0 %v1491
        %v1675 = vpop.f32.mrb[0].mxu0
        %v1676 = vadd.f32 %v1519, %v1675
        %v1677 = vpop.f32.mrb[0].mxu0
        %v1678 = vpop.f32.mrb[0].mxu0
        %v1679 = vadd.f32 %v1519, %v1678
        %v1680 = vpop.f32.mrb[0].mxu0
        %1681 = vmatprep.mubr.bf16.mxu0 0
        %1682 = vmatmul.mubr.bf16.gmra.mrb[0].mxu0 %v1492
        %v1683 = vpop.f32.mrb[0].mxu0
        %v1684 = vadd.f32 %v1519, %v1683
        %v1685 = vpop.f32.mrb[0].mxu0
        %v1686 = vpop.f32.mrb[0].mxu0
        %v1687 = vadd.f32 %v1519, %v1686
        %v1688 = vpop.f32.mrb[0].mxu0
        %1689 = vmatprep.mubr.bf16.mxu0 0
        %1690 = vmatmul.mubr.bf16.gmra.mrb[0].mxu0 %v1493
        %v1691 = vpop.f32.mrb[0].mxu0
        %v1692 = vadd.f32 %v1519, %v1691
        %v1693 = vpop.f32.mrb[0].mxu0
        %v1694 = vpop.f32.mrb[0].mxu0
        %v1695 = vadd.f32 %v1519, %v1694
        %v1696 = vpop.f32.mrb[0].mxu0
        %1697 = vmatprep.mubr.bf16.mxu0 0
        %1698 = vmatmul.mubr.bf16.gmra.mrb[0].mxu0 %v1494
        %v1699 = vpop.f32.mrb[0].mxu0
        %v1700 = vadd.f32 %v1519, %v1699
        %v1701 = vpop.f32.mrb[0].mxu0
        %v1702 = vpop.f32.mrb[0].mxu0
        %v1703 = vadd.f32 %v1519, %v1702
        %v1704 = vpop.f32.mrb[0].mxu0
        %1705 = vmatprep.mubr.bf16.mxu0 0
        %1706 = vmatmul.mubr.bf16.gmra.mrb[0].mxu0 %v1495
        %v1707 = vpop.f32.mrb[0].mxu0
        %v1708 = vadd.f32 %v1519, %v1707
        %v1709 = vpop.f32.mrb[0].mxu0
        %v1710 = vpop.f32.mrb[0].mxu0
        %v1711 = vadd.f32 %v1519, %v1710
        %v1712 = vpop.f32.mrb[0].mxu0
        %1713 = vmatprep.mubr.bf16.mxu0 0
        %1714 = vmatmul.mubr.bf16.gmra.mrb[0].mxu0 %v1496
        %v1715 = vpop.f32.mrb[0].mxu0
        %v1716 = vadd.f32 %v1519, %v1715
        %v1717 = vpop.f32.mrb[0].mxu0
        %v1718 = vpop.f32.mrb[0].mxu0
        %v1719 = vadd.f32 %v1519, %v1718
        %v1720 = vpop.f32.mrb[0].mxu0
        %1721 = vmatprep.mubr.bf16.mxu0 0
        %1722 = vmatmul.mubr.bf16.gmra.mrb[0].mxu0 %v1497
        %v1723 = vpop.f32.mrb[0].mxu0
        %v1724 = vadd.f32 %v1519, %v1723
        %v1725 = vpop.f32.mrb[0].mxu0
        %v1726 = vpop.f32.mrb[0].mxu0
        %v1727 = vadd.f32 %v1519, %v1726
        %v1728 = vpop.f32.mrb[0].mxu0
        %1729 = vdwg.mxu0
        %v1730 = vpack.c.bf16 %v1607, %v1604
        %v1731 = vpack.c.bf16 %v1615, %v1612
        %v1732 = vpack.c.bf16 %v1623, %v1620
        %v1733 = vpack.c.bf16 %v1631, %v1628
        %v1734 = vpack.c.bf16 %v1639, %v1636
        %v1735 = vpack.c.bf16 %v1647, %v1644
        %v1736 = vpack.c.bf16 %v1655, %v1652
        %v1737 = vpack.c.bf16 %v1663, %v1660
        %v1738 = vpack.c.bf16 %v1671, %v1668
        %v1739 = vpack.c.bf16 %v1679, %v1676
        %v1740 = vpack.c.bf16 %v1687, %v1684
        %v1741 = vpack.c.bf16 %v1695, %v1692
        %v1742 = vpack.c.bf16 %v1703, %v1700
        %v1743 = vpack.c.bf16 %v1711, %v1708
        %v1744 = vpack.c.bf16 %v1719, %v1716
        %v1745 = vpack.c.bf16 %v1727, %v1724
        %v1762 = vunpack.c.l.b16 %v1730
        %v1763 = vunpack.c.h.b16 %v1730
        %v1764 = vunpack.c.l.b16 %v1731
        %v1765 = vunpack.c.h.b16 %v1731
        %v1766 = vunpack.c.l.b16 %v1732
        %v1767 = vunpack.c.h.b16 %v1732
        %v1768 = vunpack.c.l.b16 %v1733
        %v1769 = vunpack.c.h.b16 %v1733
        %v1770 = vunpack.c.l.b16 %v1734
        %v1771 = vunpack.c.h.b16 %v1734
        %v1772 = vunpack.c.l.b16 %v1735
        %v1773 = vunpack.c.h.b16 %v1735
        %v1774 = vunpack.c.l.b16 %v1736
        %v1775 = vunpack.c.h.b16 %v1736
        %v1776 = vunpack.c.l.b16 %v1737
        %v1777 = vunpack.c.h.b16 %v1737
        %v1778 = vunpack.c.l.b16 %v1738
        %v1779 = vunpack.c.h.b16 %v1738
        %v1780 = vunpack.c.l.b16 %v1739
        %v1781 = vunpack.c.h.b16 %v1739
        %v1782 = vunpack.c.l.b16 %v1740
        %v1783 = vunpack.c.h.b16 %v1740
        %v1784 = vunpack.c.l.b16 %v1741
        %v1785 = vunpack.c.h.b16 %v1741
        %v1786 = vunpack.c.l.b16 %v1742
        %v1787 = vunpack.c.h.b16 %v1742
        %v1788 = vunpack.c.l.b16 %v1743
        %v1789 = vunpack.c.h.b16 %v1743
        %v1790 = vunpack.c.l.b16 %v1744
        %v1791 = vunpack.c.h.b16 %v1744
        %v1792 = vunpack.c.l.b16 %v1745
        %v1793 = vunpack.c.h.b16 %v1745
        %v1794 = vpack.c.b16 %v1762, %v1762
        %v1795 = vpack.c.b16 %v1763, %v1763
        %v1796 = vpack.c.b16 %v1764, %v1764
        %v1797 = vpack.c.b16 %v1765, %v1765
        %v1798 = vpack.c.b16 %v1766, %v1766
        %v1799 = vpack.c.b16 %v1767, %v1767
        %v1800 = vpack.c.b16 %v1768, %v1768
        %v1801 = vpack.c.b16 %v1769, %v1769
        %v1802 = vpack.c.b16 %v1770, %v1770
        %v1803 = vpack.c.b16 %v1771, %v1771
        %v1804 = vpack.c.b16 %v1772, %v1772
        %v1805 = vpack.c.b16 %v1773, %v1773
        %v1806 = vpack.c.b16 %v1774, %v1774
        %v1807 = vpack.c.b16 %v1775, %v1775
        %v1808 = vpack.c.b16 %v1776, %v1776
        %v1809 = vpack.c.b16 %v1777, %v1777
        %v1810 = vpack.c.b16 %v1778, %v1778
        %v1811 = vpack.c.b16 %v1779, %v1779
        %v1812 = vpack.c.b16 %v1780, %v1780
        %v1813 = vpack.c.b16 %v1781, %v1781
        %v1814 = vpack.c.b16 %v1782, %v1782
        %v1815 = vpack.c.b16 %v1783, %v1783
        %v1816 = vpack.c.b16 %v1784, %v1784
        %v1817 = vpack.c.b16 %v1785, %v1785
        %v1818 = vpack.c.b16 %v1786, %v1786
        %v1819 = vpack.c.b16 %v1787, %v1787
        %v1820 = vpack.c.b16 %v1788, %v1788
        %v1821 = vpack.c.b16 %v1789, %v1789
        %v1822 = vpack.c.b16 %v1790, %v1790
        %v1823 = vpack.c.b16 %v1791, %v1791
        %v1824 = vpack.c.b16 %v1792, %v1792
        %v1825 = vpack.c.b16 %v1793, %v1793
        %1858 = vst [vmem:[%s279] sm:$0xf] %v1794
        %1859 = vst [vmem:[%s279 + $0x4] sm:$0xf] %v1795
        %1860 = vst [vmem:[%s279 + $0x8] sm:$0xf] %v1796
        %1861 = vst [vmem:[%s279 + $0xc] sm:$0xf] %v1797
        %1862 = vst [vmem:[%s279 + $0x10] sm:$0xf] %v1798
        %1863 = vst [vmem:[%s279 + $0x14] sm:$0xf] %v1799
        %1864 = vst [vmem:[%s279 + $0x18] sm:$0xf] %v1800
        %1865 = vst [vmem:[%s279 + $0x1c] sm:$0xf] %v1801
        %1866 = vst [vmem:[%s279 + $0x20] sm:$0xf] %v1802
        %1867 = vst [vmem:[%s279 + $0x24] sm:$0xf] %v1803
        %1868 = vst [vmem:[%s279 + $0x28] sm:$0xf] %v1804
        %1869 = vst [vmem:[%s279 + $0x2c] sm:$0xf] %v1805
        %1870 = vst [vmem:[%s279 + $0x30] sm:$0xf] %v1806
        %1871 = vst [vmem:[%s279 + $0x34] sm:$0xf] %v1807
        %1872 = vst [vmem:[%s279 + $0x38] sm:$0xf] %v1808
        %1873 = vst [vmem:[%s279 + $0x3c] sm:$0xf] %v1809
        %1874 = vst [vmem:[%s279 + $0x40] sm:$0xf] %v1810
        %1875 = vst [vmem:[%s279 + $0x44] sm:$0xf] %v1811
        %1876 = vst [vmem:[%s279 + $0x48] sm:$0xf] %v1812
        %1877 = vst [vmem:[%s279 + $0x4c] sm:$0xf] %v1813
        %1878 = vst [vmem:[%s279 + $0x50] sm:$0xf] %v1814
        %1879 = vst [vmem:[%s279 + $0x54] sm:$0xf] %v1815
        %1880 = vst [vmem:[%s279 + $0x58] sm:$0xf] %v1816
        %1881 = vst [vmem:[%s279 + $0x5c] sm:$0xf] %v1817
        %1882 = vst [vmem:[%s279 + $0x60] sm:$0xf] %v1818
        %1883 = vst [vmem:[%s279 + $0x64] sm:$0xf] %v1819
        %1884 = vst [vmem:[%s279 + $0x68] sm:$0xf] %v1820
        %1885 = vst [vmem:[%s279 + $0x6c] sm:$0xf] %v1821
        %1886 = vst [vmem:[%s279 + $0x70] sm:$0xf] %v1822
        %1887 = vst [vmem:[%s279 + $0x74] sm:$0xf] %v1823
        %1888 = vst [vmem:[%s279 + $0x78] sm:$0xf] %v1824
        %1889 = vst [vmem:[%s279 + $0x7c] sm:$0xf] %v1825
      $region48: #{conv_gnn_forward.4} parent=39 // pred_fallthru
        _
      %s1890 = smul.u32 32, %s20
      %p1891 = scmp.lt.s32.totalorder %s1890, 63
      %s1892 = scalar_select %p1891, %s1890, 63
      %s1893 = smul.addr %s1892, 4
      %s1894 = scalar_lea.vmem %s5, %s1893
      // Predicated region
      $region49: #{conv_gnn_forward.4} parent=39 // pred_check
        %p1895 = pneg %p163
      $region50: #{conv_gnn_forward.4} parent=39 // pred_check_branch
        %1897 = sbr.rel (%p1895) target = $region52
      $region51: #{conv_gnn_forward.4} parent=39 // pred_region
        %s1898 = smul.u32 32, %s20
      $region52: #{conv_gnn_forward.4} parent=39 // pred_fallthru
        _
    $region40: #{conv_gnn_forward.4} parent=5 // pred_fallthru
      _
    %p1899 = scmp.le.s32.totalorder 2, %s11
    // Predicated region
    $region53: #{conv_gnn_forward.4} parent=5 // pred_check
      %p1900 = pneg %p1899
    $region54: #{conv_gnn_forward.4} parent=5 // pred_check_branch
      %1902 = sbr.rel (%p1900) target = $region56
    $region55: #{conv_gnn_forward.4} parent=5 // pred_region
      %s1903 = ssub.s32 %s11, 2
      // Predicated region
      $region57: #{conv_gnn_forward.4} parent=55 // pred_check
        %p1904 = pneg %p169
      $region58: #{conv_gnn_forward.4} parent=55 // pred_check_branch
        %1906 = sbr.rel (%p1904) target = $region60
      $region59: #{conv_gnn_forward.4} parent=55 // pred_region
        %s1907 = smul.u32 32, %s22
        %p1908 = scmp.lt.s32.totalorder %s1907, 63
        %s1909 = scalar_select %p1908, %s1907, 63
        %s1910 = smul.addr %s1909, 4
        %s1911 = scalar_lea.vmem %s5, %s1910
      $region60: #{conv_gnn_forward.4} parent=55 // pred_fallthru
        _
    $region56: #{conv_gnn_forward.4} parent=5 // pred_fallthru
      _
  $region6: #{conv_gnn_forward.4} parent=0 // loop_footer
    %s15 = sadd.s32 1, %s11
  $region7: #{conv_gnn_forward.4} parent=0 // loop_footer_branch
    %10 = sbr.rel target = $region3
  $region8: #{conv_gnn_forward.4} parent=0 // loop_exit
    _

// kernel: conv_gnn_forward.5
$region0: #{conv_gnn_forward.5}
  #allocation0 [shape = 'u32[]', space=smem, size = 0x4, offset = 0x4, fixed_abs, tag = 'smem constant byte address 0x4 - core index']
  #allocation1 [shape = 'u32[144,128]{1,0:T(1,128)}', space=vmem, size = 0x12000, scoped, tag = 'internal scratch']
  #allocation2 [shape = 'f32[256,128]{1,0:T(8,128)}', space=vmem, size = 0x20000, scoped, tag = 'scratch operand']
  %s0 = inlined_call_operand.vmem [shape: bf16[512,512], index: 0, kind: input, shape index: {}]
  %s1 = inlined_call_operand.vmem [shape: bf16[512,128], index: 1, kind: input, shape index: {}]
  %s2 = inlined_call_operand.vmem [shape: f32[1,128], index: 2, kind: input, shape index: {}]
  %s3 = inlined_call_operand.vmem [shape: bf16[128,128], index: 3, kind: input, shape index: {}]
  %s4 = inlined_call_operand.vmem [shape: f32[1,128], index: 4, kind: input, shape index: {}]
  %s5 = inlined_call_operand.vmem [shape: f32[512,128], index: 5, kind: output, shape index: {}]
  %s6 = sld [smem:[#allocation0]]
  $region61: #{conv_gnn_forward.5} parent=0
    _
  %s8 = ssub.s32 1, %s6
  %s9 = scalar_select 0, %s8, %s6
  loop: start=0, step=1, limit=4
  $region2: #{conv_gnn_forward.5} parent=0 // loop_pre_header
    _
  $region3: #{conv_gnn_forward.5} parent=0 // loop_header
    %s11 = sphi 0, %s15
    %p12 = scmp.ge.s32.totalorder %s11, 4
    %s18 = sphi 0, %s30
    %s19 = sphi 0, %s26
    %s20 = sphi 0, %s18
    %s21 = sphi 0, %s19
    %s22 = sphi 0, %s20
    %s23 = sphi 0, %s21
    %s35 = sphi 0, %s37
    %s38 = sphi 0, %s35
    %s39 = sphi 0, %s38
    %s55 = sphi 0, %s39
    %s61 = sphi 0, %s63
    %s64 = sphi 0, %s61
    %s65 = sphi 0, %s64
    %s81 = sphi 0, %s65
    %s85 = sphi 0, %s85
    %s87 = sphi 0, %s85
    %s88 = sphi 0, %s87
    %s102 = sphi 0, %s88
    %s106 = sphi 0, %s106
    %s108 = sphi 0, %s106
    %s109 = sphi 0, %s108
    %s123 = sphi 0, %s109
    %s127 = sphi 0, %s127
    %s129 = sphi 0, %s127
    %s130 = sphi 0, %s129
    %s144 = sphi 0, %s130
    %s150 = sphi 0, %s152
    %s153 = sphi 0, %s150
    %s154 = sphi 0, %s153
    %s170 = sphi 0, %s154
  $region4: #{conv_gnn_forward.5} parent=0 // loop_header_branch
    %14 = sbr.rel (%p12) target = $region8
  $region5: #{conv_gnn_forward.5} parent=0 // loop_body
    %s16 = ssub.s32 %s11, 1
    %s17 = ssub.s32 %s11, 2
    %s24 = sadd.s32 1, %s19
    %p25 = scmp.ge.s32.totalorder %s24, 1
    %s26 = scalar_select %p25, 0, %s24
    %s27 = sadd.s32 1, %s18
    %s28 = scalar_select %p25, %s27, %s18
    %p29 = scmp.ge.s32.totalorder %s28, 2
    %s30 = scalar_select %p29, 0, %s28
    %s31 = ssub.s32 %s18, %s30
    %s32 = ssub.s32 %s19, %s26
    %s33 = sor.u32 %s31, %s32
    %p34 = scmp.eq.s32.totalorder %s33, 0
    %s36 = sadd.s32 %s35, 1
    %s37 = scalar_select %p34, %s35, %s36
    %p40 = pneg %p34
    %p41 = scmp.eq.s32.totalorder %s11, 1
    %p42 = por %p40, %p41
    %p43 = scmp.ne.s32.totalorder %s35, %s38
    %p44 = scmp.eq.s32.totalorder %s11, 0
    %p45 = por %p43, %p44
    %p46 = scmp.ne.s32.totalorder %s35, %s38
    %p47 = scmp.eq.s32.totalorder %s16, 1
    %p48 = por %p46, %p47
    %p49 = scmp.ne.s32.totalorder %s38, %s39
    %p50 = scmp.eq.s32.totalorder %s16, 0
    %p51 = por %p49, %p50
    %p52 = scmp.ne.s32.totalorder %s38, %s39
    %p53 = scmp.eq.s32.totalorder %s17, 1
    %p54 = por %p52, %p53
    %p56 = scmp.ne.s32.totalorder %s39, %s55
    %p57 = scmp.eq.s32.totalorder %s17, 0
    %p58 = por %p56, %p57
    %s59 = ssub.s32 %s19, %s26
    %p60 = scmp.eq.s32.totalorder %s59, 0
    %s62 = sadd.s32 %s61, 1
    %s63 = scalar_select %p60, %s61, %s62
    %p66 = pneg %p60
    %p67 = scmp.eq.s32.totalorder %s11, 1
    %p68 = por %p66, %p67
    %p69 = scmp.ne.s32.totalorder %s61, %s64
    %p70 = scmp.eq.s32.totalorder %s11, 0
    %p71 = por %p69, %p70
    %p72 = scmp.ne.s32.totalorder %s61, %s64
    %p73 = scmp.eq.s32.totalorder %s16, 1
    %p74 = por %p72, %p73
    %p75 = scmp.ne.s32.totalorder %s64, %s65
    %p76 = scmp.eq.s32.totalorder %s16, 0
    %p77 = por %p75, %p76
    %p78 = scmp.ne.s32.totalorder %s64, %s65
    %p79 = scmp.eq.s32.totalorder %s17, 1
    %p80 = por %p78, %p79
    %p82 = scmp.ne.s32.totalorder %s65, %s81
    %p83 = scmp.eq.s32.totalorder %s17, 0
    %p84 = por %p82, %p83
    %s86 = sadd.s32 %s85, 1
    %p89 = scmp.eq.s32.totalorder %s11, 1
    %p90 = scmp.ne.s32.totalorder %s85, %s87
    %p91 = scmp.eq.s32.totalorder %s11, 0
    %p92 = por %p90, %p91
    %p93 = scmp.ne.s32.totalorder %s85, %s87
    %p94 = scmp.eq.s32.totalorder %s16, 1
    %p95 = por %p93, %p94
    %p96 = scmp.ne.s32.totalorder %s87, %s88
    %p97 = scmp.eq.s32.totalorder %s16, 0
    %p98 = por %p96, %p97
    %p99 = scmp.ne.s32.totalorder %s87, %s88
    %p100 = scmp.eq.s32.totalorder %s17, 1
    %p101 = por %p99, %p100
    %p103 = scmp.ne.s32.totalorder %s88, %s102
    %p104 = scmp.eq.s32.totalorder %s17, 0
    %p105 = por %p103, %p104
    %s107 = sadd.s32 %s106, 1
    %p110 = scmp.eq.s32.totalorder %s11, 1
    %p111 = scmp.ne.s32.totalorder %s106, %s108
    %p112 = scmp.eq.s32.totalorder %s11, 0
    %p113 = por %p111, %p112
    %p114 = scmp.ne.s32.totalorder %s106, %s108
    %p115 = scmp.eq.s32.totalorder %s16, 1
    %p116 = por %p114, %p115
    %p117 = scmp.ne.s32.totalorder %s108, %s109
    %p118 = scmp.eq.s32.totalorder %s16, 0
    %p119 = por %p117, %p118
    %p120 = scmp.ne.s32.totalorder %s108, %s109
    %p121 = scmp.eq.s32.totalorder %s17, 1
    %p122 = por %p120, %p121
    %p124 = scmp.ne.s32.totalorder %s109, %s123
    %p125 = scmp.eq.s32.totalorder %s17, 0
    %p126 = por %p124, %p125
    %s128 = sadd.s32 %s127, 1
    %p131 = scmp.eq.s32.totalorder %s11, 1
    %p132 = scmp.ne.s32.totalorder %s127, %s129
    %p133 = scmp.eq.s32.totalorder %s11, 0
    %p134 = por %p132, %p133
    %p135 = scmp.ne.s32.totalorder %s127, %s129
    %p136 = scmp.eq.s32.totalorder %s16, 1
    %p137 = por %p135, %p136
    %p138 = scmp.ne.s32.totalorder %s129, %s130
    %p139 = scmp.eq.s32.totalorder %s16, 0
    %p140 = por %p138, %p139
    %p141 = scmp.ne.s32.totalorder %s129, %s130
    %p142 = scmp.eq.s32.totalorder %s17, 1
    %p143 = por %p141, %p142
    %p145 = scmp.ne.s32.totalorder %s130, %s144
    %p146 = scmp.eq.s32.totalorder %s17, 0
    %p147 = por %p145, %p146
    %s148 = ssub.s32 %s18, %s30
    %p149 = scmp.eq.s32.totalorder %s148, 0
    %s151 = sadd.s32 %s150, 1
    %s152 = scalar_select %p149, %s150, %s151
    %p155 = pneg %p149
    %p156 = scmp.eq.s32.totalorder %s11, 1
    %p157 = por %p155, %p156
    %p158 = scmp.ne.s32.totalorder %s150, %s153
    %p159 = scmp.eq.s32.totalorder %s11, 0
    %p160 = por %p158, %p159
    %p161 = scmp.ne.s32.totalorder %s150, %s153
    %p162 = scmp.eq.s32.totalorder %s16, 1
    %p163 = por %p161, %p162
    %p164 = scmp.ne.s32.totalorder %s153, %s154
    %p165 = scmp.eq.s32.totalorder %s16, 0
    %p166 = por %p164, %p165
    %p167 = scmp.ne.s32.totalorder %s153, %s154
    %p168 = scmp.eq.s32.totalorder %s17, 1
    %p169 = por %p167, %p168
    %p171 = scmp.ne.s32.totalorder %s154, %s170
    %p172 = scmp.eq.s32.totalorder %s17, 0
    %p173 = por %p171, %p172
    %p174 = scmp.le.s32.totalorder 1, %s11
    %p175 = scmp.lt.s32.totalorder %s11, 3
    %p176 = pnand %p174, %p175
    %p177 = pneg %p176
    // Predicated region
    $region9: #{conv_gnn_forward.5} parent=5 // pred_check
      _
    $region10: #{conv_gnn_forward.5} parent=5 // pred_check_branch
      %179 = sbr.rel (%p176) target = $region12
    $region11: #{conv_gnn_forward.5} parent=5 // pred_region
      %s180 = ssub.s32 %s11, 1
      // Predicated region
      $region13: #{conv_gnn_forward.5} parent=11 // pred_check
        %p181 = pneg %p77
      $region14: #{conv_gnn_forward.5} parent=11 // pred_check_branch
        %183 = sbr.rel (%p181) target = $region16
      $region15: #{conv_gnn_forward.5} parent=11 // pred_region
        %s184 = smul.u32 64, %s21
        %p185 = scmp.lt.s32.totalorder %s184, 63
        %s186 = scalar_select %p185, %s184, 63
        %s187 = smul.addr %s186, 4
        %s188 = scalar_lea.vmem %s1, %s187
        %s189 = smul.u32 64, %s21
      $region16: #{conv_gnn_forward.5} parent=11 // pred_fallthru
        _
      // Predicated region
      $region17: #{conv_gnn_forward.5} parent=11 // pred_check
        %p190 = pneg %p98
      $region18: #{conv_gnn_forward.5} parent=11 // pred_check_branch
        %192 = sbr.rel (%p190) target = $region20
      $region19: #{conv_gnn_forward.5} parent=11 // pred_region
        _
      $region20: #{conv_gnn_forward.5} parent=11 // pred_fallthru
        _
      // Predicated region
      $region21: #{conv_gnn_forward.5} parent=11 // pred_check
        %p193 = pneg %p119
      $region22: #{conv_gnn_forward.5} parent=11 // pred_check_branch
        %195 = sbr.rel (%p193) target = $region24
      $region23: #{conv_gnn_forward.5} parent=11 // pred_region
        _
      $region24: #{conv_gnn_forward.5} parent=11 // pred_fallthru
        _
      // Predicated region
      $region25: #{conv_gnn_forward.5} parent=11 // pred_check
        %p196 = pneg %p140
      $region26: #{conv_gnn_forward.5} parent=11 // pred_check_branch
        %198 = sbr.rel (%p196) target = $region28
      $region27: #{conv_gnn_forward.5} parent=11 // pred_region
        _
      $region28: #{conv_gnn_forward.5} parent=11 // pred_fallthru
        _
    $region12: #{conv_gnn_forward.5} parent=5 // pred_fallthru
      _
    %p199 = scmp.lt.s32.totalorder %s11, 2
    // Predicated region
    $region29: #{conv_gnn_forward.5} parent=5 // pred_check
      %p200 = pneg %p199
    $region30: #{conv_gnn_forward.5} parent=5 // pred_check_branch
      %202 = sbr.rel (%p200) target = $region32
    $region31: #{conv_gnn_forward.5} parent=5 // pred_region
      // Predicated region
      $region33: #{conv_gnn_forward.5} parent=31 // pred_check
        %p203 = pneg %p45
      $region34: #{conv_gnn_forward.5} parent=31 // pred_check_branch
        %205 = sbr.rel (%p203) target = $region36
      $region35: #{conv_gnn_forward.5} parent=31 // pred_region
        %s206 = smul.u32 32, %s18
        %s207 = smul.u32 4, %s19
        %p208 = scmp.lt.s32.totalorder %s206, 63
        %s209 = scalar_select %p208, %s206, 63
        %p210 = scmp.lt.s32.totalorder %s207, 3
        %s211 = scalar_select %p210, %s207, 3
        %s212 = smul.addr %s209, 4
        %s213 = sadd.s32 %s211, %s212
        %s214 = smul.addr %s213, 4
        %s215 = scalar_lea.vmem %s0, %s214
        %s216 = smul.u32 32, %s18
        %s217 = smul.u32 4, %s19
      $region36: #{conv_gnn_forward.5} parent=31 // pred_fallthru
        _
    $region32: #{conv_gnn_forward.5} parent=5 // pred_fallthru
      _
    %p218 = scmp.le.s32.totalorder 1, %s11
    %p219 = scmp.lt.s32.totalorder %s11, 3
    %p220 = pnand %p218, %p219
    %p221 = pneg %p220
    // Predicated region
    $region37: #{conv_gnn_forward.5} parent=5 // pred_check
      _
    $region38: #{conv_gnn_forward.5} parent=5 // pred_check_branch
      %223 = sbr.rel (%p220) target = $region40
    $region39: #{conv_gnn_forward.5} parent=5 // pred_region
      %s224 = ssub.s32 %s11, 1
      %s225 = smul.u32 32, %s20
      %s226 = smul.u32 4, %s21
      %p227 = scmp.lt.s32.totalorder %s225, 63
      %s228 = scalar_select %p227, %s225, 63
      %p229 = scmp.lt.s32.totalorder %s226, 3
      %s230 = scalar_select %p229, %s226, 3
      %s231 = smul.addr %s228, 4
      %s232 = sadd.s32 %s230, %s231
      %s233 = smul.addr %s232, 4
      %s234 = scalar_lea.vmem %s0, %s233
      %p235 = pneg %p51
      %p236 = pneg %p48
      %s237 = smul.u32 64, %s21
      %p238 = scmp.lt.s32.totalorder %s237, 63
      %s239 = scalar_select %p238, %s237, 63
      %s240 = smul.addr %s239, 4
      %s241 = scalar_lea.vmem %s1, %s240
      %p242 = pneg %p77
      %p243 = pneg %p74
      %p244 = pneg %p98
      %p245 = pneg %p95
      %p246 = pneg %p119
      %p247 = pneg %p116
      %p248 = pneg %p140
      %p249 = pneg %p137
      %p250 = pneg %p166
      %p251 = pneg %p163
      %s252 = smul.u32 32, %s20
      %p253 = scmp.lt.s32.totalorder %s252, 63
      %s254 = scalar_select %p253, %s252, 63
      %s255 = smul.addr %s254, 8
      %s256 = scalar_lea.vmem %s5, %s255
      %s257 = smul.u32 32, %s20
      %s258 = smul.u32 4, %s21
      %p259 = scmp.lt.s32.totalorder %s257, 63
      %s260 = scalar_select %p259, %s257, 63
      %p261 = scmp.lt.s32.totalorder %s258, 3
      %s262 = scalar_select %p261, %s258, 3
      %s263 = smul.addr %s260, 4
      %s264 = sadd.s32 %s262, %s263
      %s265 = smul.addr %s264, 4
      %s266 = scalar_lea.vmem %s0, %s265
      %s267 = smul.u32 32, %s20
      %s268 = smul.u32 4, %s21
      %s269 = smul.u32 64, %s21
      %p270 = scmp.lt.s32.totalorder %s269, 63
      %s271 = scalar_select %p270, %s269, 63
      %s272 = smul.addr %s271, 4
      %s273 = scalar_lea.vmem %s1, %s272
      %s274 = smul.u32 64, %s21
      %s275 = smul.u32 32, %s20
      %p276 = scmp.lt.s32.totalorder %s275, 63
      %s277 = scalar_select %p276, %s275, 63
      %s278 = smul.addr %s277, 8
      %s279 = scalar_lea.vmem %s5, %s278
      %s280 = smul.u32 32, %s20
      %p282 = scmp.eq.s32.totalorder %s21, 0
      // Predicated region
      $region41: #{conv_gnn_forward.5} parent=39 // pred_check
        %p283 = pneg %p282
      $region42: #{conv_gnn_forward.5} parent=39 // pred_check_branch
        %285 = sbr.rel (%p283) target = $region44
      $region43: #{conv_gnn_forward.5} parent=39 // pred_region
        %286 = vst [vmem:[#allocation2] sm:$0xff] 0.0
        %287 = vst [vmem:[#allocation2 + $0x8] sm:$0xff] 0.0
        %288 = vst [vmem:[#allocation2 + $0x10] sm:$0xff] 0.0
        %289 = vst [vmem:[#allocation2 + $0x18] sm:$0xff] 0.0
        %290 = vst [vmem:[#allocation2 + $0x20] sm:$0xff] 0.0
        %291 = vst [vmem:[#allocation2 + $0x28] sm:$0xff] 0.0
        %292 = vst [vmem:[#allocation2 + $0x30] sm:$0xff] 0.0
        %293 = vst [vmem:[#allocation2 + $0x38] sm:$0xff] 0.0
        %294 = vst [vmem:[#allocation2 + $0x40] sm:$0xff] 0.0
        %295 = vst [vmem:[#allocation2 + $0x48] sm:$0xff] 0.0
        %296 = vst [vmem:[#allocation2 + $0x50] sm:$0xff] 0.0
        %297 = vst [vmem:[#allocation2 + $0x58] sm:$0xff] 0.0
        %298 = vst [vmem:[#allocation2 + $0x60] sm:$0xff] 0.0
        %299 = vst [vmem:[#allocation2 + $0x68] sm:$0xff] 0.0
        %300 = vst [vmem:[#allocation2 + $0x70] sm:$0xff] 0.0
        %301 = vst [vmem:[#allocation2 + $0x78] sm:$0xff] 0.0
        %302 = vst [vmem:[#allocation2 + $0x80] sm:$0xff] 0.0
        %303 = vst [vmem:[#allocation2 + $0x88] sm:$0xff] 0.0
        %304 = vst [vmem:[#allocation2 + $0x90] sm:$0xff] 0.0
        %305 = vst [vmem:[#allocation2 + $0x98] sm:$0xff] 0.0
        %306 = vst [vmem:[#allocation2 + $0xa0] sm:$0xff] 0.0
        %307 = vst [vmem:[#allocation2 + $0xa8] sm:$0xff] 0.0
        %308 = vst [vmem:[#allocation2 + $0xb0] sm:$0xff] 0.0
        %309 = vst [vmem:[#allocation2 + $0xb8] sm:$0xff] 0.0
        %310 = vst [vmem:[#allocation2 + $0xc0] sm:$0xff] 0.0
        %311 = vst [vmem:[#allocation2 + $0xc8] sm:$0xff] 0.0
        %312 = vst [vmem:[#allocation2 + $0xd0] sm:$0xff] 0.0
        %313 = vst [vmem:[#allocation2 + $0xd8] sm:$0xff] 0.0
        %314 = vst [vmem:[#allocation2 + $0xe0] sm:$0xff] 0.0
        %315 = vst [vmem:[#allocation2 + $0xe8] sm:$0xff] 0.0
        %316 = vst [vmem:[#allocation2 + $0xf0] sm:$0xff] 0.0
        %317 = vst [vmem:[#allocation2 + $0xf8] sm:$0xff] 0.0
      $region44: #{conv_gnn_forward.5} parent=39 // pred_fallthru
        _
      %v318 = vld [vmem:[#allocation2] sm:$0xff]
      %v319 = vld [vmem:[#allocation2 + $0x8] sm:$0xff]
      %v320 = vld [vmem:[#allocation2 + $0x10] sm:$0xff]
      %v321 = vld [vmem:[#allocation2 + $0x18] sm:$0xff]
      %v322 = vld [vmem:[#allocation2 + $0x20] sm:$0xff]
      %v323 = vld [vmem:[#allocation2 + $0x28] sm:$0xff]
      %v324 = vld [vmem:[#allocation2 + $0x30] sm:$0xff]
      %v325 = vld [vmem:[#allocation2 + $0x38] sm:$0xff]
      %v326 = vld [vmem:[#allocation2 + $0x40] sm:$0xff]
      %v327 = vld [vmem:[#allocation2 + $0x48] sm:$0xff]
      %v328 = vld [vmem:[#allocation2 + $0x50] sm:$0xff]
      %v329 = vld [vmem:[#allocation2 + $0x58] sm:$0xff]
      %v330 = vld [vmem:[#allocation2 + $0x60] sm:$0xff]
      %v331 = vld [vmem:[#allocation2 + $0x68] sm:$0xff]
      %v332 = vld [vmem:[#allocation2 + $0x70] sm:$0xff]
      %v333 = vld [vmem:[#allocation2 + $0x78] sm:$0xff]
      %v334 = vld [vmem:[#allocation2 + $0x80] sm:$0xff]
      %v335 = vld [vmem:[#allocation2 + $0x88] sm:$0xff]
      %v336 = vld [vmem:[#allocation2 + $0x90] sm:$0xff]
      %v337 = vld [vmem:[#allocation2 + $0x98] sm:$0xff]
      %v338 = vld [vmem:[#allocation2 + $0xa0] sm:$0xff]
      %v339 = vld [vmem:[#allocation2 + $0xa8] sm:$0xff]
      %v340 = vld [vmem:[#allocation2 + $0xb0] sm:$0xff]
      %v341 = vld [vmem:[#allocation2 + $0xb8] sm:$0xff]
      %v342 = vld [vmem:[#allocation2 + $0xc0] sm:$0xff]
      %v343 = vld [vmem:[#allocation2 + $0xc8] sm:$0xff]
      %v344 = vld [vmem:[#allocation2 + $0xd0] sm:$0xff]
      %v345 = vld [vmem:[#allocation2 + $0xd8] sm:$0xff]
      %v346 = vld [vmem:[#allocation2 + $0xe0] sm:$0xff]
      %v347 = vld [vmem:[#allocation2 + $0xe8] sm:$0xff]
      %v348 = vld [vmem:[#allocation2 + $0xf0] sm:$0xff]
      %v349 = vld [vmem:[#allocation2 + $0xf8] sm:$0xff]
      %v350 = vld [vmem:[%s266] sm:$0xff]
      %v351 = vld [vmem:[%s266 + $0x8] sm:$0xff]
      %v352 = vld [vmem:[%s266 + $0x10] sm:$0xff]
      %v353 = vld [vmem:[%s266 + $0x18] sm:$0xff]
      %v354 = vld [vmem:[%s266 + $0x20] sm:$0xff]
      %v355 = vld [vmem:[%s266 + $0x28] sm:$0xff]
      %v356 = vld [vmem:[%s266 + $0x30] sm:$0xff]
      %v357 = vld [vmem:[%s266 + $0x38] sm:$0xff]
      %v358 = vld [vmem:[%s266 + $0x40] sm:$0xff]
      %v359 = vld [vmem:[%s266 + $0x48] sm:$0xff]
      %v360 = vld [vmem:[%s266 + $0x50] sm:$0xff]
      %v361 = vld [vmem:[%s266 + $0x58] sm:$0xff]
      %v362 = vld [vmem:[%s266 + $0x60] sm:$0xff]
      %v363 = vld [vmem:[%s266 + $0x68] sm:$0xff]
      %v364 = vld [vmem:[%s266 + $0x70] sm:$0xff]
      %v365 = vld [vmem:[%s266 + $0x78] sm:$0xff]
      %v366 = vld [vmem:[%s266 + $0x80] sm:$0xff]
      %v367 = vld [vmem:[%s266 + $0x88] sm:$0xff]
      %v368 = vld [vmem:[%s266 + $0x90] sm:$0xff]
      %v369 = vld [vmem:[%s266 + $0x98] sm:$0xff]
      %v370 = vld [vmem:[%s266 + $0xa0] sm:$0xff]
      %v371 = vld [vmem:[%s266 + $0xa8] sm:$0xff]
      %v372 = vld [vmem:[%s266 + $0xb0] sm:$0xff]
      %v373 = vld [vmem:[%s266 + $0xb8] sm:$0xff]
      %v374 = vld [vmem:[%s266 + $0xc0] sm:$0xff]
      %v375 = vld [vmem:[%s266 + $0xc8] sm:$0xff]
      %v376 = vld [vmem:[%s266 + $0xd0] sm:$0xff]
      %v377 = vld [vmem:[%s266 + $0xd8] sm:$0xff]
      %v378 = vld [vmem:[%s266 + $0xe0] sm:$0xff]
      %v379 = vld [vmem:[%s266 + $0xe8] sm:$0xff]
      %v380 = vld [vmem:[%s266 + $0xf0] sm:$0xff]
      %v381 = vld [vmem:[%s266 + $0xf8] sm:$0xff]
      %v382 = vld [vmem:[%s266 + $0x100] sm:$0xff]
      %v383 = vld [vmem:[%s266 + $0x108] sm:$0xff]
      %v384 = vld [vmem:[%s266 + $0x110] sm:$0xff]
      %v385 = vld [vmem:[%s266 + $0x118] sm:$0xff]
      %v386 = vld [vmem:[%s266 + $0x120] sm:$0xff]
      %v387 = vld [vmem:[%s266 + $0x128] sm:$0xff]
      %v388 = vld [vmem:[%s266 + $0x130] sm:$0xff]
      %v389 = vld [vmem:[%s266 + $0x138] sm:$0xff]
      %v390 = vld [vmem:[%s266 + $0x140] sm:$0xff]
      %v391 = vld [vmem:[%s266 + $0x148] sm:$0xff]
      %v392 = vld [vmem:[%s266 + $0x150] sm:$0xff]
      %v393 = vld [vmem:[%s266 + $0x158] sm:$0xff]
      %v394 = vld [vmem:[%s266 + $0x160] sm:$0xff]
      %v395 = vld [vmem:[%s266 + $0x168] sm:$0xff]
      %v396 = vld [vmem:[%s266 + $0x170] sm:$0xff]
      %v397 = vld [vmem:[%s266 + $0x178] sm:$0xff]
      %v398 = vld [vmem:[%s266 + $0x180] sm:$0xff]
      %v399 = vld [vmem:[%s266 + $0x188] sm:$0xff]
      %v400 = vld [vmem:[%s266 + $0x190] sm:$0xff]
      %v401 = vld [vmem:[%s266 + $0x198] sm:$0xff]
      %v402 = vld [vmem:[%s266 + $0x1a0] sm:$0xff]
      %v403 = vld [vmem:[%s266 + $0x1a8] sm:$0xff]
      %v404 = vld [vmem:[%s266 + $0x1b0] sm:$0xff]
      %v405 = vld [vmem:[%s266 + $0x1b8] sm:$0xff]
      %v406 = vld [vmem:[%s266 + $0x1c0] sm:$0xff]
      %v407 = vld [vmem:[%s266 + $0x1c8] sm:$0xff]
      %v408 = vld [vmem:[%s266 + $0x1d0] sm:$0xff]
      %v409 = vld [vmem:[%s266 + $0x1d8] sm:$0xff]
      %v410 = vld [vmem:[%s266 + $0x1e0] sm:$0xff]
      %v411 = vld [vmem:[%s266 + $0x1e8] sm:$0xff]
      %v412 = vld [vmem:[%s266 + $0x1f0] sm:$0xff]
      %v413 = vld [vmem:[%s266 + $0x1f8] sm:$0xff]
      %v414 = vld [vmem:[%s273] sm:$0xf]
      %v415 = vld [vmem:[%s273 + $0x4] sm:$0xf]
      %v416 = vld [vmem:[%s273 + $0x8] sm:$0xf]
      %v417 = vld [vmem:[%s273 + $0xc] sm:$0xf]
      %v418 = vld [vmem:[%s273 + $0x10] sm:$0xf]
      %v419 = vld [vmem:[%s273 + $0x14] sm:$0xf]
      %v420 = vld [vmem:[%s273 + $0x18] sm:$0xf]
      %v421 = vld [vmem:[%s273 + $0x1c] sm:$0xf]
      %v422 = vld [vmem:[%s273 + $0x20] sm:$0xf]
      %v423 = vld [vmem:[%s273 + $0x24] sm:$0xf]
      %v424 = vld [vmem:[%s273 + $0x28] sm:$0xf]
      %v425 = vld [vmem:[%s273 + $0x2c] sm:$0xf]
      %v426 = vld [vmem:[%s273 + $0x30] sm:$0xf]
      %v427 = vld [vmem:[%s273 + $0x34] sm:$0xf]
      %v428 = vld [vmem:[%s273 + $0x38] sm:$0xf]
      %v429 = vld [vmem:[%s273 + $0x3c] sm:$0xf]
      %v430 = vld [vmem:[%s273 + $0x40] sm:$0xf]
      %v431 = vld [vmem:[%s273 + $0x44] sm:$0xf]
      %v432 = vld [vmem:[%s273 + $0x48] sm:$0xf]
      %v433 = vld [vmem:[%s273 + $0x4c] sm:$0xf]
      %v434 = vld [vmem:[%s273 + $0x50] sm:$0xf]
      %v435 = vld [vmem:[%s273 + $0x54] sm:$0xf]
      %v436 = vld [vmem:[%s273 + $0x58] sm:$0xf]
      %v437 = vld [vmem:[%s273 + $0x5c] sm:$0xf]
      %v438 = vld [vmem:[%s273 + $0x60] sm:$0xf]
      %v439 = vld [vmem:[%s273 + $0x64] sm:$0xf]
      %v440 = vld [vmem:[%s273 + $0x68] sm:$0xf]
      %v441 = vld [vmem:[%s273 + $0x6c] sm:$0xf]
      %v442 = vld [vmem:[%s273 + $0x70] sm:$0xf]
      %v443 = vld [vmem:[%s273 + $0x74] sm:$0xf]
      %v444 = vld [vmem:[%s273 + $0x78] sm:$0xf]
      %v445 = vld [vmem:[%s273 + $0x7c] sm:$0xf]
      %v446 = vld [vmem:[%s273 + $0x80] sm:$0xf]
      %v447 = vld [vmem:[%s273 + $0x84] sm:$0xf]
      %v448 = vld [vmem:[%s273 + $0x88] sm:$0xf]
      %v449 = vld [vmem:[%s273 + $0x8c] sm:$0xf]
      %v450 = vld [vmem:[%s273 + $0x90] sm:$0xf]
      %v451 = vld [vmem:[%s273 + $0x94] sm:$0xf]
      %v452 = vld [vmem:[%s273 + $0x98] sm:$0xf]
      %v453 = vld [vmem:[%s273 + $0x9c] sm:$0xf]
      %v454 = vld [vmem:[%s273 + $0xa0] sm:$0xf]
      %v455 = vld [vmem:[%s273 + $0xa4] sm:$0xf]
      %v456 = vld [vmem:[%s273 + $0xa8] sm:$0xf]
      %v457 = vld [vmem:[%s273 + $0xac] sm:$0xf]
      %v458 = vld [vmem:[%s273 + $0xb0] sm:$0xf]
      %v459 = vld [vmem:[%s273 + $0xb4] sm:$0xf]
      %v460 = vld [vmem:[%s273 + $0xb8] sm:$0xf]
      %v461 = vld [vmem:[%s273 + $0xbc] sm:$0xf]
      %v462 = vld [vmem:[%s273 + $0xc0] sm:$0xf]
      %v463 = vld [vmem:[%s273 + $0xc4] sm:$0xf]
      %v464 = vld [vmem:[%s273 + $0xc8] sm:$0xf]
      %v465 = vld [vmem:[%s273 + $0xcc] sm:$0xf]
      %v466 = vld [vmem:[%s273 + $0xd0] sm:$0xf]
      %v467 = vld [vmem:[%s273 + $0xd4] sm:$0xf]
      %v468 = vld [vmem:[%s273 + $0xd8] sm:$0xf]
      %v469 = vld [vmem:[%s273 + $0xdc] sm:$0xf]
      %v470 = vld [vmem:[%s273 + $0xe0] sm:$0xf]
      %v471 = vld [vmem:[%s273 + $0xe4] sm:$0xf]
      %v472 = vld [vmem:[%s273 + $0xe8] sm:$0xf]
      %v473 = vld [vmem:[%s273 + $0xec] sm:$0xf]
      %v474 = vld [vmem:[%s273 + $0xf0] sm:$0xf]
      %v475 = vld [vmem:[%s273 + $0xf4] sm:$0xf]
      %v476 = vld [vmem:[%s273 + $0xf8] sm:$0xf]
      %v477 = vld [vmem:[%s273 + $0xfc] sm:$0xf]
      %v542 = vunpack.c.l.b16 %v350
      %v543 = vunpack.c.h.b16 %v350
      %v544 = vunpack.c.l.b16 %v351
      %v545 = vunpack.c.h.b16 %v351
      %v546 = vunpack.c.l.b16 %v352
      %v547 = vunpack.c.h.b16 %v352
      %v548 = vunpack.c.l.b16 %v353
      %v549 = vunpack.c.h.b16 %v353
      %v550 = vunpack.c.l.b16 %v354
      %v551 = vunpack.c.h.b16 %v354
      %v552 = vunpack.c.l.b16 %v355
      %v553 = vunpack.c.h.b16 %v355
      %v554 = vunpack.c.l.b16 %v356
      %v555 = vunpack.c.h.b16 %v356
      %v556 = vunpack.c.l.b16 %v357
      %v557 = vunpack.c.h.b16 %v357
      %v558 = vunpack.c.l.b16 %v358
      %v559 = vunpack.c.h.b16 %v358
      %v560 = vunpack.c.l.b16 %v359
      %v561 = vunpack.c.h.b16 %v359
      %v562 = vunpack.c.l.b16 %v360
      %v563 = vunpack.c.h.b16 %v360
      %v564 = vunpack.c.l.b16 %v361
      %v565 = vunpack.c.h.b16 %v361
      %v566 = vunpack.c.l.b16 %v362
      %v567 = vunpack.c.h.b16 %v362
      %v568 = vunpack.c.l.b16 %v363
      %v569 = vunpack.c.h.b16 %v363
      %v570 = vunpack.c.l.b16 %v364
      %v571 = vunpack.c.h.b16 %v364
      %v572 = vunpack.c.l.b16 %v365
      %v573 = vunpack.c.h.b16 %v365
      %v574 = vunpack.c.l.b16 %v366
      %v575 = vunpack.c.h.b16 %v366
      %v576 = vunpack.c.l.b16 %v367
      %v577 = vunpack.c.h.b16 %v367
      %v578 = vunpack.c.l.b16 %v368
      %v579 = vunpack.c.h.b16 %v368
      %v580 = vunpack.c.l.b16 %v369
      %v581 = vunpack.c.h.b16 %v369
      %v582 = vunpack.c.l.b16 %v370
      %v583 = vunpack.c.h.b16 %v370
      %v584 = vunpack.c.l.b16 %v371
      %v585 = vunpack.c.h.b16 %v371
      %v586 = vunpack.c.l.b16 %v372
      %v587 = vunpack.c.h.b16 %v372
      %v588 = vunpack.c.l.b16 %v373
      %v589 = vunpack.c.h.b16 %v373
      %v590 = vunpack.c.l.b16 %v374
      %v591 = vunpack.c.h.b16 %v374
      %v592 = vunpack.c.l.b16 %v375
      %v593 = vunpack.c.h.b16 %v375
      %v594 = vunpack.c.l.b16 %v376
      %v595 = vunpack.c.h.b16 %v376
      %v596 = vunpack.c.l.b16 %v377
      %v597 = vunpack.c.h.b16 %v377
      %v598 = vunpack.c.l.b16 %v378
      %v599 = vunpack.c.h.b16 %v378
      %v600 = vunpack.c.l.b16 %v379
      %v601 = vunpack.c.h.b16 %v379
      %v602 = vunpack.c.l.b16 %v380
      %v603 = vunpack.c.h.b16 %v380
      %v604 = vunpack.c.l.b16 %v381
      %v605 = vunpack.c.h.b16 %v381
      %v606 = vunpack.c.l.b16 %v382
      %v607 = vunpack.c.h.b16 %v382
      %v608 = vunpack.c.l.b16 %v383
      %v609 = vunpack.c.h.b16 %v383
      %v610 = vunpack.c.l.b16 %v384
      %v611 = vunpack.c.h.b16 %v384
      %v612 = vunpack.c.l.b16 %v385
      %v613 = vunpack.c.h.b16 %v385
      %v614 = vunpack.c.l.b16 %v386
      %v615 = vunpack.c.h.b16 %v386
      %v616 = vunpack.c.l.b16 %v387
      %v617 = vunpack.c.h.b16 %v387
      %v618 = vunpack.c.l.b16 %v388
      %v619 = vunpack.c.h.b16 %v388
      %v620 = vunpack.c.l.b16 %v389
      %v621 = vunpack.c.h.b16 %v389
      %v622 = vunpack.c.l.b16 %v390
      %v623 = vunpack.c.h.b16 %v390
      %v624 = vunpack.c.l.b16 %v391
      %v625 = vunpack.c.h.b16 %v391
      %v626 = vunpack.c.l.b16 %v392
      %v627 = vunpack.c.h.b16 %v392
      %v628 = vunpack.c.l.b16 %v393
      %v629 = vunpack.c.h.b16 %v393
      %v630 = vunpack.c.l.b16 %v394
      %v631 = vunpack.c.h.b16 %v394
      %v632 = vunpack.c.l.b16 %v395
      %v633 = vunpack.c.h.b16 %v395
      %v634 = vunpack.c.l.b16 %v396
      %v635 = vunpack.c.h.b16 %v396
      %v636 = vunpack.c.l.b16 %v397
      %v637 = vunpack.c.h.b16 %v397
      %v638 = vunpack.c.l.b16 %v398
      %v639 = vunpack.c.h.b16 %v398
      %v640 = vunpack.c.l.b16 %v399
      %v641 = vunpack.c.h.b16 %v399
      %v642 = vunpack.c.l.b16 %v400
      %v643 = vunpack.c.h.b16 %v400
      %v644 = vunpack.c.l.b16 %v401
      %v645 = vunpack.c.h.b16 %v401
      %v646 = vunpack.c.l.b16 %v402
      %v647 = vunpack.c.h.b16 %v402
      %v648 = vunpack.c.l.b16 %v403
      %v649 = vunpack.c.h.b16 %v403
      %v650 = vunpack.c.l.b16 %v404
      %v651 = vunpack.c.h.b16 %v404
      %v652 = vunpack.c.l.b16 %v405
      %v653 = vunpack.c.h.b16 %v405
      %v654 = vunpack.c.l.b16 %v406
      %v655 = vunpack.c.h.b16 %v406
      %v656 = vunpack.c.l.b16 %v407
      %v657 = vunpack.c.h.b16 %v407
      %v658 = vunpack.c.l.b16 %v408
      %v659 = vunpack.c.h.b16 %v408
      %v660 = vunpack.c.l.b16 %v409
      %v661 = vunpack.c.h.b16 %v409
      %v662 = vunpack.c.l.b16 %v410
      %v663 = vunpack.c.h.b16 %v410
      %v664 = vunpack.c.l.b16 %v411
      %v665 = vunpack.c.h.b16 %v411
      %v666 = vunpack.c.l.b16 %v412
      %v667 = vunpack.c.h.b16 %v412
      %v668 = vunpack.c.l.b16 %v413
      %v669 = vunpack.c.h.b16 %v413
      %v670 = vpack.c.b16 %v546, %v542
      %v671 = vpack.c.b16 %v547, %v543
      %v672 = vpack.c.b16 %v548, %v544
      %v673 = vpack.c.b16 %v549, %v545
      %v674 = vpack.c.b16 %v554, %v550
      %v675 = vpack.c.b16 %v555, %v551
      %v676 = vpack.c.b16 %v556, %v552
      %v677 = vpack.c.b16 %v557, %v553
      %v678 = vpack.c.b16 %v562, %v558
      %v679 = vpack.c.b16 %v563, %v559
      %v680 = vpack.c.b16 %v564, %v560
      %v681 = vpack.c.b16 %v565, %v561
      %v682 = vpack.c.b16 %v570, %v566
      %v683 = vpack.c.b16 %v571, %v567
      %v684 = vpack.c.b16 %v572, %v568
      %v685 = vpack.c.b16 %v573, %v569
      %v686 = vpack.c.b16 %v578, %v574
      %v687 = vpack.c.b16 %v579, %v575
      %v688 = vpack.c.b16 %v580, %v576
      %v689 = vpack.c.b16 %v581, %v577
      %v690 = vpack.c.b16 %v586, %v582
      %v691 = vpack.c.b16 %v587, %v583
      %v692 = vpack.c.b16 %v588, %v584
      %v693 = vpack.c.b16 %v589, %v585
      %v694 = vpack.c.b16 %v594, %v590
      %v695 = vpack.c.b16 %v595, %v591
      %v696 = vpack.c.b16 %v596, %v592
      %v697 = vpack.c.b16 %v597, %v593
      %v698 = vpack.c.b16 %v602, %v598
      %v699 = vpack.c.b16 %v603, %v599
      %v700 = vpack.c.b16 %v604, %v600
      %v701 = vpack.c.b16 %v605, %v601
      %v702 = vpack.c.b16 %v610, %v606
      %v703 = vpack.c.b16 %v611, %v607
      %v704 = vpack.c.b16 %v612, %v608
      %v705 = vpack.c.b16 %v613, %v609
      %v706 = vpack.c.b16 %v618, %v614
      %v707 = vpack.c.b16 %v619, %v615
      %v708 = vpack.c.b16 %v620, %v616
      %v709 = vpack.c.b16 %v621, %v617
      %v710 = vpack.c.b16 %v626, %v622
      %v711 = vpack.c.b16 %v627, %v623
      %v712 = vpack.c.b16 %v628, %v624
      %v713 = vpack.c.b16 %v629, %v625
      %v714 = vpack.c.b16 %v634, %v630
      %v715 = vpack.c.b16 %v635, %v631
      %v716 = vpack.c.b16 %v636, %v632
      %v717 = vpack.c.b16 %v637, %v633
      %v718 = vpack.c.b16 %v642, %v638
      %v719 = vpack.c.b16 %v643, %v639
      %v720 = vpack.c.b16 %v644, %v640
      %v721 = vpack.c.b16 %v645, %v641
      %v722 = vpack.c.b16 %v650, %v646
      %v723 = vpack.c.b16 %v651, %v647
      %v724 = vpack.c.b16 %v652, %v648
      %v725 = vpack.c.b16 %v653, %v649
      %v726 = vpack.c.b16 %v658, %v654
      %v727 = vpack.c.b16 %v659, %v655
      %v728 = vpack.c.b16 %v660, %v656
      %v729 = vpack.c.b16 %v661, %v657
      %v730 = vpack.c.b16 %v666, %v662
      %v731 = vpack.c.b16 %v667, %v663
      %v732 = vpack.c.b16 %v668, %v664
      %v733 = vpack.c.b16 %v669, %v665
      %v862 = vunpack.c.l.b16 %v414
      %v863 = vunpack.c.l.b16 %v415
      %v864 = vunpack.c.l.b16 %v416
      %v865 = vunpack.c.l.b16 %v417
      %v866 = vunpack.c.l.b16 %v418
      %v867 = vunpack.c.l.b16 %v419
      %v868 = vunpack.c.l.b16 %v420
      %v869 = vunpack.c.l.b16 %v421
      %v870 = vunpack.c.l.b16 %v422
      %v871 = vunpack.c.l.b16 %v423
      %v872 = vunpack.c.l.b16 %v424
      %v873 = vunpack.c.l.b16 %v425
      %v874 = vunpack.c.l.b16 %v426
      %v875 = vunpack.c.l.b16 %v427
      %v876 = vunpack.c.l.b16 %v428
      %v877 = vunpack.c.l.b16 %v429
      %v878 = vunpack.c.l.b16 %v430
      %v879 = vunpack.c.l.b16 %v431
      %v880 = vunpack.c.l.b16 %v432
      %v881 = vunpack.c.l.b16 %v433
      %v882 = vunpack.c.l.b16 %v434
      %v883 = vunpack.c.l.b16 %v435
      %v884 = vunpack.c.l.b16 %v436
      %v885 = vunpack.c.l.b16 %v437
      %v886 = vunpack.c.l.b16 %v438
      %v887 = vunpack.c.l.b16 %v439
      %v888 = vunpack.c.l.b16 %v440
      %v889 = vunpack.c.l.b16 %v441
      %v890 = vunpack.c.l.b16 %v442
      %v891 = vunpack.c.l.b16 %v443
      %v892 = vunpack.c.l.b16 %v444
      %v893 = vunpack.c.l.b16 %v445
      %v894 = vunpack.c.l.b16 %v446
      %v895 = vunpack.c.l.b16 %v447
      %v896 = vunpack.c.l.b16 %v448
      %v897 = vunpack.c.l.b16 %v449
      %v898 = vunpack.c.l.b16 %v450
      %v899 = vunpack.c.l.b16 %v451
      %v900 = vunpack.c.l.b16 %v452
      %v901 = vunpack.c.l.b16 %v453
      %v902 = vunpack.c.l.b16 %v454
      %v903 = vunpack.c.l.b16 %v455
      %v904 = vunpack.c.l.b16 %v456
      %v905 = vunpack.c.l.b16 %v457
      %v906 = vunpack.c.l.b16 %v458
      %v907 = vunpack.c.l.b16 %v459
      %v908 = vunpack.c.l.b16 %v460
      %v909 = vunpack.c.l.b16 %v461
      %v910 = vunpack.c.l.b16 %v462
      %v911 = vunpack.c.l.b16 %v463
      %v912 = vunpack.c.l.b16 %v464
      %v913 = vunpack.c.l.b16 %v465
      %v914 = vunpack.c.l.b16 %v466
      %v915 = vunpack.c.l.b16 %v467
      %v916 = vunpack.c.l.b16 %v468
      %v917 = vunpack.c.l.b16 %v469
      %v918 = vunpack.c.l.b16 %v470
      %v919 = vunpack.c.l.b16 %v471
      %v920 = vunpack.c.l.b16 %v472
      %v921 = vunpack.c.l.b16 %v473
      %v922 = vunpack.c.l.b16 %v474
      %v923 = vunpack.c.l.b16 %v475
      %v924 = vunpack.c.l.b16 %v476
      %v925 = vunpack.c.l.b16 %v477
      %v926 = vpack.c.b16 %v863, %v862
      %v927 = vpack.c.b16 %v865, %v864
      %v928 = vpack.c.b16 %v867, %v866
      %v929 = vpack.c.b16 %v869, %v868
      %v930 = vpack.c.b16 %v871, %v870
      %v931 = vpack.c.b16 %v873, %v872
      %v932 = vpack.c.b16 %v875, %v874
      %v933 = vpack.c.b16 %v877, %v876
      %v934 = vpack.c.b16 %v879, %v878
      %v935 = vpack.c.b16 %v881, %v880
      %v936 = vpack.c.b16 %v883, %v882
      %v937 = vpack.c.b16 %v885, %v884
      %v938 = vpack.c.b16 %v887, %v886
      %v939 = vpack.c.b16 %v889, %v888
      %v940 = vpack.c.b16 %v891, %v890
      %v941 = vpack.c.b16 %v893, %v892
      %v942 = vpack.c.b16 %v895, %v894
      %v943 = vpack.c.b16 %v897, %v896
      %v944 = vpack.c.b16 %v899, %v898
      %v945 = vpack.c.b16 %v901, %v900
      %v946 = vpack.c.b16 %v903, %v902
      %v947 = vpack.c.b16 %v905, %v904
      %v948 = vpack.c.b16 %v907, %v906
      %v949 = vpack.c.b16 %v909, %v908
      %v950 = vpack.c.b16 %v911, %v910
      %v951 = vpack.c.b16 %v913, %v912
      %v952 = vpack.c.b16 %v915, %v914
      %v953 = vpack.c.b16 %v917, %v916
      %v954 = vpack.c.b16 %v919, %v918
      %v955 = vpack.c.b16 %v921, %v920
      %v956 = vpack.c.b16 %v923, %v922
      %v957 = vpack.c.b16 %v925, %v924
      %990 = vmatprep.subr.bf16.mxu0 0
      %991 = vmatpush1.bf16.msra.mxu0 %v926
      %992 = vmatprep.subr.bf16.mxu0 0
      %993 = vmatpush1.bf16.msra.mxu0 %v927
      %994 = vmatprep.subr.bf16.mxu0 0
      %995 = vmatpush1.bf16.msra.mxu0 %v928
      %996 = vmatprep.subr.bf16.mxu0 0
      %997 = vmatpush1.bf16.msra.mxu0 %v929
      %998 = vmatprep.subr.bf16.mxu0 0
      %999 = vmatpush1.bf16.msra.mxu0 %v930
      %1000 = vmatprep.subr.bf16.mxu0 0
      %1001 = vmatpush1.bf16.msra.mxu0 %v931
      %1002 = vmatprep.subr.bf16.mxu0 0
      %1003 = vmatpush1.bf16.msra.mxu0 %v932
      %1004 = vmatprep.subr.bf16.mxu0 0
      %1005 = vmatpush1.bf16.msra.mxu0 %v933
      %1006 = vmatprep.subr.bf16.mxu0 0
      %1007 = vmatpush1.bf16.msra.mxu0 %v934
      %1008 = vmatprep.subr.bf16.mxu0 0
      %1009 = vmatpush1.bf16.msra.mxu0 %v935
      %1010 = vmatprep.subr.bf16.mxu0 0
      %1011 = vmatpush1.bf16.msra.mxu0 %v936
      %1012 = vmatprep.subr.bf16.mxu0 0
      %1013 = vmatpush1.bf16.msra.mxu0 %v937
      %1014 = vmatprep.subr.bf16.mxu0 0
      %1015 = vmatpush1.bf16.msra.mxu0 %v938
      %1016 = vmatprep.subr.bf16.mxu0 0
      %1017 = vmatpush1.bf16.msra.mxu0 %v939
      %1018 = vmatprep.subr.bf16.mxu0 0
      %1019 = vmatpush1.bf16.msra.mxu0 %v940
      %1020 = vmatprep.subr.bf16.mxu0 0
      %1021 = vmatpush1.bf16.msra.mxu0 %v941
      %1022 = vmatprep.mubr.bf16.mxu0 %v671
      %1023 = vmatmul.mubr.bf16.gmra.mrb[0].mxu0 %v670
      %v1024 = vpop.f32.mrb[0].mxu0
      %v1025 = vadd.f32 0.0, %v1024
      %v1026 = vpop.f32.mrb[0].mxu0
      %v1027 = vpop.f32.mrb[0].mxu0
      %v1028 = vadd.f32 0.0, %v1027
      %v1029 = vpop.f32.mrb[0].mxu0
      %1030 = vmatprep.mubr.bf16.mxu0 %v675
      %1031 = vmatmul.mubr.bf16.gmra.mrb[0].mxu0 %v674
      %v1032 = vpop.f32.mrb[0].mxu0
      %v1033 = vadd.f32 0.0, %v1032
      %v1034 = vpop.f32.mrb[0].mxu0
      %v1035 = vpop.f32.mrb[0].mxu0
      %v1036 = vadd.f32 0.0, %v1035
      %v1037 = vpop.f32.mrb[0].mxu0
      %1038 = vmatprep.mubr.bf16.mxu0 %v679
      %1039 = vmatmul.mubr.bf16.gmra.mrb[0].mxu0 %v678
      %v1040 = vpop.f32.mrb[0].mxu0
      %v1041 = vadd.f32 0.0, %v1040
      %v1042 = vpop.f32.mrb[0].mxu0
      %v1043 = vpop.f32.mrb[0].mxu0
      %v1044 = vadd.f32 0.0, %v1043
      %v1045 = vpop.f32.mrb[0].mxu0
      %1046 = vmatprep.mubr.bf16.mxu0 %v683
      %1047 = vmatmul.mubr.bf16.gmra.mrb[0].mxu0 %v682
      %v1048 = vpop.f32.mrb[0].mxu0
      %v1049 = vadd.f32 0.0, %v1048
      %v1050 = vpop.f32.mrb[0].mxu0
      %v1051 = vpop.f32.mrb[0].mxu0
      %v1052 = vadd.f32 0.0, %v1051
      %v1053 = vpop.f32.mrb[0].mxu0
      %1054 = vmatprep.mubr.bf16.mxu0 %v687
      %1055 = vmatmul.mubr.bf16.gmra.mrb[0].mxu0 %v686
      %v1056 = vpop.f32.mrb[0].mxu0
      %v1057 = vadd.f32 0.0, %v1056
      %v1058 = vpop.f32.mrb[0].mxu0
      %v1059 = vpop.f32.mrb[0].mxu0
      %v1060 = vadd.f32 0.0, %v1059
      %v1061 = vpop.f32.mrb[0].mxu0
      %1062 = vmatprep.mubr.bf16.mxu0 %v691
      %1063 = vmatmul.mubr.bf16.gmra.mrb[0].mxu0 %v690
      %v1064 = vpop.f32.mrb[0].mxu0
      %v1065 = vadd.f32 0.0, %v1064
      %v1066 = vpop.f32.mrb[0].mxu0
      %v1067 = vpop.f32.mrb[0].mxu0
      %v1068 = vadd.f32 0.0, %v1067
      %v1069 = vpop.f32.mrb[0].mxu0
      %1070 = vmatprep.mubr.bf16.mxu0 %v695
      %1071 = vmatmul.mubr.bf16.gmra.mrb[0].mxu0 %v694
      %v1072 = vpop.f32.mrb[0].mxu0
      %v1073 = vadd.f32 0.0, %v1072
      %v1074 = vpop.f32.mrb[0].mxu0
      %v1075 = vpop.f32.mrb[0].mxu0
      %v1076 = vadd.f32 0.0, %v1075
      %v1077 = vpop.f32.mrb[0].mxu0
      %1078 = vmatprep.mubr.bf16.mxu0 %v699
      %1079 = vmatmul.mubr.bf16.gmra.mrb[0].mxu0 %v698
      %v1080 = vpop.f32.mrb[0].mxu0
      %v1081 = vadd.f32 0.0, %v1080
      %v1082 = vpop.f32.mrb[0].mxu0
      %v1083 = vpop.f32.mrb[0].mxu0
      %v1084 = vadd.f32 0.0, %v1083
      %v1085 = vpop.f32.mrb[0].mxu0
      %1086 = vmatprep.mubr.bf16.mxu0 %v703
      %1087 = vmatmul.mubr.bf16.gmra.mrb[0].mxu0 %v702
      %v1088 = vpop.f32.mrb[0].mxu0
      %v1089 = vadd.f32 0.0, %v1088
      %v1090 = vpop.f32.mrb[0].mxu0
      %v1091 = vpop.f32.mrb[0].mxu0
      %v1092 = vadd.f32 0.0, %v1091
      %v1093 = vpop.f32.mrb[0].mxu0
      %1094 = vmatprep.mubr.bf16.mxu0 %v707
      %1095 = vmatmul.mubr.bf16.gmra.mrb[0].mxu0 %v706
      %v1096 = vpop.f32.mrb[0].mxu0
      %v1097 = vadd.f32 0.0, %v1096
      %v1098 = vpop.f32.mrb[0].mxu0
      %v1099 = vpop.f32.mrb[0].mxu0
      %v1100 = vadd.f32 0.0, %v1099
      %v1101 = vpop.f32.mrb[0].mxu0
      %1102 = vmatprep.mubr.bf16.mxu0 %v711
      %1103 = vmatmul.mubr.bf16.gmra.mrb[0].mxu0 %v710
      %v1104 = vpop.f32.mrb[0].mxu0
      %v1105 = vadd.f32 0.0, %v1104
      %v1106 = vpop.f32.mrb[0].mxu0
      %v1107 = vpop.f32.mrb[0].mxu0
      %v1108 = vadd.f32 0.0, %v1107
      %v1109 = vpop.f32.mrb[0].mxu0
      %1110 = vmatprep.mubr.bf16.mxu0 %v715
      %1111 = vmatmul.mubr.bf16.gmra.mrb[0].mxu0 %v714
      %v1112 = vpop.f32.mrb[0].mxu0
      %v1113 = vadd.f32 0.0, %v1112
      %v1114 = vpop.f32.mrb[0].mxu0
      %v1115 = vpop.f32.mrb[0].mxu0
      %v1116 = vadd.f32 0.0, %v1115
      %v1117 = vpop.f32.mrb[0].mxu0
      %1118 = vmatprep.mubr.bf16.mxu0 %v719
      %1119 = vmatmul.mubr.bf16.gmra.mrb[0].mxu0 %v718
      %v1120 = vpop.f32.mrb[0].mxu0
      %v1121 = vadd.f32 0.0, %v1120
      %v1122 = vpop.f32.mrb[0].mxu0
      %v1123 = vpop.f32.mrb[0].mxu0
      %v1124 = vadd.f32 0.0, %v1123
      %v1125 = vpop.f32.mrb[0].mxu0
      %1126 = vmatprep.mubr.bf16.mxu0 %v723
      %1127 = vmatmul.mubr.bf16.gmra.mrb[0].mxu0 %v722
      %v1128 = vpop.f32.mrb[0].mxu0
      %v1129 = vadd.f32 0.0, %v1128
      %v1130 = vpop.f32.mrb[0].mxu0
      %v1131 = vpop.f32.mrb[0].mxu0
      %v1132 = vadd.f32 0.0, %v1131
      %v1133 = vpop.f32.mrb[0].mxu0
      %1134 = vmatprep.mubr.bf16.mxu0 %v727
      %1135 = vmatmul.mubr.bf16.gmra.mrb[0].mxu0 %v726
      %v1136 = vpop.f32.mrb[0].mxu0
      %v1137 = vadd.f32 0.0, %v1136
      %v1138 = vpop.f32.mrb[0].mxu0
      %v1139 = vpop.f32.mrb[0].mxu0
      %v1140 = vadd.f32 0.0, %v1139
      %v1141 = vpop.f32.mrb[0].mxu0
      %1142 = vmatprep.mubr.bf16.mxu0 %v731
      %1143 = vmatmul.mubr.bf16.gmra.mrb[0].mxu0 %v730
      %v1144 = vpop.f32.mrb[0].mxu0
      %v1145 = vadd.f32 0.0, %v1144
      %v1146 = vpop.f32.mrb[0].mxu0
      %v1147 = vpop.f32.mrb[0].mxu0
      %v1148 = vadd.f32 0.0, %v1147
      %v1149 = vpop.f32.mrb[0].mxu0
      %1150 = vdwg.mxu0
      %1151 = vmatprep.subr.bf16.mxu0 0
      %1152 = vmatpush1.bf16.msra.mxu0 %v942
      %1153 = vmatprep.subr.bf16.mxu0 0
      %1154 = vmatpush1.bf16.msra.mxu0 %v943
      %1155 = vmatprep.subr.bf16.mxu0 0
      %1156 = vmatpush1.bf16.msra.mxu0 %v944
      %1157 = vmatprep.subr.bf16.mxu0 0
      %1158 = vmatpush1.bf16.msra.mxu0 %v945
      %1159 = vmatprep.subr.bf16.mxu0 0
      %1160 = vmatpush1.bf16.msra.mxu0 %v946
      %1161 = vmatprep.subr.bf16.mxu0 0
      %1162 = vmatpush1.bf16.msra.mxu0 %v947
      %1163 = vmatprep.subr.bf16.mxu0 0
      %1164 = vmatpush1.bf16.msra.mxu0 %v948
      %1165 = vmatprep.subr.bf16.mxu0 0
      %1166 = vmatpush1.bf16.msra.mxu0 %v949
      %1167 = vmatprep.subr.bf16.mxu0 0
      %1168 = vmatpush1.bf16.msra.mxu0 %v950
      %1169 = vmatprep.subr.bf16.mxu0 0
      %1170 = vmatpush1.bf16.msra.mxu0 %v951
      %1171 = vmatprep.subr.bf16.mxu0 0
      %1172 = vmatpush1.bf16.msra.mxu0 %v952
      %1173 = vmatprep.subr.bf16.mxu0 0
      %1174 = vmatpush1.bf16.msra.mxu0 %v953
      %1175 = vmatprep.subr.bf16.mxu0 0
      %1176 = vmatpush1.bf16.msra.mxu0 %v954
      %1177 = vmatprep.subr.bf16.mxu0 0
      %1178 = vmatpush1.bf16.msra.mxu0 %v955
      %1179 = vmatprep.subr.bf16.mxu0 0
      %1180 = vmatpush1.bf16.msra.mxu0 %v956
      %1181 = vmatprep.subr.bf16.mxu0 0
      %1182 = vmatpush1.bf16.msra.mxu0 %v957
      %1183 = vmatprep.mubr.bf16.mxu0 %v673
      %1184 = vmatmul.mubr.bf16.gmra.mrb[0].mxu0 %v672
      %v1185 = vpop.f32.mrb[0].mxu0
      %v1186 = vadd.f32 %v1025, %v1185
      %v1187 = vpop.f32.mrb[0].mxu0
      %v1188 = vpop.f32.mrb[0].mxu0
      %v1189 = vadd.f32 %v1028, %v1188
      %v1190 = vpop.f32.mrb[0].mxu0
      %1191 = vmatprep.mubr.bf16.mxu0 %v677
      %1192 = vmatmul.mubr.bf16.gmra.mrb[0].mxu0 %v676
      %v1193 = vpop.f32.mrb[0].mxu0
      %v1194 = vadd.f32 %v1033, %v1193
      %v1195 = vpop.f32.mrb[0].mxu0
      %v1196 = vpop.f32.mrb[0].mxu0
      %v1197 = vadd.f32 %v1036, %v1196
      %v1198 = vpop.f32.mrb[0].mxu0
      %1199 = vmatprep.mubr.bf16.mxu0 %v681
      %1200 = vmatmul.mubr.bf16.gmra.mrb[0].mxu0 %v680
      %v1201 = vpop.f32.mrb[0].mxu0
      %v1202 = vadd.f32 %v1041, %v1201
      %v1203 = vpop.f32.mrb[0].mxu0
      %v1204 = vpop.f32.mrb[0].mxu0
      %v1205 = vadd.f32 %v1044, %v1204
      %v1206 = vpop.f32.mrb[0].mxu0
      %1207 = vmatprep.mubr.bf16.mxu0 %v685
      %1208 = vmatmul.mubr.bf16.gmra.mrb[0].mxu0 %v684
      %v1209 = vpop.f32.mrb[0].mxu0
      %v1210 = vadd.f32 %v1049, %v1209
      %v1211 = vpop.f32.mrb[0].mxu0
      %v1212 = vpop.f32.mrb[0].mxu0
      %v1213 = vadd.f32 %v1052, %v1212
      %v1214 = vpop.f32.mrb[0].mxu0
      %1215 = vmatprep.mubr.bf16.mxu0 %v689
      %1216 = vmatmul.mubr.bf16.gmra.mrb[0].mxu0 %v688
      %v1217 = vpop.f32.mrb[0].mxu0
      %v1218 = vadd.f32 %v1057, %v1217
      %v1219 = vpop.f32.mrb[0].mxu0
      %v1220 = vpop.f32.mrb[0].mxu0
      %v1221 = vadd.f32 %v1060, %v1220
      %v1222 = vpop.f32.mrb[0].mxu0
      %1223 = vmatprep.mubr.bf16.mxu0 %v693
      %1224 = vmatmul.mubr.bf16.gmra.mrb[0].mxu0 %v692
      %v1225 = vpop.f32.mrb[0].mxu0
      %v1226 = vadd.f32 %v1065, %v1225
      %v1227 = vpop.f32.mrb[0].mxu0
      %v1228 = vpop.f32.mrb[0].mxu0
      %v1229 = vadd.f32 %v1068, %v1228
      %v1230 = vpop.f32.mrb[0].mxu0
      %1231 = vmatprep.mubr.bf16.mxu0 %v697
      %1232 = vmatmul.mubr.bf16.gmra.mrb[0].mxu0 %v696
      %v1233 = vpop.f32.mrb[0].mxu0
      %v1234 = vadd.f32 %v1073, %v1233
      %v1235 = vpop.f32.mrb[0].mxu0
      %v1236 = vpop.f32.mrb[0].mxu0
      %v1237 = vadd.f32 %v1076, %v1236
      %v1238 = vpop.f32.mrb[0].mxu0
      %1239 = vmatprep.mubr.bf16.mxu0 %v701
      %1240 = vmatmul.mubr.bf16.gmra.mrb[0].mxu0 %v700
      %v1241 = vpop.f32.mrb[0].mxu0
      %v1242 = vadd.f32 %v1081, %v1241
      %v1243 = vpop.f32.mrb[0].mxu0
      %v1244 = vpop.f32.mrb[0].mxu0
      %v1245 = vadd.f32 %v1084, %v1244
      %v1246 = vpop.f32.mrb[0].mxu0
      %1247 = vmatprep.mubr.bf16.mxu0 %v705
      %1248 = vmatmul.mubr.bf16.gmra.mrb[0].mxu0 %v704
      %v1249 = vpop.f32.mrb[0].mxu0
      %v1250 = vadd.f32 %v1089, %v1249
      %v1251 = vpop.f32.mrb[0].mxu0
      %v1252 = vpop.f32.mrb[0].mxu0
      %v1253 = vadd.f32 %v1092, %v1252
      %v1254 = vpop.f32.mrb[0].mxu0
      %1255 = vmatprep.mubr.bf16.mxu0 %v709
      %1256 = vmatmul.mubr.bf16.gmra.mrb[0].mxu0 %v708
      %v1257 = vpop.f32.mrb[0].mxu0
      %v1258 = vadd.f32 %v1097, %v1257
      %v1259 = vpop.f32.mrb[0].mxu0
      %v1260 = vpop.f32.mrb[0].mxu0
      %v1261 = vadd.f32 %v1100, %v1260
      %v1262 = vpop.f32.mrb[0].mxu0
      %1263 = vmatprep.mubr.bf16.mxu0 %v713
      %1264 = vmatmul.mubr.bf16.gmra.mrb[0].mxu0 %v712
      %v1265 = vpop.f32.mrb[0].mxu0
      %v1266 = vadd.f32 %v1105, %v1265
      %v1267 = vpop.f32.mrb[0].mxu0
      %v1268 = vpop.f32.mrb[0].mxu0
      %v1269 = vadd.f32 %v1108, %v1268
      %v1270 = vpop.f32.mrb[0].mxu0
      %1271 = vmatprep.mubr.bf16.mxu0 %v717
      %1272 = vmatmul.mubr.bf16.gmra.mrb[0].mxu0 %v716
      %v1273 = vpop.f32.mrb[0].mxu0
      %v1274 = vadd.f32 %v1113, %v1273
      %v1275 = vpop.f32.mrb[0].mxu0
      %v1276 = vpop.f32.mrb[0].mxu0
      %v1277 = vadd.f32 %v1116, %v1276
      %v1278 = vpop.f32.mrb[0].mxu0
      %1279 = vmatprep.mubr.bf16.mxu0 %v721
      %1280 = vmatmul.mubr.bf16.gmra.mrb[0].mxu0 %v720
      %v1281 = vpop.f32.mrb[0].mxu0
      %v1282 = vadd.f32 %v1121, %v1281
      %v1283 = vpop.f32.mrb[0].mxu0
      %v1284 = vpop.f32.mrb[0].mxu0
      %v1285 = vadd.f32 %v1124, %v1284
      %v1286 = vpop.f32.mrb[0].mxu0
      %1287 = vmatprep.mubr.bf16.mxu0 %v725
      %1288 = vmatmul.mubr.bf16.gmra.mrb[0].mxu0 %v724
      %v1289 = vpop.f32.mrb[0].mxu0
      %v1290 = vadd.f32 %v1129, %v1289
      %v1291 = vpop.f32.mrb[0].mxu0
      %v1292 = vpop.f32.mrb[0].mxu0
      %v1293 = vadd.f32 %v1132, %v1292
      %v1294 = vpop.f32.mrb[0].mxu0
      %1295 = vmatprep.mubr.bf16.mxu0 %v729
      %1296 = vmatmul.mubr.bf16.gmra.mrb[0].mxu0 %v728
      %v1297 = vpop.f32.mrb[0].mxu0
      %v1298 = vadd.f32 %v1137, %v1297
      %v1299 = vpop.f32.mrb[0].mxu0
      %v1300 = vpop.f32.mrb[0].mxu0
      %v1301 = vadd.f32 %v1140, %v1300
      %v1302 = vpop.f32.mrb[0].mxu0
      %1303 = vmatprep.mubr.bf16.mxu0 %v733
      %1304 = vmatmul.mubr.bf16.gmra.mrb[0].mxu0 %v732
      %v1305 = vpop.f32.mrb[0].mxu0
      %v1306 = vadd.f32 %v1145, %v1305
      %v1307 = vpop.f32.mrb[0].mxu0
      %v1308 = vpop.f32.mrb[0].mxu0
      %v1309 = vadd.f32 %v1148, %v1308
      %v1310 = vpop.f32.mrb[0].mxu0
      %1311 = vdwg.mxu0
      %v1312 = vadd.f32 %v318, %v1186
      %v1313 = vadd.f32 %v319, %v1189
      %v1314 = vadd.f32 %v320, %v1194
      %v1315 = vadd.f32 %v321, %v1197
      %v1316 = vadd.f32 %v322, %v1202
      %v1317 = vadd.f32 %v323, %v1205
      %v1318 = vadd.f32 %v324, %v1210
      %v1319 = vadd.f32 %v325, %v1213
      %v1320 = vadd.f32 %v326, %v1218
      %v1321 = vadd.f32 %v327, %v1221
      %v1322 = vadd.f32 %v328, %v1226
      %v1323 = vadd.f32 %v329, %v1229
      %v1324 = vadd.f32 %v330, %v1234
      %v1325 = vadd.f32 %v331, %v1237
      %v1326 = vadd.f32 %v332, %v1242
      %v1327 = vadd.f32 %v333, %v1245
      %v1328 = vadd.f32 %v334, %v1250
      %v1329 = vadd.f32 %v335, %v1253
      %v1330 = vadd.f32 %v336, %v1258
      %v1331 = vadd.f32 %v337, %v1261
      %v1332 = vadd.f32 %v338, %v1266
      %v1333 = vadd.f32 %v339, %v1269
      %v1334 = vadd.f32 %v340, %v1274
      %v1335 = vadd.f32 %v341, %v1277
      %v1336 = vadd.f32 %v342, %v1282
      %v1337 = vadd.f32 %v343, %v1285
      %v1338 = vadd.f32 %v344, %v1290
      %v1339 = vadd.f32 %v345, %v1293
      %v1340 = vadd.f32 %v346, %v1298
      %v1341 = vadd.f32 %v347, %v1301
      %v1342 = vadd.f32 %v348, %v1306
      %v1343 = vadd.f32 %v349, %v1309
      %1344 = vst [vmem:[#allocation2] sm:$0xff] %v1312
      %1345 = vst [vmem:[#allocation2 + $0x8] sm:$0xff] %v1313
      %1346 = vst [vmem:[#allocation2 + $0x10] sm:$0xff] %v1314
      %1347 = vst [vmem:[#allocation2 + $0x18] sm:$0xff] %v1315
      %1348 = vst [vmem:[#allocation2 + $0x20] sm:$0xff] %v1316
      %1349 = vst [vmem:[#allocation2 + $0x28] sm:$0xff] %v1317
      %1350 = vst [vmem:[#allocation2 + $0x30] sm:$0xff] %v1318
      %1351 = vst [vmem:[#allocation2 + $0x38] sm:$0xff] %v1319
      %1352 = vst [vmem:[#allocation2 + $0x40] sm:$0xff] %v1320
      %1353 = vst [vmem:[#allocation2 + $0x48] sm:$0xff] %v1321
      %1354 = vst [vmem:[#allocation2 + $0x50] sm:$0xff] %v1322
      %1355 = vst [vmem:[#allocation2 + $0x58] sm:$0xff] %v1323
      %1356 = vst [vmem:[#allocation2 + $0x60] sm:$0xff] %v1324
      %1357 = vst [vmem:[#allocation2 + $0x68] sm:$0xff] %v1325
      %1358 = vst [vmem:[#allocation2 + $0x70] sm:$0xff] %v1326
      %1359 = vst [vmem:[#allocation2 + $0x78] sm:$0xff] %v1327
      %1360 = vst [vmem:[#allocation2 + $0x80] sm:$0xff] %v1328
      %1361 = vst [vmem:[#allocation2 + $0x88] sm:$0xff] %v1329
      %1362 = vst [vmem:[#allocation2 + $0x90] sm:$0xff] %v1330
      %1363 = vst [vmem:[#allocation2 + $0x98] sm:$0xff] %v1331
      %1364 = vst [vmem:[#allocation2 + $0xa0] sm:$0xff] %v1332
      %1365 = vst [vmem:[#allocation2 + $0xa8] sm:$0xff] %v1333
      %1366 = vst [vmem:[#allocation2 + $0xb0] sm:$0xff] %v1334
      %1367 = vst [vmem:[#allocation2 + $0xb8] sm:$0xff] %v1335
      %1368 = vst [vmem:[#allocation2 + $0xc0] sm:$0xff] %v1336
      %1369 = vst [vmem:[#allocation2 + $0xc8] sm:$0xff] %v1337
      %1370 = vst [vmem:[#allocation2 + $0xd0] sm:$0xff] %v1338
      %1371 = vst [vmem:[#allocation2 + $0xd8] sm:$0xff] %v1339
      %1372 = vst [vmem:[#allocation2 + $0xe0] sm:$0xff] %v1340
      %1373 = vst [vmem:[#allocation2 + $0xe8] sm:$0xff] %v1341
      %1374 = vst [vmem:[#allocation2 + $0xf0] sm:$0xff] %v1342
      %1375 = vst [vmem:[#allocation2 + $0xf8] sm:$0xff] %v1343
      // Predicated region
      $region45: #{conv_gnn_forward.5} parent=39 // pred_check
        %p1376 = pneg %p282
      $region46: #{conv_gnn_forward.5} parent=39 // pred_check_branch
        %1378 = sbr.rel (%p1376) target = $region48
      $region47: #{conv_gnn_forward.5} parent=39 // pred_region
        %v1379 = vld [vmem:[#allocation2] sm:$0xff]
        %v1380 = vld [vmem:[#allocation2 + $0x8] sm:$0xff]
        %v1381 = vld [vmem:[#allocation2 + $0x10] sm:$0xff]
        %v1382 = vld [vmem:[#allocation2 + $0x18] sm:$0xff]
        %v1383 = vld [vmem:[#allocation2 + $0x20] sm:$0xff]
        %v1384 = vld [vmem:[#allocation2 + $0x28] sm:$0xff]
        %v1385 = vld [vmem:[#allocation2 + $0x30] sm:$0xff]
        %v1386 = vld [vmem:[#allocation2 + $0x38] sm:$0xff]
        %v1387 = vld [vmem:[#allocation2 + $0x40] sm:$0xff]
        %v1388 = vld [vmem:[#allocation2 + $0x48] sm:$0xff]
        %v1389 = vld [vmem:[#allocation2 + $0x50] sm:$0xff]
        %v1390 = vld [vmem:[#allocation2 + $0x58] sm:$0xff]
        %v1391 = vld [vmem:[#allocation2 + $0x60] sm:$0xff]
        %v1392 = vld [vmem:[#allocation2 + $0x68] sm:$0xff]
        %v1393 = vld [vmem:[#allocation2 + $0x70] sm:$0xff]
        %v1394 = vld [vmem:[#allocation2 + $0x78] sm:$0xff]
        %v1395 = vld [vmem:[#allocation2 + $0x80] sm:$0xff]
        %v1396 = vld [vmem:[#allocation2 + $0x88] sm:$0xff]
        %v1397 = vld [vmem:[#allocation2 + $0x90] sm:$0xff]
        %v1398 = vld [vmem:[#allocation2 + $0x98] sm:$0xff]
        %v1399 = vld [vmem:[#allocation2 + $0xa0] sm:$0xff]
        %v1400 = vld [vmem:[#allocation2 + $0xa8] sm:$0xff]
        %v1401 = vld [vmem:[#allocation2 + $0xb0] sm:$0xff]
        %v1402 = vld [vmem:[#allocation2 + $0xb8] sm:$0xff]
        %v1403 = vld [vmem:[#allocation2 + $0xc0] sm:$0xff]
        %v1404 = vld [vmem:[#allocation2 + $0xc8] sm:$0xff]
        %v1405 = vld [vmem:[#allocation2 + $0xd0] sm:$0xff]
        %v1406 = vld [vmem:[#allocation2 + $0xd8] sm:$0xff]
        %v1407 = vld [vmem:[#allocation2 + $0xe0] sm:$0xff]
        %v1408 = vld [vmem:[#allocation2 + $0xe8] sm:$0xff]
        %v1409 = vld [vmem:[#allocation2 + $0xf0] sm:$0xff]
        %v1410 = vld [vmem:[#allocation2 + $0xf8] sm:$0xff]
        %v1411 = vld [vmem:[%s2] sm:$0x1]
        %v1413 = vlaneseq
        %v1414 = vshrl.u32 %v1413, 7
        %v1415 = vsub.s32 0, %v1414
        %v1416 = vrot.slane %v1411, %v1415
        %v1418 = vadd.f32 %v1379, %v1416
        %v1419 = vadd.f32 %v1380, %v1416
        %v1420 = vadd.f32 %v1381, %v1416
        %v1421 = vadd.f32 %v1382, %v1416
        %v1422 = vadd.f32 %v1383, %v1416
        %v1423 = vadd.f32 %v1384, %v1416
        %v1424 = vadd.f32 %v1385, %v1416
        %v1425 = vadd.f32 %v1386, %v1416
        %v1426 = vadd.f32 %v1387, %v1416
        %v1427 = vadd.f32 %v1388, %v1416
        %v1428 = vadd.f32 %v1389, %v1416
        %v1429 = vadd.f32 %v1390, %v1416
        %v1430 = vadd.f32 %v1391, %v1416
        %v1431 = vadd.f32 %v1392, %v1416
        %v1432 = vadd.f32 %v1393, %v1416
        %v1433 = vadd.f32 %v1394, %v1416
        %v1434 = vadd.f32 %v1395, %v1416
        %v1435 = vadd.f32 %v1396, %v1416
        %v1436 = vadd.f32 %v1397, %v1416
        %v1437 = vadd.f32 %v1398, %v1416
        %v1438 = vadd.f32 %v1399, %v1416
        %v1439 = vadd.f32 %v1400, %v1416
        %v1440 = vadd.f32 %v1401, %v1416
        %v1441 = vadd.f32 %v1402, %v1416
        %v1442 = vadd.f32 %v1403, %v1416
        %v1443 = vadd.f32 %v1404, %v1416
        %v1444 = vadd.f32 %v1405, %v1416
        %v1445 = vadd.f32 %v1406, %v1416
        %v1446 = vadd.f32 %v1407, %v1416
        %v1447 = vadd.f32 %v1408, %v1416
        %v1448 = vadd.f32 %v1409, %v1416
        %v1449 = vadd.f32 %v1410, %v1416
        %v1450 = vpack.c.bf16 %v1419, %v1418
        %v1451 = vpack.c.bf16 %v1421, %v1420
        %v1452 = vpack.c.bf16 %v1423, %v1422
        %v1453 = vpack.c.bf16 %v1425, %v1424
        %v1454 = vpack.c.bf16 %v1427, %v1426
        %v1455 = vpack.c.bf16 %v1429, %v1428
        %v1456 = vpack.c.bf16 %v1431, %v1430
        %v1457 = vpack.c.bf16 %v1433, %v1432
        %v1458 = vpack.c.bf16 %v1435, %v1434
        %v1459 = vpack.c.bf16 %v1437, %v1436
        %v1460 = vpack.c.bf16 %v1439, %v1438
        %v1461 = vpack.c.bf16 %v1441, %v1440
        %v1462 = vpack.c.bf16 %v1443, %v1442
        %v1463 = vpack.c.bf16 %v1445, %v1444
        %v1464 = vpack.c.bf16 %v1447, %v1446
        %v1465 = vpack.c.bf16 %v1449, %v1448
        %v1466 = vld [vmem:[%s3] sm:$0xf]
        %v1467 = vld [vmem:[%s3 + $0x4] sm:$0xf]
        %v1468 = vld [vmem:[%s3 + $0x8] sm:$0xf]
        %v1469 = vld [vmem:[%s3 + $0xc] sm:$0xf]
        %v1470 = vld [vmem:[%s3 + $0x10] sm:$0xf]
        %v1471 = vld [vmem:[%s3 + $0x14] sm:$0xf]
        %v1472 = vld [vmem:[%s3 + $0x18] sm:$0xf]
        %v1473 = vld [vmem:[%s3 + $0x1c] sm:$0xf]
        %v1474 = vld [vmem:[%s3 + $0x20] sm:$0xf]
        %v1475 = vld [vmem:[%s3 + $0x24] sm:$0xf]
        %v1476 = vld [vmem:[%s3 + $0x28] sm:$0xf]
        %v1477 = vld [vmem:[%s3 + $0x2c] sm:$0xf]
        %v1478 = vld [vmem:[%s3 + $0x30] sm:$0xf]
        %v1479 = vld [vmem:[%s3 + $0x34] sm:$0xf]
        %v1480 = vld [vmem:[%s3 + $0x38] sm:$0xf]
        %v1481 = vld [vmem:[%s3 + $0x3c] sm:$0xf]
        %v1482 = vld [vmem:[%s4] sm:$0x1]
        %v1484 = vlaneseq
        %v1485 = vshrl.u32 %v1484, 7
        %v1486 = vsub.s32 0, %v1485
        %v1487 = vrot.slane %v1482, %v1486
        %v1505 = vunpack.c.l.b16 %v1466
        %v1506 = vunpack.c.l.b16 %v1467
        %v1507 = vunpack.c.l.b16 %v1468
        %v1508 = vunpack.c.l.b16 %v1469
        %v1509 = vunpack.c.l.b16 %v1470
        %v1510 = vunpack.c.l.b16 %v1471
        %v1511 = vunpack.c.l.b16 %v1472
        %v1512 = vunpack.c.l.b16 %v1473
        %v1513 = vunpack.c.l.b16 %v1474
        %v1514 = vunpack.c.l.b16 %v1475
        %v1515 = vunpack.c.l.b16 %v1476
        %v1516 = vunpack.c.l.b16 %v1477
        %v1517 = vunpack.c.l.b16 %v1478
        %v1518 = vunpack.c.l.b16 %v1479
        %v1519 = vunpack.c.l.b16 %v1480
        %v1520 = vunpack.c.l.b16 %v1481
        %v1521 = vpack.c.b16 %v1506, %v1505
        %v1522 = vpack.c.b16 %v1508, %v1507
        %v1523 = vpack.c.b16 %v1510, %v1509
        %v1524 = vpack.c.b16 %v1512, %v1511
        %v1525 = vpack.c.b16 %v1514, %v1513
        %v1526 = vpack.c.b16 %v1516, %v1515
        %v1527 = vpack.c.b16 %v1518, %v1517
        %v1528 = vpack.c.b16 %v1520, %v1519
        %1537 = vmatprep.subr.bf16.mxu0 0
        %1538 = vmatpush1.bf16.msra.mxu0 %v1521
        %1539 = vmatprep.subr.bf16.mxu0 0
        %1540 = vmatpush1.bf16.msra.mxu0 %v1522
        %1541 = vmatprep.subr.bf16.mxu0 0
        %1542 = vmatpush1.bf16.msra.mxu0 %v1523
        %1543 = vmatprep.subr.bf16.mxu0 0
        %1544 = vmatpush1.bf16.msra.mxu0 %v1524
        %1545 = vmatprep.subr.bf16.mxu0 0
        %1546 = vmatpush1.bf16.msra.mxu0 %v1525
        %1547 = vmatprep.subr.bf16.mxu0 0
        %1548 = vmatpush1.bf16.msra.mxu0 %v1526
        %1549 = vmatprep.subr.bf16.mxu0 0
        %1550 = vmatpush1.bf16.msra.mxu0 %v1527
        %1551 = vmatprep.subr.bf16.mxu0 0
        %1552 = vmatpush1.bf16.msra.mxu0 %v1528
        %1553 = vmatprep.subr.bf16.mxu0 0
        %1554 = vmatpush1.bf16.msra.mxu0 0
        %1555 = vmatprep.subr.bf16.mxu0 0
        %1556 = vmatpush1.bf16.msra.mxu0 0
        %1557 = vmatprep.subr.bf16.mxu0 0
        %1558 = vmatpush1.bf16.msra.mxu0 0
        %1559 = vmatprep.subr.bf16.mxu0 0
        %1560 = vmatpush1.bf16.msra.mxu0 0
        %1561 = vmatprep.subr.bf16.mxu0 0
        %1562 = vmatpush1.bf16.msra.mxu0 0
        %1563 = vmatprep.subr.bf16.mxu0 0
        %1564 = vmatpush1.bf16.msra.mxu0 0
        %1565 = vmatprep.subr.bf16.mxu0 0
        %1566 = vmatpush1.bf16.msra.mxu0 0
        %1567 = vmatprep.subr.bf16.mxu0 0
        %1568 = vmatpush1.bf16.msra.mxu0 0
        %1569 = vmatprep.mubr.bf16.mxu0 0
        %1570 = vmatmul.mubr.bf16.gmra.mrb[0].mxu0 %v1450
        %v1571 = vpop.f32.mrb[0].mxu0
        %v1572 = vadd.f32 %v1487, %v1571
        %v1573 = vpop.f32.mrb[0].mxu0
        %v1574 = vpop.f32.mrb[0].mxu0
        %v1575 = vadd.f32 %v1487, %v1574
        %v1576 = vpop.f32.mrb[0].mxu0
        %1577 = vmatprep.mubr.bf16.mxu0 0
        %1578 = vmatmul.mubr.bf16.gmra.mrb[0].mxu0 %v1451
        %v1579 = vpop.f32.mrb[0].mxu0
        %v1580 = vadd.f32 %v1487, %v1579
        %v1581 = vpop.f32.mrb[0].mxu0
        %v1582 = vpop.f32.mrb[0].mxu0
        %v1583 = vadd.f32 %v1487, %v1582
        %v1584 = vpop.f32.mrb[0].mxu0
        %1585 = vmatprep.mubr.bf16.mxu0 0
        %1586 = vmatmul.mubr.bf16.gmra.mrb[0].mxu0 %v1452
        %v1587 = vpop.f32.mrb[0].mxu0
        %v1588 = vadd.f32 %v1487, %v1587
        %v1589 = vpop.f32.mrb[0].mxu0
        %v1590 = vpop.f32.mrb[0].mxu0
        %v1591 = vadd.f32 %v1487, %v1590
        %v1592 = vpop.f32.mrb[0].mxu0
        %1593 = vmatprep.mubr.bf16.mxu0 0
        %1594 = vmatmul.mubr.bf16.gmra.mrb[0].mxu0 %v1453
        %v1595 = vpop.f32.mrb[0].mxu0
        %v1596 = vadd.f32 %v1487, %v1595
        %v1597 = vpop.f32.mrb[0].mxu0
        %v1598 = vpop.f32.mrb[0].mxu0
        %v1599 = vadd.f32 %v1487, %v1598
        %v1600 = vpop.f32.mrb[0].mxu0
        %1601 = vmatprep.mubr.bf16.mxu0 0
        %1602 = vmatmul.mubr.bf16.gmra.mrb[0].mxu0 %v1454
        %v1603 = vpop.f32.mrb[0].mxu0
        %v1604 = vadd.f32 %v1487, %v1603
        %v1605 = vpop.f32.mrb[0].mxu0
        %v1606 = vpop.f32.mrb[0].mxu0
        %v1607 = vadd.f32 %v1487, %v1606
        %v1608 = vpop.f32.mrb[0].mxu0
        %1609 = vmatprep.mubr.bf16.mxu0 0
        %1610 = vmatmul.mubr.bf16.gmra.mrb[0].mxu0 %v1455
        %v1611 = vpop.f32.mrb[0].mxu0
        %v1612 = vadd.f32 %v1487, %v1611
        %v1613 = vpop.f32.mrb[0].mxu0
        %v1614 = vpop.f32.mrb[0].mxu0
        %v1615 = vadd.f32 %v1487, %v1614
        %v1616 = vpop.f32.mrb[0].mxu0
        %1617 = vmatprep.mubr.bf16.mxu0 0
        %1618 = vmatmul.mubr.bf16.gmra.mrb[0].mxu0 %v1456
        %v1619 = vpop.f32.mrb[0].mxu0
        %v1620 = vadd.f32 %v1487, %v1619
        %v1621 = vpop.f32.mrb[0].mxu0
        %v1622 = vpop.f32.mrb[0].mxu0
        %v1623 = vadd.f32 %v1487, %v1622
        %v1624 = vpop.f32.mrb[0].mxu0
        %1625 = vmatprep.mubr.bf16.mxu0 0
        %1626 = vmatmul.mubr.bf16.gmra.mrb[0].mxu0 %v1457
        %v1627 = vpop.f32.mrb[0].mxu0
        %v1628 = vadd.f32 %v1487, %v1627
        %v1629 = vpop.f32.mrb[0].mxu0
        %v1630 = vpop.f32.mrb[0].mxu0
        %v1631 = vadd.f32 %v1487, %v1630
        %v1632 = vpop.f32.mrb[0].mxu0
        %1633 = vmatprep.mubr.bf16.mxu0 0
        %1634 = vmatmul.mubr.bf16.gmra.mrb[0].mxu0 %v1458
        %v1635 = vpop.f32.mrb[0].mxu0
        %v1636 = vadd.f32 %v1487, %v1635
        %v1637 = vpop.f32.mrb[0].mxu0
        %v1638 = vpop.f32.mrb[0].mxu0
        %v1639 = vadd.f32 %v1487, %v1638
        %v1640 = vpop.f32.mrb[0].mxu0
        %1641 = vmatprep.mubr.bf16.mxu0 0
        %1642 = vmatmul.mubr.bf16.gmra.mrb[0].mxu0 %v1459
        %v1643 = vpop.f32.mrb[0].mxu0
        %v1644 = vadd.f32 %v1487, %v1643
        %v1645 = vpop.f32.mrb[0].mxu0
        %v1646 = vpop.f32.mrb[0].mxu0
        %v1647 = vadd.f32 %v1487, %v1646
        %v1648 = vpop.f32.mrb[0].mxu0
        %1649 = vmatprep.mubr.bf16.mxu0 0
        %1650 = vmatmul.mubr.bf16.gmra.mrb[0].mxu0 %v1460
        %v1651 = vpop.f32.mrb[0].mxu0
        %v1652 = vadd.f32 %v1487, %v1651
        %v1653 = vpop.f32.mrb[0].mxu0
        %v1654 = vpop.f32.mrb[0].mxu0
        %v1655 = vadd.f32 %v1487, %v1654
        %v1656 = vpop.f32.mrb[0].mxu0
        %1657 = vmatprep.mubr.bf16.mxu0 0
        %1658 = vmatmul.mubr.bf16.gmra.mrb[0].mxu0 %v1461
        %v1659 = vpop.f32.mrb[0].mxu0
        %v1660 = vadd.f32 %v1487, %v1659
        %v1661 = vpop.f32.mrb[0].mxu0
        %v1662 = vpop.f32.mrb[0].mxu0
        %v1663 = vadd.f32 %v1487, %v1662
        %v1664 = vpop.f32.mrb[0].mxu0
        %1665 = vmatprep.mubr.bf16.mxu0 0
        %1666 = vmatmul.mubr.bf16.gmra.mrb[0].mxu0 %v1462
        %v1667 = vpop.f32.mrb[0].mxu0
        %v1668 = vadd.f32 %v1487, %v1667
        %v1669 = vpop.f32.mrb[0].mxu0
        %v1670 = vpop.f32.mrb[0].mxu0
        %v1671 = vadd.f32 %v1487, %v1670
        %v1672 = vpop.f32.mrb[0].mxu0
        %1673 = vmatprep.mubr.bf16.mxu0 0
        %1674 = vmatmul.mubr.bf16.gmra.mrb[0].mxu0 %v1463
        %v1675 = vpop.f32.mrb[0].mxu0
        %v1676 = vadd.f32 %v1487, %v1675
        %v1677 = vpop.f32.mrb[0].mxu0
        %v1678 = vpop.f32.mrb[0].mxu0
        %v1679 = vadd.f32 %v1487, %v1678
        %v1680 = vpop.f32.mrb[0].mxu0
        %1681 = vmatprep.mubr.bf16.mxu0 0
        %1682 = vmatmul.mubr.bf16.gmra.mrb[0].mxu0 %v1464
        %v1683 = vpop.f32.mrb[0].mxu0
        %v1684 = vadd.f32 %v1487, %v1683
        %v1685 = vpop.f32.mrb[0].mxu0
        %v1686 = vpop.f32.mrb[0].mxu0
        %v1687 = vadd.f32 %v1487, %v1686
        %v1688 = vpop.f32.mrb[0].mxu0
        %1689 = vmatprep.mubr.bf16.mxu0 0
        %1690 = vmatmul.mubr.bf16.gmra.mrb[0].mxu0 %v1465
        %v1691 = vpop.f32.mrb[0].mxu0
        %v1692 = vadd.f32 %v1487, %v1691
        %v1693 = vpop.f32.mrb[0].mxu0
        %v1694 = vpop.f32.mrb[0].mxu0
        %v1695 = vadd.f32 %v1487, %v1694
        %v1696 = vpop.f32.mrb[0].mxu0
        %1697 = vdwg.mxu0
        %1698 = vst [vmem:[%s279] sm:$0xff] %v1572
        %1699 = vst [vmem:[%s279 + $0x8] sm:$0xff] %v1575
        %1700 = vst [vmem:[%s279 + $0x10] sm:$0xff] %v1580
        %1701 = vst [vmem:[%s279 + $0x18] sm:$0xff] %v1583
        %1702 = vst [vmem:[%s279 + $0x20] sm:$0xff] %v1588
        %1703 = vst [vmem:[%s279 + $0x28] sm:$0xff] %v1591
        %1704 = vst [vmem:[%s279 + $0x30] sm:$0xff] %v1596
        %1705 = vst [vmem:[%s279 + $0x38] sm:$0xff] %v1599
        %1706 = vst [vmem:[%s279 + $0x40] sm:$0xff] %v1604
        %1707 = vst [vmem:[%s279 + $0x48] sm:$0xff] %v1607
        %1708 = vst [vmem:[%s279 + $0x50] sm:$0xff] %v1612
        %1709 = vst [vmem:[%s279 + $0x58] sm:$0xff] %v1615
        %1710 = vst [vmem:[%s279 + $0x60] sm:$0xff] %v1620
        %1711 = vst [vmem:[%s279 + $0x68] sm:$0xff] %v1623
        %1712 = vst [vmem:[%s279 + $0x70] sm:$0xff] %v1628
        %1713 = vst [vmem:[%s279 + $0x78] sm:$0xff] %v1631
        %1714 = vst [vmem:[%s279 + $0x80] sm:$0xff] %v1636
        %1715 = vst [vmem:[%s279 + $0x88] sm:$0xff] %v1639
        %1716 = vst [vmem:[%s279 + $0x90] sm:$0xff] %v1644
        %1717 = vst [vmem:[%s279 + $0x98] sm:$0xff] %v1647
        %1718 = vst [vmem:[%s279 + $0xa0] sm:$0xff] %v1652
        %1719 = vst [vmem:[%s279 + $0xa8] sm:$0xff] %v1655
        %1720 = vst [vmem:[%s279 + $0xb0] sm:$0xff] %v1660
        %1721 = vst [vmem:[%s279 + $0xb8] sm:$0xff] %v1663
        %1722 = vst [vmem:[%s279 + $0xc0] sm:$0xff] %v1668
        %1723 = vst [vmem:[%s279 + $0xc8] sm:$0xff] %v1671
        %1724 = vst [vmem:[%s279 + $0xd0] sm:$0xff] %v1676
        %1725 = vst [vmem:[%s279 + $0xd8] sm:$0xff] %v1679
        %1726 = vst [vmem:[%s279 + $0xe0] sm:$0xff] %v1684
        %1727 = vst [vmem:[%s279 + $0xe8] sm:$0xff] %v1687
        %1728 = vst [vmem:[%s279 + $0xf0] sm:$0xff] %v1692
        %1729 = vst [vmem:[%s279 + $0xf8] sm:$0xff] %v1695
      $region48: #{conv_gnn_forward.5} parent=39 // pred_fallthru
        _
      %s1730 = smul.u32 32, %s20
      %p1731 = scmp.lt.s32.totalorder %s1730, 63
      %s1732 = scalar_select %p1731, %s1730, 63
      %s1733 = smul.addr %s1732, 8
      %s1734 = scalar_lea.vmem %s5, %s1733
      // Predicated region
      $region49: #{conv_gnn_forward.5} parent=39 // pred_check
        %p1735 = pneg %p163
      $region50: #{conv_gnn_forward.5} parent=39 // pred_check_branch
        %1737 = sbr.rel (%p1735) target = $region52
      $region51: #{conv_gnn_forward.5} parent=39 // pred_region
        %s1738 = smul.u32 32, %s20
      $region52: #{conv_gnn_forward.5} parent=39 // pred_fallthru
        _
    $region40: #{conv_gnn_forward.5} parent=5 // pred_fallthru
      _
    %p1739 = scmp.le.s32.totalorder 2, %s11
    // Predicated region
    $region53: #{conv_gnn_forward.5} parent=5 // pred_check
      %p1740 = pneg %p1739
    $region54: #{conv_gnn_forward.5} parent=5 // pred_check_branch
      %1742 = sbr.rel (%p1740) target = $region56
    $region55: #{conv_gnn_forward.5} parent=5 // pred_region
      %s1743 = ssub.s32 %s11, 2
      // Predicated region
      $region57: #{conv_gnn_forward.5} parent=55 // pred_check
        %p1744 = pneg %p169
      $region58: #{conv_gnn_forward.5} parent=55 // pred_check_branch
        %1746 = sbr.rel (%p1744) target = $region60
      $region59: #{conv_gnn_forward.5} parent=55 // pred_region
        %s1747 = smul.u32 32, %s22
        %p1748 = scmp.lt.s32.totalorder %s1747, 63
        %s1749 = scalar_select %p1748, %s1747, 63
        %s1750 = smul.addr %s1749, 8
        %s1751 = scalar_lea.vmem %s5, %s1750
      $region60: #{conv_gnn_forward.5} parent=55 // pred_fallthru
        _
    $region56: #{conv_gnn_forward.5} parent=5 // pred_fallthru
      _
  $region6: #{conv_gnn_forward.5} parent=0 // loop_footer
    %s15 = sadd.s32 1, %s11
  $region7: #{conv_gnn_forward.5} parent=0 // loop_footer_branch
    %10 = sbr.rel target = $region3
  $region8: #{conv_gnn_forward.5} parent=0 // loop_exit
    _

</llo_original>
